<compile_context>
chip_gen: v7x
topology: tpu7x:2x2x1
jax: 0.10.0
libtpu: 0.0.40
codegen_flags: <defaults>
</compile_context>

<pallas_src>
import functools

import numpy as np
import jax
import jax.numpy as jnp
from jax import lax
from jax.experimental import pallas as pl
from jax.experimental.pallas import tpu as pltpu


# ------------------------------ GRU cell math ------------------------------ #

def _gru_cell(gx, h, wh, H):
    """One GRU update. gx = x@Wx + b (precomputed), h carried state, wh (H,3H)."""
    gh_ru = jnp.dot(h, wh[:, :2 * H], preferred_element_type=jnp.float32)
    r = jax.nn.sigmoid(gx[:, :H] + gh_ru[:, :H])
    u = jax.nn.sigmoid(gx[:, H:2 * H] + gh_ru[:, H:2 * H])
    c = jnp.tanh(gx[:, 2 * H:]
                 + jnp.dot(r * h, wh[:, 2 * H:],
                           preferred_element_type=jnp.float32))
    return u * h + (1.0 - u) * c


# ------------------------------ Pallas kernels ----------------------------- #

def _gru_seq_kernel(gx_ref, h0_ref, wh_ref, out_ref, hT_ref, h_scr,
                    *, hidden, tt, unroll):
    """Unidirectional GRU, TT timesteps per grid step."""
    H = hidden
    i = pl.program_id(0)

    @pl.when(i == 0)
    def _():
        h_scr[...] = h0_ref[...].astype(jnp.float32)

    wh = wh_ref[...]

    def body(s, carry):
        h = _gru_cell(gx_ref[s].astype(jnp.float32), h_scr[...], wh, H)
        h_scr[...] = h
        out_ref[s] = h.astype(out_ref.dtype)
        return carry

    lax.fori_loop(0, tt, body, 0, unroll=unroll)

    @pl.when(i == pl.num_programs(0) - 1)
    def _():
        hT_ref[...] = h_scr[...].astype(hT_ref.dtype)


def _bigru_seq_kernel(gxf_ref, gxb_ref, h0_ref, whf_ref, whb_ref,
                      outf_ref, outb_ref, hT_ref, hf_scr, hb_scr,
                      *, hidden, tt, unroll):
    """Fused forward+backward GRU, TT timesteps per grid step.

    The backward direction's gx/out blocks are fetched with a reversed
    index_map (block nblk-1-i), so inside the block we walk local time in
    descending order -- this replaces the two jnp.flip HBM copies per layer.
    """
    H = hidden
    i = pl.program_id(0)

    @pl.when(i == 0)
    def _():
        h0 = h0_ref[...].astype(jnp.float32)      # (B, 2H) = [fwd | bwd]
        hf_scr[...] = h0[:, :H]
        hb_scr[...] = h0[:, H:]

    whf = whf_ref[...]
    whb = whb_ref[...]

    def body(s, carry):
        # Forward direction: ascending local time.
        hf = _gru_cell(gxf_ref[s].astype(jnp.float32), hf_scr[...], whf, H)
        hf_scr[...] = hf
        outf_ref[s] = hf.astype(outf_ref.dtype)
        # Backward direction: descending local time (block order already
        # reversed by the index_map).  Independent of fwd -> fills VPU slots.
        sb = tt - 1 - s
        hb = _gru_cell(gxb_ref[sb].astype(jnp.float32), hb_scr[...], whb, H)
        hb_scr[...] = hb
        outb_ref[sb] = hb.astype(outb_ref.dtype)
        return carry

    lax.fori_loop(0, tt, body, 0, unroll=unroll)

    @pl.when(i == pl.num_programs(0) - 1)
    def _():
        hT_ref[...] = jnp.concatenate(
            [hf_scr[...], hb_scr[...]], axis=-1).astype(hT_ref.dtype)


# ------------------------------ layer wrappers ------------------------------ #

def _pick_time_tile(T, max_tile=64):
    """Largest divisor of T that is <= max_tile (keeps blocks exact)."""
    tt = min(T, max_tile)
    while T % tt:
        tt -= 1
    return tt


def _input_projection(x, wx, b):
    """gx = X @ Wx + b for the whole sequence -- one big MXU-friendly matmul."""
    return (jnp.einsum("tbi,ih->tbh", x, wx) + b).astype(jnp.float32)


def gru_layer(x, h0, wx, wh, b):
    """Unidirectional GRU over the full sequence via one pallas_call."""
    T, B, _ = x.shape
    H = h0.shape[-1]
    gx = _input_projection(x, wx, b)                       # (T, B, 3H)
    tt = _pick_time_tile(T)
    nblk = T // tt
    kernel = functools.partial(_gru_seq_kernel, hidden=H, tt=tt,
                               unroll=(tt <= 16))
    out, hT = pl.pallas_call(
        kernel,
        out_shape=(jax.ShapeDtypeStruct((T, B, H), x.dtype),
                   jax.ShapeDtypeStruct((B, H), x.dtype)),
        grid_spec=pltpu.PrefetchScalarGridSpec(
            num_scalar_prefetch=0,
            grid=(nblk,),
            in_specs=[
                pl.BlockSpec((tt, B, 3 * H), lambda i: (i, 0, 0)),   # gx slab
                pl.BlockSpec((B, H), lambda i: (0, 0)),              # h0
                pl.BlockSpec((H, 3 * H), lambda i: (0, 0)),          # Wh
            ],
            out_specs=[
                pl.BlockSpec((tt, B, H), lambda i: (i, 0, 0)),       # all states
                pl.BlockSpec((B, H), lambda i: (0, 0)),              # final state
            ],
            scratch_shapes=[pltpu.VMEM((B, H), jnp.float32)],
        ),
        compiler_params=pltpu.CompilerParams(
            dimension_semantics=("arbitrary",)),                     # serial recurrence
    )(gx, h0, wh)
    return out, hT


def bigru_layer(x, h0, pf, pb):
    """Fused bidirectional GRU layer (both directions in one pallas_call).

    h0 is (B, 2H) = [fwd | bwd].  Returns (outputs (T,B,2H), state (B,2H)).
    """
    T, B, _ = x.shape
    H = pf["hidden"]
    gxf = _input_projection(x, pf["wx"], pf["b"])          # (T, B, 3H)
    gxb = _input_projection(x, pb["wx"], pb["b"])          # (T, B, 3H)
    tt = _pick_time_tile(T)
    nblk = T // tt
    kernel = functools.partial(_bigru_seq_kernel, hidden=H, tt=tt,
                               unroll=(tt <= 16))

    fwd_map = lambda i: (i, 0, 0)
    bwd_map = lambda i: (nblk - 1 - i, 0, 0)               # reversed time blocks
    const_map2 = lambda i: (0, 0)

    # TODO(synk): on v7x the two directions could additionally be split across
    # the two TensorCores with a leading core-parallel grid axis.
    out_f, out_b, hT = pl.pallas_call(
        kernel,
        out_shape=(jax.ShapeDtypeStruct((T, B, H), x.dtype),
                   jax.ShapeDtypeStruct((T, B, H), x.dtype),
                   jax.ShapeDtypeStruct((B, 2 * H), x.dtype)),
        grid_spec=pltpu.PrefetchScalarGridSpec(
            num_scalar_prefetch=0,
            grid=(nblk,),
            in_specs=[
                pl.BlockSpec((tt, B, 3 * H), fwd_map),     # gx fwd
                pl.BlockSpec((tt, B, 3 * H), bwd_map),     # gx bwd (reversed)
                pl.BlockSpec((B, 2 * H), const_map2),      # h0 [fwd|bwd]
                pl.BlockSpec((H, 3 * H), const_map2),      # Wh fwd
                pl.BlockSpec((H, 3 * H), const_map2),      # Wh bwd
            ],
            out_specs=[
                pl.BlockSpec((tt, B, H), fwd_map),         # fwd states
                pl.BlockSpec((tt, B, H), bwd_map),         # bwd states (reversed)
                pl.BlockSpec((B, 2 * H), const_map2),      # final state
            ],
            scratch_shapes=[pltpu.VMEM((B, H), jnp.float32),
                            pltpu.VMEM((B, H), jnp.float32)],
        ),
        compiler_params=pltpu.CompilerParams(
            dimension_semantics=("arbitrary",)),
    )(gxf, gxb, h0, pf["wh"], pb["wh"])

    outputs = jnp.concatenate([out_f, out_b], axis=-1)
    return outputs, hT


# ------------------------ parameter initialization ------------------------ #

def init_gru_params(key, input_size, hidden_size):
    """Matches MyGRU.__init__: N(0, 0.01) weights, zero biases."""
    ks = jax.random.split(key, 6)
    std = 0.01
    wxr = std * jax.random.normal(ks[0], (input_size, hidden_size), jnp.float32)
    whr = std * jax.random.normal(ks[1], (hidden_size, hidden_size), jnp.float32)
    wxu = std * jax.random.normal(ks[2], (input_size, hidden_size), jnp.float32)
    whu = std * jax.random.normal(ks[3], (hidden_size, hidden_size), jnp.float32)
    wxh = std * jax.random.normal(ks[4], (input_size, hidden_size), jnp.float32)
    whh = std * jax.random.normal(ks[5], (hidden_size, hidden_size), jnp.float32)
    wx = jnp.concatenate([wxr, wxu, wxh], axis=1)          # (I, 3H)
    wh = jnp.concatenate([whr, whu, whh], axis=1)          # (H, 3H)
    b = jnp.zeros((1, 3 * hidden_size), jnp.float32)       # biases are zero
    return {"wx": wx, "wh": wh, "b": b, "hidden": hidden_size}


def init_deep_gru_params(key, input_size, hidden_size, num_layers, bidirectional):
    layers = []
    keys = jax.random.split(key, num_layers)
    for l in range(num_layers):
        in_size = input_size if l == 0 else hidden_size
        if bidirectional:
            hh = hidden_size // 2
            kf, kb = jax.random.split(keys[l])
            layers.append({
                "bidirectional": True,
                "hidden_half": hh,
                "fwd": init_gru_params(kf, in_size, hh),
                "bwd": init_gru_params(kb, in_size, hh),
            })
        else:
            layers.append({
                "bidirectional": False,
                "uni": init_gru_params(keys[l], in_size, hidden_size),
            })
    return layers


# ----------------------------- module forward ----------------------------- #

def deep_gru_forward(params, x, initial_states=None):
    """MyDeepGRU.forward: x is (T, B, input_size)."""
    states = []
    outputs = x
    for l, layer in enumerate(params):
        init = None if initial_states is None else initial_states[l]
        B = outputs.shape[1]
        if layer["bidirectional"]:
            hh = layer["hidden_half"]
            h0 = jnp.zeros((B, 2 * hh), outputs.dtype) if init is None else init
            outputs, st = bigru_layer(outputs, h0, layer["fwd"], layer["bwd"])
        else:
            p = layer["uni"]
            h0 = jnp.zeros((B, p["hidden"]), outputs.dtype) if init is None else init
            outputs, st = gru_layer(outputs, h0, p["wx"], p["wh"], p["b"])
        states.append(st)
    return outputs, jnp.stack(states)


# --------------------------- pure-JAX reference ---------------------------- #

def _gru_ref(p, x, h0):
    H = p["hidden"]
    if h0 is None:
        h0 = jnp.zeros((x.shape[1], H), x.dtype)
    wx, wh, b = p["wx"], p["wh"], p["b"]

    def step(h, xt):
        gx = xt @ wx + b
        gh = h @ wh[:, :2 * H]
        r = jax.nn.sigmoid(gx[:, :H] + gh[:, :H])
        u = jax.nn.sigmoid(gx[:, H:2 * H] + gh[:, H:2 * H])
        c = jnp.tanh(gx[:, 2 * H:] + (r * h) @ wh[:, 2 * H:])
        hn = u * h + (1.0 - u) * c
        return hn, hn

    hT, out = lax.scan(step, h0, x)
    return out, hT


def deep_gru_ref(params, x, initial_states=None):
    states = []
    outputs = x
    for l, layer in enumerate(params):
        init = None if initial_states is None else initial_states[l]
        if layer["bidirectional"]:
            hh = layer["hidden_half"]
            hf = None if init is None else init[:, :hh]
            hb = None if init is None else init[:, hh:]
            fo, fs = _gru_ref(layer["fwd"], outputs, hf)
            bo, bs = _gru_ref(layer["bwd"], jnp.flip(outputs, 0), hb)
            outputs = jnp.concatenate([fo, jnp.flip(bo, 0)], axis=-1)
            st = jnp.concatenate([fs, bs], axis=-1)
        else:
            outputs, st = _gru_ref(layer["uni"], outputs, init)
        states.append(st)
    return outputs, jnp.stack(states)


# ---------------------------------- main ----------------------------------- #

if __name__ == "__main__":
    T, B = 8, 2
    INPUT_SIZE, HIDDEN_SIZE = 16, 32
    NUM_LAYERS = 2
    BIDIRECTIONAL = True

    key = jax.random.PRNGKey(0)
    k_param, k_x, k_h = jax.random.split(key, 3)

    params = init_deep_gru_params(k_param, INPUT_SIZE, HIDDEN_SIZE,
                                  NUM_LAYERS, BIDIRECTIONAL)
    x = jax.random.normal(k_x, (T, B, INPUT_SIZE), jnp.float32)
    initial_states = 0.1 * jax.random.normal(
        k_h, (NUM_LAYERS, B, HIDDEN_SIZE), jnp.float32)

    # Bidirectional, 2-layer, with initial states (the fused bi-GRU kernel).
    outputs, states = deep_gru_forward(params, x, initial_states)
    outputs = jax.block_until_ready(outputs)
    states = jax.block_until_ready(states)

    assert outputs.shape == (T, B, HIDDEN_SIZE)
    assert states.shape == (NUM_LAYERS, B, HIDDEN_SIZE)

    ref_out, ref_states = deep_gru_ref(params, x, initial_states)
    np.testing.assert_allclose(np.asarray(outputs), np.asarray(ref_out),
                               rtol=1e-5, atol=1e-5)
    np.testing.assert_allclose(np.asarray(states), np.asarray(ref_states),
                               rtol=1e-5, atol=1e-5)

    # Unidirectional single-layer sanity check (exercises the uni kernel,
    # zero-initialized state path).
    uni_params = init_deep_gru_params(jax.random.PRNGKey(1), INPUT_SIZE,
                                      HIDDEN_SIZE, 1, False)
    uo, us = deep_gru_forward(uni_params, x)
    uo = jax.block_until_ready(uo)
    us = jax.block_until_ready(us)
    ro, rs = deep_gru_ref(uni_params, x)
    np.testing.assert_allclose(np.asarray(uo), np.asarray(ro),
                               rtol=1e-5, atol=1e-5)
    np.testing.assert_allclose(np.asarray(us), np.asarray(rs),
                               rtol=1e-5, atol=1e-5)

    print("KERNEL_OK")
</pallas_src>

<mosaic_0001>
module attributes {stable_mosaic.version = 11 : i64} {
  func.func @_bigru_seq_kernel(%arg0: i32, %arg1: memref<8x2x48xf32, #tpu.memory_space<vmem>>, %arg2: memref<8x2x48xf32, #tpu.memory_space<vmem>>, %arg3: memref<2x32xf32, #tpu.memory_space<vmem>>, %arg4: memref<16x48xf32, #tpu.memory_space<vmem>>, %arg5: memref<16x48xf32, #tpu.memory_space<vmem>>, %arg6: memref<8x2x16xf32, #tpu.memory_space<vmem>>, %arg7: memref<8x2x16xf32, #tpu.memory_space<vmem>>, %arg8: memref<2x32xf32, #tpu.memory_space<vmem>>, %arg9: memref<2x16xf32, #tpu.memory_space<vmem>>, %arg10: memref<2x16xf32, #tpu.memory_space<vmem>>) attributes {dimension_semantics = [#tpu.dimension_semantics<arbitrary>], iteration_bounds = array<i64: 1>, scalar_prefetch = 0 : i64, scratch_operands = 2 : i64, tpu.core_type = #tpu.core_type<tc>, window_params = [{transform_indices = @transform_0, window_bounds = array<i64: 8, 2, 48>}, {transform_indices = @transform_1, window_bounds = array<i64: 8, 2, 48>}, {pipeline_mode = #tpu.pipeline_mode<synchronous>, transform_indices = @transform_2, window_bounds = array<i64: 2, 32>}, {pipeline_mode = #tpu.pipeline_mode<synchronous>, transform_indices = @transform_3, window_bounds = array<i64: 16, 48>}, {pipeline_mode = #tpu.pipeline_mode<synchronous>, transform_indices = @transform_4, window_bounds = array<i64: 16, 48>}, {transform_indices = @transform_5, window_bounds = array<i64: 8, 2, 16>}, {transform_indices = @transform_6, window_bounds = array<i64: 8, 2, 16>}, {pipeline_mode = #tpu.pipeline_mode<synchronous>, transform_indices = @transform_7, window_bounds = array<i64: 2, 32>}]} {
    %c0_i32 = arith.constant 0 : i32
    %0 = arith.cmpi eq, %arg0, %c0_i32 : i32
    %1 = arith.extui %0 : i1 to i32
    %c0_i32_0 = arith.constant 0 : i32
    %2 = arith.cmpi ne, %1, %c0_i32_0 : i32
    scf.if %2 {
      %c0_222 = arith.constant 0 : index
      %c0_223 = arith.constant 0 : index
      %624 = vector.load %arg3[%c0_222, %c0_223] : memref<2x32xf32, #tpu.memory_space<vmem>>, vector<2x32xf32>
      %625 = vector.extract_strided_slice %624 {offsets = [0, 0], sizes = [2, 16], strides = [1, 1]} : vector<2x32xf32> to vector<2x16xf32>
      %c0_224 = arith.constant 0 : index
      %c0_225 = arith.constant 0 : index
      %626 = vector.load %arg9[%c0_224, %c0_225] : memref<2x16xf32, #tpu.memory_space<vmem>>, vector<2x16xf32>
      tpu.vector_store %arg9[%c0_224, %c0_225], %625 {strides = array<i32>} : memref<2x16xf32, #tpu.memory_space<vmem>>, vector<2x16xf32>,
      %627 = vector.extract_strided_slice %624 {offsets = [0, 16], sizes = [2, 16], strides = [1, 1]} : vector<2x32xf32> to vector<2x16xf32>
      %c0_226 = arith.constant 0 : index
      %c0_227 = arith.constant 0 : index
      %628 = vector.load %arg10[%c0_226, %c0_227] : memref<2x16xf32, #tpu.memory_space<vmem>>, vector<2x16xf32>
      tpu.vector_store %arg10[%c0_226, %c0_227], %627 {strides = array<i32>} : memref<2x16xf32, #tpu.memory_space<vmem>>, vector<2x16xf32>,
    } else {
    }
    %c0 = arith.constant 0 : index
    %c0_1 = arith.constant 0 : index
    %3 = vector.load %arg4[%c0, %c0_1] : memref<16x48xf32, #tpu.memory_space<vmem>>, vector<16x48xf32>
    %c0_2 = arith.constant 0 : index
    %c0_3 = arith.constant 0 : index
    %4 = vector.load %arg5[%c0_2, %c0_3] : memref<16x48xf32, #tpu.memory_space<vmem>>, vector<16x48xf32>
    %c0_i32_4 = arith.constant 0 : i32
    %5 = arith.index_cast %c0_i32_4 : i32 to index
    %c0_5 = arith.constant 0 : index
    %c0_6 = arith.constant 0 : index
    %6 = vector.load %arg1[%5, %c0_5, %c0_6] : memref<8x2x48xf32, #tpu.memory_space<vmem>>, vector<1x2x48xf32>
    %7 = vector.shape_cast %6 : vector<1x2x48xf32> to vector<2x48xf32>
    %c0_7 = arith.constant 0 : index
    %c0_8 = arith.constant 0 : index
    %8 = vector.load %arg9[%c0_7, %c0_8] : memref<2x16xf32, #tpu.memory_space<vmem>>, vector<2x16xf32>
    %9 = vector.extract_strided_slice %3 {offsets = [0, 0], sizes = [16, 32], strides = [1, 1]} : vector<16x48xf32> to vector<16x32xf32>
    %cst = arith.constant dense<0.000000e+00> : vector<2x32xf32>
    %10 = tpu.matmul %8, %9, %cst {dimension_numbers = #tpu.dot_dimension_numbers<[1], [0], [0], [1], [0, 0, 1, 1], [], []>} : vector<2x16xf32>, vector<16x32xf32>, vector<2x32xf32> -> vector<2x32xf32>
    %11 = vector.extract_strided_slice %7 {offsets = [0, 0], sizes = [2, 16], strides = [1, 1]} : vector<2x48xf32> to vector<2x16xf32>
    %12 = vector.extract_strided_slice %10 {offsets = [0, 0], sizes = [2, 16], strides = [1, 1]} : vector<2x32xf32> to vector<2x16xf32>
    %13 = arith.addf %11, %12 : vector<2x16xf32>
    %14 = arith.negf %13 : vector<2x16xf32>
    %15 = math.exp %14 : vector<2x16xf32>
    %cst_9 = arith.constant 1.000000e+00 : f32
    %16 = vector.broadcast %cst_9 : f32 to vector<2x16xf32>
    %17 = arith.addf %16, %15 : vector<2x16xf32>
    %18 = arith.divf %16, %17 : vector<2x16xf32>
    %19 = vector.extract_strided_slice %7 {offsets = [0, 16], sizes = [2, 16], strides = [1, 1]} : vector<2x48xf32> to vector<2x16xf32>
    %20 = vector.extract_strided_slice %10 {offsets = [0, 16], sizes = [2, 16], strides = [1, 1]} : vector<2x32xf32> to vector<2x16xf32>
    %21 = arith.addf %19, %20 : vector<2x16xf32>
    %22 = arith.negf %21 : vector<2x16xf32>
    %23 = math.exp %22 : vector<2x16xf32>
    %cst_10 = arith.constant 1.000000e+00 : f32
    %24 = vector.broadcast %cst_10 : f32 to vector<2x16xf32>
    %25 = arith.addf %24, %23 : vector<2x16xf32>
    %26 = arith.divf %24, %25 : vector<2x16xf32>
    %27 = vector.extract_strided_slice %7 {offsets = [0, 32], sizes = [2, 16], strides = [1, 1]} : vector<2x48xf32> to vector<2x16xf32>
    %28 = arith.mulf %18, %8 : vector<2x16xf32>
    %29 = vector.extract_strided_slice %3 {offsets = [0, 32], sizes = [16, 16], strides = [1, 1]} : vector<16x48xf32> to vector<16x16xf32>
    %cst_11 = arith.constant dense<0.000000e+00> : vector<2x16xf32>
    %30 = tpu.matmul %28, %29, %cst_11 {dimension_numbers = #tpu.dot_dimension_numbers<[1], [0], [0], [1], [0, 0, 1, 1], [], []>} : vector<2x16xf32>, vector<16x16xf32>, vector<2x16xf32> -> vector<2x16xf32>
    %31 = arith.addf %27, %30 : vector<2x16xf32>
    %32 = math.tanh %31 : vector<2x16xf32>
    %33 = arith.mulf %26, %8 : vector<2x16xf32>
    %cst_12 = arith.constant 1.000000e+00 : f32
    %34 = vector.broadcast %cst_12 : f32 to vector<2x16xf32>
    %35 = arith.subf %34, %26 : vector<2x16xf32>
    %36 = arith.mulf %35, %32 : vector<2x16xf32>
    %37 = arith.addf %33, %36 : vector<2x16xf32>
    %c0_13 = arith.constant 0 : index
    %c0_14 = arith.constant 0 : index
    %38 = vector.load %arg9[%c0_13, %c0_14] : memref<2x16xf32, #tpu.memory_space<vmem>>, vector<2x16xf32>
    tpu.vector_store %arg9[%c0_13, %c0_14], %37 {strides = array<i32>} : memref<2x16xf32, #tpu.memory_space<vmem>>, vector<2x16xf32>,
    %39 = arith.index_cast %c0_i32_4 : i32 to index
    %c0_15 = arith.constant 0 : index
    %c0_16 = arith.constant 0 : index
    %40 = vector.load %arg6[%39, %c0_15, %c0_16] : memref<8x2x16xf32, #tpu.memory_space<vmem>>, vector<1x2x16xf32>
    %41 = vector.shape_cast %40 : vector<1x2x16xf32> to vector<2x16xf32>
    %42 = vector.shape_cast %37 : vector<2x16xf32> to vector<1x2x16xf32>
    tpu.vector_store %arg6[%39, %c0_15, %c0_16], %42 {strides = array<i32>} : memref<8x2x16xf32, #tpu.memory_space<vmem>>, vector<1x2x16xf32>,
    %c7_i32 = arith.constant 7 : i32
    %43 = arith.subi %c7_i32, %c0_i32_4 : i32
    %44 = arith.index_cast %43 : i32 to index
    %c0_17 = arith.constant 0 : index
    %c0_18 = arith.constant 0 : index
    %45 = vector.load %arg2[%44, %c0_17, %c0_18] : memref<8x2x48xf32, #tpu.memory_space<vmem>>, vector<1x2x48xf32>
    %46 = vector.shape_cast %45 : vector<1x2x48xf32> to vector<2x48xf32>
    %c0_19 = arith.constant 0 : index
    %c0_20 = arith.constant 0 : index
    %47 = vector.load %arg10[%c0_19, %c0_20] : memref<2x16xf32, #tpu.memory_space<vmem>>, vector<2x16xf32>
    %48 = vector.extract_strided_slice %4 {offsets = [0, 0], sizes = [16, 32], strides = [1, 1]} : vector<16x48xf32> to vector<16x32xf32>
    %cst_21 = arith.constant dense<0.000000e+00> : vector<2x32xf32>
    %49 = tpu.matmul %47, %48, %cst_21 {dimension_numbers = #tpu.dot_dimension_numbers<[1], [0], [0], [1], [0, 0, 1, 1], [], []>} : vector<2x16xf32>, vector<16x32xf32>, vector<2x32xf32> -> vector<2x32xf32>
    %50 = vector.extract_strided_slice %46 {offsets = [0, 0], sizes = [2, 16], strides = [1, 1]} : vector<2x48xf32> to vector<2x16xf32>
    %51 = vector.extract_strided_slice %49 {offsets = [0, 0], sizes = [2, 16], strides = [1, 1]} : vector<2x32xf32> to vector<2x16xf32>
    %52 = arith.addf %50, %51 : vector<2x16xf32>
    %53 = arith.negf %52 : vector<2x16xf32>
    %54 = math.exp %53 : vector<2x16xf32>
    %cst_22 = arith.constant 1.000000e+00 : f32
    %55 = vector.broadcast %cst_22 : f32 to vector<2x16xf32>
    %56 = arith.addf %55, %54 : vector<2x16xf32>
    %57 = arith.divf %55, %56 : vector<2x16xf32>
    %58 = vector.extract_strided_slice %46 {offsets = [0, 16], sizes = [2, 16], strides = [1, 1]} : vector<2x48xf32> to vector<2x16xf32>
    %59 = vector.extract_strided_slice %49 {offsets = [0, 16], sizes = [2, 16], strides = [1, 1]} : vector<2x32xf32> to vector<2x16xf32>
    %60 = arith.addf %58, %59 : vector<2x16xf32>
    %61 = arith.negf %60 : vector<2x16xf32>
    %62 = math.exp %61 : vector<2x16xf32>
    %cst_23 = arith.constant 1.000000e+00 : f32
    %63 = vector.broadcast %cst_23 : f32 to vector<2x16xf32>
    %64 = arith.addf %63, %62 : vector<2x16xf32>
    %65 = arith.divf %63, %64 : vector<2x16xf32>
    %66 = vector.extract_strided_slice %46 {offsets = [0, 32], sizes = [2, 16], strides = [1, 1]} : vector<2x48xf32> to vector<2x16xf32>
    %67 = arith.mulf %57, %47 : vector<2x16xf32>
    %68 = vector.extract_strided_slice %4 {offsets = [0, 32], sizes = [16, 16], strides = [1, 1]} : vector<16x48xf32> to vector<16x16xf32>
    %cst_24 = arith.constant dense<0.000000e+00> : vector<2x16xf32>
    %69 = tpu.matmul %67, %68, %cst_24 {dimension_numbers = #tpu.dot_dimension_numbers<[1], [0], [0], [1], [0, 0, 1, 1], [], []>} : vector<2x16xf32>, vector<16x16xf32>, vector<2x16xf32> -> vector<2x16xf32>
    %70 = arith.addf %66, %69 : vector<2x16xf32>
    %71 = math.tanh %70 : vector<2x16xf32>
    %72 = arith.mulf %65, %47 : vector<2x16xf32>
    %cst_25 = arith.constant 1.000000e+00 : f32
    %73 = vector.broadcast %cst_25 : f32 to vector<2x16xf32>
    %74 = arith.subf %73, %65 : vector<2x16xf32>
    %75 = arith.mulf %74, %71 : vector<2x16xf32>
    %76 = arith.addf %72, %75 : vector<2x16xf32>
    %c0_26 = arith.constant 0 : index
    %c0_27 = arith.constant 0 : index
    %77 = vector.load %arg10[%c0_26, %c0_27] : memref<2x16xf32, #tpu.memory_space<vmem>>, vector<2x16xf32>
    tpu.vector_store %arg10[%c0_26, %c0_27], %76 {strides = array<i32>} : memref<2x16xf32, #tpu.memory_space<vmem>>, vector<2x16xf32>,
    %78 = arith.index_cast %43 : i32 to index
    %c0_28 = arith.constant 0 : index
    %c0_29 = arith.constant 0 : index
    %79 = vector.load %arg7[%78, %c0_28, %c0_29] : memref<8x2x16xf32, #tpu.memory_space<vmem>>, vector<1x2x16xf32>
    %80 = vector.shape_cast %79 : vector<1x2x16xf32> to vector<2x16xf32>
    %81 = vector.shape_cast %76 : vector<2x16xf32> to vector<1x2x16xf32>
    tpu.vector_store %arg7[%78, %c0_28, %c0_29], %81 {strides = array<i32>} : memref<8x2x16xf32, #tpu.memory_space<vmem>>, vector<1x2x16xf32>,
    %c1_i32 = arith.constant 1 : i32
    %82 = arith.index_cast %c1_i32 : i32 to index
    %c0_30 = arith.constant 0 : index
    %c0_31 = arith.constant 0 : index
    %83 = vector.load %arg1[%82, %c0_30, %c0_31] : memref<8x2x48xf32, #tpu.memory_space<vmem>>, vector<1x2x48xf32>
    %84 = vector.shape_cast %83 : vector<1x2x48xf32> to vector<2x48xf32>
    %c0_32 = arith.constant 0 : index
    %c0_33 = arith.constant 0 : index
    %85 = vector.load %arg9[%c0_32, %c0_33] : memref<2x16xf32, #tpu.memory_space<vmem>>, vector<2x16xf32>
    %86 = vector.extract_strided_slice %3 {offsets = [0, 0], sizes = [16, 32], strides = [1, 1]} : vector<16x48xf32> to vector<16x32xf32>
    %cst_34 = arith.constant dense<0.000000e+00> : vector<2x32xf32>
    %87 = tpu.matmul %85, %86, %cst_34 {dimension_numbers = #tpu.dot_dimension_numbers<[1], [0], [0], [1], [0, 0, 1, 1], [], []>} : vector<2x16xf32>, vector<16x32xf32>, vector<2x32xf32> -> vector<2x32xf32>
    %88 = vector.extract_strided_slice %84 {offsets = [0, 0], sizes = [2, 16], strides = [1, 1]} : vector<2x48xf32> to vector<2x16xf32>
    %89 = vector.extract_strided_slice %87 {offsets = [0, 0], sizes = [2, 16], strides = [1, 1]} : vector<2x32xf32> to vector<2x16xf32>
    %90 = arith.addf %88, %89 : vector<2x16xf32>
    %91 = arith.negf %90 : vector<2x16xf32>
    %92 = math.exp %91 : vector<2x16xf32>
    %cst_35 = arith.constant 1.000000e+00 : f32
    %93 = vector.broadcast %cst_35 : f32 to vector<2x16xf32>
    %94 = arith.addf %93, %92 : vector<2x16xf32>
    %95 = arith.divf %93, %94 : vector<2x16xf32>
    %96 = vector.extract_strided_slice %84 {offsets = [0, 16], sizes = [2, 16], strides = [1, 1]} : vector<2x48xf32> to vector<2x16xf32>
    %97 = vector.extract_strided_slice %87 {offsets = [0, 16], sizes = [2, 16], strides = [1, 1]} : vector<2x32xf32> to vector<2x16xf32>
    %98 = arith.addf %96, %97 : vector<2x16xf32>
    %99 = arith.negf %98 : vector<2x16xf32>
    %100 = math.exp %99 : vector<2x16xf32>
    %cst_36 = arith.constant 1.000000e+00 : f32
    %101 = vector.broadcast %cst_36 : f32 to vector<2x16xf32>
    %102 = arith.addf %101, %100 : vector<2x16xf32>
    %103 = arith.divf %101, %102 : vector<2x16xf32>
    %104 = vector.extract_strided_slice %84 {offsets = [0, 32], sizes = [2, 16], strides = [1, 1]} : vector<2x48xf32> to vector<2x16xf32>
    %105 = arith.mulf %95, %85 : vector<2x16xf32>
    %106 = vector.extract_strided_slice %3 {offsets = [0, 32], sizes = [16, 16], strides = [1, 1]} : vector<16x48xf32> to vector<16x16xf32>
    %cst_37 = arith.constant dense<0.000000e+00> : vector<2x16xf32>
    %107 = tpu.matmul %105, %106, %cst_37 {dimension_numbers = #tpu.dot_dimension_numbers<[1], [0], [0], [1], [0, 0, 1, 1], [], []>} : vector<2x16xf32>, vector<16x16xf32>, vector<2x16xf32> -> vector<2x16xf32>
    %108 = arith.addf %104, %107 : vector<2x16xf32>
    %109 = math.tanh %108 : vector<2x16xf32>
    %110 = arith.mulf %103, %85 : vector<2x16xf32>
    %cst_38 = arith.constant 1.000000e+00 : f32
    %111 = vector.broadcast %cst_38 : f32 to vector<2x16xf32>
    %112 = arith.subf %111, %103 : vector<2x16xf32>
    %113 = arith.mulf %112, %109 : vector<2x16xf32>
    %114 = arith.addf %110, %113 : vector<2x16xf32>
    %c0_39 = arith.constant 0 : index
    %c0_40 = arith.constant 0 : index
    %115 = vector.load %arg9[%c0_39, %c0_40] : memref<2x16xf32, #tpu.memory_space<vmem>>, vector<2x16xf32>
    tpu.vector_store %arg9[%c0_39, %c0_40], %114 {strides = array<i32>} : memref<2x16xf32, #tpu.memory_space<vmem>>, vector<2x16xf32>,
    %116 = arith.index_cast %c1_i32 : i32 to index
    %c0_41 = arith.constant 0 : index
    %c0_42 = arith.constant 0 : index
    %117 = vector.load %arg6[%116, %c0_41, %c0_42] : memref<8x2x16xf32, #tpu.memory_space<vmem>>, vector<1x2x16xf32>
    %118 = vector.shape_cast %117 : vector<1x2x16xf32> to vector<2x16xf32>
    %119 = vector.shape_cast %114 : vector<2x16xf32> to vector<1x2x16xf32>
    tpu.vector_store %arg6[%116, %c0_41, %c0_42], %119 {strides = array<i32>} : memref<8x2x16xf32, #tpu.memory_space<vmem>>, vector<1x2x16xf32>,
    %c7_i32_43 = arith.constant 7 : i32
    %120 = arith.subi %c7_i32_43, %c1_i32 : i32
    %121 = arith.index_cast %120 : i32 to index
    %c0_44 = arith.constant 0 : index
    %c0_45 = arith.constant 0 : index
    %122 = vector.load %arg2[%121, %c0_44, %c0_45] : memref<8x2x48xf32, #tpu.memory_space<vmem>>, vector<1x2x48xf32>
    %123 = vector.shape_cast %122 : vector<1x2x48xf32> to vector<2x48xf32>
    %c0_46 = arith.constant 0 : index
    %c0_47 = arith.constant 0 : index
    %124 = vector.load %arg10[%c0_46, %c0_47] : memref<2x16xf32, #tpu.memory_space<vmem>>, vector<2x16xf32>
    %125 = vector.extract_strided_slice %4 {offsets = [0, 0], sizes = [16, 32], strides = [1, 1]} : vector<16x48xf32> to vector<16x32xf32>
    %cst_48 = arith.constant dense<0.000000e+00> : vector<2x32xf32>
    %126 = tpu.matmul %124, %125, %cst_48 {dimension_numbers = #tpu.dot_dimension_numbers<[1], [0], [0], [1], [0, 0, 1, 1], [], []>} : vector<2x16xf32>, vector<16x32xf32>, vector<2x32xf32> -> vector<2x32xf32>
    %127 = vector.extract_strided_slice %123 {offsets = [0, 0], sizes = [2, 16], strides = [1, 1]} : vector<2x48xf32> to vector<2x16xf32>
    %128 = vector.extract_strided_slice %126 {offsets = [0, 0], sizes = [2, 16], strides = [1, 1]} : vector<2x32xf32> to vector<2x16xf32>
    %129 = arith.addf %127, %128 : vector<2x16xf32>
    %130 = arith.negf %129 : vector<2x16xf32>
    %131 = math.exp %130 : vector<2x16xf32>
    %cst_49 = arith.constant 1.000000e+00 : f32
    %132 = vector.broadcast %cst_49 : f32 to vector<2x16xf32>
    %133 = arith.addf %132, %131 : vector<2x16xf32>
    %134 = arith.divf %132, %133 : vector<2x16xf32>
    %135 = vector.extract_strided_slice %123 {offsets = [0, 16], sizes = [2, 16], strides = [1, 1]} : vector<2x48xf32> to vector<2x16xf32>
    %136 = vector.extract_strided_slice %126 {offsets = [0, 16], sizes = [2, 16], strides = [1, 1]} : vector<2x32xf32> to vector<2x16xf32>
    %137 = arith.addf %135, %136 : vector<2x16xf32>
    %138 = arith.negf %137 : vector<2x16xf32>
    %139 = math.exp %138 : vector<2x16xf32>
    %cst_50 = arith.constant 1.000000e+00 : f32
    %140 = vector.broadcast %cst_50 : f32 to vector<2x16xf32>
    %141 = arith.addf %140, %139 : vector<2x16xf32>
    %142 = arith.divf %140, %141 : vector<2x16xf32>
    %143 = vector.extract_strided_slice %123 {offsets = [0, 32], sizes = [2, 16], strides = [1, 1]} : vector<2x48xf32> to vector<2x16xf32>
    %144 = arith.mulf %134, %124 : vector<2x16xf32>
    %145 = vector.extract_strided_slice %4 {offsets = [0, 32], sizes = [16, 16], strides = [1, 1]} : vector<16x48xf32> to vector<16x16xf32>
    %cst_51 = arith.constant dense<0.000000e+00> : vector<2x16xf32>
    %146 = tpu.matmul %144, %145, %cst_51 {dimension_numbers = #tpu.dot_dimension_numbers<[1], [0], [0], [1], [0, 0, 1, 1], [], []>} : vector<2x16xf32>, vector<16x16xf32>, vector<2x16xf32> -> vector<2x16xf32>
    %147 = arith.addf %143, %146 : vector<2x16xf32>
    %148 = math.tanh %147 : vector<2x16xf32>
    %149 = arith.mulf %142, %124 : vector<2x16xf32>
    %cst_52 = arith.constant 1.000000e+00 : f32
    %150 = vector.broadcast %cst_52 : f32 to vector<2x16xf32>
    %151 = arith.subf %150, %142 : vector<2x16xf32>
    %152 = arith.mulf %151, %148 : vector<2x16xf32>
    %153 = arith.addf %149, %152 : vector<2x16xf32>
    %c0_53 = arith.constant 0 : index
    %c0_54 = arith.constant 0 : index
    %154 = vector.load %arg10[%c0_53, %c0_54] : memref<2x16xf32, #tpu.memory_space<vmem>>, vector<2x16xf32>
    tpu.vector_store %arg10[%c0_53, %c0_54], %153 {strides = array<i32>} : memref<2x16xf32, #tpu.memory_space<vmem>>, vector<2x16xf32>,
    %155 = arith.index_cast %120 : i32 to index
    %c0_55 = arith.constant 0 : index
    %c0_56 = arith.constant 0 : index
    %156 = vector.load %arg7[%155, %c0_55, %c0_56] : memref<8x2x16xf32, #tpu.memory_space<vmem>>, vector<1x2x16xf32>
    %157 = vector.shape_cast %156 : vector<1x2x16xf32> to vector<2x16xf32>
    %158 = vector.shape_cast %153 : vector<2x16xf32> to vector<1x2x16xf32>
    tpu.vector_store %arg7[%155, %c0_55, %c0_56], %158 {strides = array<i32>} : memref<8x2x16xf32, #tpu.memory_space<vmem>>, vector<1x2x16xf32>,
    %c2_i32 = arith.constant 2 : i32
    %159 = arith.index_cast %c2_i32 : i32 to index
    %c0_57 = arith.constant 0 : index
    %c0_58 = arith.constant 0 : index
    %160 = vector.load %arg1[%159, %c0_57, %c0_58] : memref<8x2x48xf32, #tpu.memory_space<vmem>>, vector<1x2x48xf32>
    %161 = vector.shape_cast %160 : vector<1x2x48xf32> to vector<2x48xf32>
    %c0_59 = arith.constant 0 : index
    %c0_60 = arith.constant 0 : index
    %162 = vector.load %arg9[%c0_59, %c0_60] : memref<2x16xf32, #tpu.memory_space<vmem>>, vector<2x16xf32>
    %163 = vector.extract_strided_slice %3 {offsets = [0, 0], sizes = [16, 32], strides = [1, 1]} : vector<16x48xf32> to vector<16x32xf32>
    %cst_61 = arith.constant dense<0.000000e+00> : vector<2x32xf32>
    %164 = tpu.matmul %162, %163, %cst_61 {dimension_numbers = #tpu.dot_dimension_numbers<[1], [0], [0], [1], [0, 0, 1, 1], [], []>} : vector<2x16xf32>, vector<16x32xf32>, vector<2x32xf32> -> vector<2x32xf32>
    %165 = vector.extract_strided_slice %161 {offsets = [0, 0], sizes = [2, 16], strides = [1, 1]} : vector<2x48xf32> to vector<2x16xf32>
    %166 = vector.extract_strided_slice %164 {offsets = [0, 0], sizes = [2, 16], strides = [1, 1]} : vector<2x32xf32> to vector<2x16xf32>
    %167 = arith.addf %165, %166 : vector<2x16xf32>
    %168 = arith.negf %167 : vector<2x16xf32>
    %169 = math.exp %168 : vector<2x16xf32>
    %cst_62 = arith.constant 1.000000e+00 : f32
    %170 = vector.broadcast %cst_62 : f32 to vector<2x16xf32>
    %171 = arith.addf %170, %169 : vector<2x16xf32>
    %172 = arith.divf %170, %171 : vector<2x16xf32>
    %173 = vector.extract_strided_slice %161 {offsets = [0, 16], sizes = [2, 16], strides = [1, 1]} : vector<2x48xf32> to vector<2x16xf32>
    %174 = vector.extract_strided_slice %164 {offsets = [0, 16], sizes = [2, 16], strides = [1, 1]} : vector<2x32xf32> to vector<2x16xf32>
    %175 = arith.addf %173, %174 : vector<2x16xf32>
    %176 = arith.negf %175 : vector<2x16xf32>
    %177 = math.exp %176 : vector<2x16xf32>
    %cst_63 = arith.constant 1.000000e+00 : f32
    %178 = vector.broadcast %cst_63 : f32 to vector<2x16xf32>
    %179 = arith.addf %178, %177 : vector<2x16xf32>
    %180 = arith.divf %178, %179 : vector<2x16xf32>
    %181 = vector.extract_strided_slice %161 {offsets = [0, 32], sizes = [2, 16], strides = [1, 1]} : vector<2x48xf32> to vector<2x16xf32>
    %182 = arith.mulf %172, %162 : vector<2x16xf32>
    %183 = vector.extract_strided_slice %3 {offsets = [0, 32], sizes = [16, 16], strides = [1, 1]} : vector<16x48xf32> to vector<16x16xf32>
    %cst_64 = arith.constant dense<0.000000e+00> : vector<2x16xf32>
    %184 = tpu.matmul %182, %183, %cst_64 {dimension_numbers = #tpu.dot_dimension_numbers<[1], [0], [0], [1], [0, 0, 1, 1], [], []>} : vector<2x16xf32>, vector<16x16xf32>, vector<2x16xf32> -> vector<2x16xf32>
    %185 = arith.addf %181, %184 : vector<2x16xf32>
    %186 = math.tanh %185 : vector<2x16xf32>
    %187 = arith.mulf %180, %162 : vector<2x16xf32>
    %cst_65 = arith.constant 1.000000e+00 : f32
    %188 = vector.broadcast %cst_65 : f32 to vector<2x16xf32>
    %189 = arith.subf %188, %180 : vector<2x16xf32>
    %190 = arith.mulf %189, %186 : vector<2x16xf32>
    %191 = arith.addf %187, %190 : vector<2x16xf32>
    %c0_66 = arith.constant 0 : index
    %c0_67 = arith.constant 0 : index
    %192 = vector.load %arg9[%c0_66, %c0_67] : memref<2x16xf32, #tpu.memory_space<vmem>>, vector<2x16xf32>
    tpu.vector_store %arg9[%c0_66, %c0_67], %191 {strides = array<i32>} : memref<2x16xf32, #tpu.memory_space<vmem>>, vector<2x16xf32>,
    %193 = arith.index_cast %c2_i32 : i32 to index
    %c0_68 = arith.constant 0 : index
    %c0_69 = arith.constant 0 : index
    %194 = vector.load %arg6[%193, %c0_68, %c0_69] : memref<8x2x16xf32, #tpu.memory_space<vmem>>, vector<1x2x16xf32>
    %195 = vector.shape_cast %194 : vector<1x2x16xf32> to vector<2x16xf32>
    %196 = vector.shape_cast %191 : vector<2x16xf32> to vector<1x2x16xf32>
    tpu.vector_store %arg6[%193, %c0_68, %c0_69], %196 {strides = array<i32>} : memref<8x2x16xf32, #tpu.memory_space<vmem>>, vector<1x2x16xf32>,
    %c7_i32_70 = arith.constant 7 : i32
    %197 = arith.subi %c7_i32_70, %c2_i32 : i32
    %198 = arith.index_cast %197 : i32 to index
    %c0_71 = arith.constant 0 : index
    %c0_72 = arith.constant 0 : index
    %199 = vector.load %arg2[%198, %c0_71, %c0_72] : memref<8x2x48xf32, #tpu.memory_space<vmem>>, vector<1x2x48xf32>
    %200 = vector.shape_cast %199 : vector<1x2x48xf32> to vector<2x48xf32>
    %c0_73 = arith.constant 0 : index
    %c0_74 = arith.constant 0 : index
    %201 = vector.load %arg10[%c0_73, %c0_74] : memref<2x16xf32, #tpu.memory_space<vmem>>, vector<2x16xf32>
    %202 = vector.extract_strided_slice %4 {offsets = [0, 0], sizes = [16, 32], strides = [1, 1]} : vector<16x48xf32> to vector<16x32xf32>
    %cst_75 = arith.constant dense<0.000000e+00> : vector<2x32xf32>
    %203 = tpu.matmul %201, %202, %cst_75 {dimension_numbers = #tpu.dot_dimension_numbers<[1], [0], [0], [1], [0, 0, 1, 1], [], []>} : vector<2x16xf32>, vector<16x32xf32>, vector<2x32xf32> -> vector<2x32xf32>
    %204 = vector.extract_strided_slice %200 {offsets = [0, 0], sizes = [2, 16], strides = [1, 1]} : vector<2x48xf32> to vector<2x16xf32>
    %205 = vector.extract_strided_slice %203 {offsets = [0, 0], sizes = [2, 16], strides = [1, 1]} : vector<2x32xf32> to vector<2x16xf32>
    %206 = arith.addf %204, %205 : vector<2x16xf32>
    %207 = arith.negf %206 : vector<2x16xf32>
    %208 = math.exp %207 : vector<2x16xf32>
    %cst_76 = arith.constant 1.000000e+00 : f32
    %209 = vector.broadcast %cst_76 : f32 to vector<2x16xf32>
    %210 = arith.addf %209, %208 : vector<2x16xf32>
    %211 = arith.divf %209, %210 : vector<2x16xf32>
    %212 = vector.extract_strided_slice %200 {offsets = [0, 16], sizes = [2, 16], strides = [1, 1]} : vector<2x48xf32> to vector<2x16xf32>
    %213 = vector.extract_strided_slice %203 {offsets = [0, 16], sizes = [2, 16], strides = [1, 1]} : vector<2x32xf32> to vector<2x16xf32>
    %214 = arith.addf %212, %213 : vector<2x16xf32>
    %215 = arith.negf %214 : vector<2x16xf32>
    %216 = math.exp %215 : vector<2x16xf32>
    %cst_77 = arith.constant 1.000000e+00 : f32
    %217 = vector.broadcast %cst_77 : f32 to vector<2x16xf32>
    %218 = arith.addf %217, %216 : vector<2x16xf32>
    %219 = arith.divf %217, %218 : vector<2x16xf32>
    %220 = vector.extract_strided_slice %200 {offsets = [0, 32], sizes = [2, 16], strides = [1, 1]} : vector<2x48xf32> to vector<2x16xf32>
    %221 = arith.mulf %211, %201 : vector<2x16xf32>
    %222 = vector.extract_strided_slice %4 {offsets = [0, 32], sizes = [16, 16], strides = [1, 1]} : vector<16x48xf32> to vector<16x16xf32>
    %cst_78 = arith.constant dense<0.000000e+00> : vector<2x16xf32>
    %223 = tpu.matmul %221, %222, %cst_78 {dimension_numbers = #tpu.dot_dimension_numbers<[1], [0], [0], [1], [0, 0, 1, 1], [], []>} : vector<2x16xf32>, vector<16x16xf32>, vector<2x16xf32> -> vector<2x16xf32>
    %224 = arith.addf %220, %223 : vector<2x16xf32>
    %225 = math.tanh %224 : vector<2x16xf32>
    %226 = arith.mulf %219, %201 : vector<2x16xf32>
    %cst_79 = arith.constant 1.000000e+00 : f32
    %227 = vector.broadcast %cst_79 : f32 to vector<2x16xf32>
    %228 = arith.subf %227, %219 : vector<2x16xf32>
    %229 = arith.mulf %228, %225 : vector<2x16xf32>
    %230 = arith.addf %226, %229 : vector<2x16xf32>
    %c0_80 = arith.constant 0 : index
    %c0_81 = arith.constant 0 : index
    %231 = vector.load %arg10[%c0_80, %c0_81] : memref<2x16xf32, #tpu.memory_space<vmem>>, vector<2x16xf32>
    tpu.vector_store %arg10[%c0_80, %c0_81], %230 {strides = array<i32>} : memref<2x16xf32, #tpu.memory_space<vmem>>, vector<2x16xf32>,
    %232 = arith.index_cast %197 : i32 to index
    %c0_82 = arith.constant 0 : index
    %c0_83 = arith.constant 0 : index
    %233 = vector.load %arg7[%232, %c0_82, %c0_83] : memref<8x2x16xf32, #tpu.memory_space<vmem>>, vector<1x2x16xf32>
    %234 = vector.shape_cast %233 : vector<1x2x16xf32> to vector<2x16xf32>
    %235 = vector.shape_cast %230 : vector<2x16xf32> to vector<1x2x16xf32>
    tpu.vector_store %arg7[%232, %c0_82, %c0_83], %235 {strides = array<i32>} : memref<8x2x16xf32, #tpu.memory_space<vmem>>, vector<1x2x16xf32>,
    %c3_i32 = arith.constant 3 : i32
    %236 = arith.index_cast %c3_i32 : i32 to index
    %c0_84 = arith.constant 0 : index
    %c0_85 = arith.constant 0 : index
    %237 = vector.load %arg1[%236, %c0_84, %c0_85] : memref<8x2x48xf32, #tpu.memory_space<vmem>>, vector<1x2x48xf32>
    %238 = vector.shape_cast %237 : vector<1x2x48xf32> to vector<2x48xf32>
    %c0_86 = arith.constant 0 : index
    %c0_87 = arith.constant 0 : index
    %239 = vector.load %arg9[%c0_86, %c0_87] : memref<2x16xf32, #tpu.memory_space<vmem>>, vector<2x16xf32>
    %240 = vector.extract_strided_slice %3 {offsets = [0, 0], sizes = [16, 32], strides = [1, 1]} : vector<16x48xf32> to vector<16x32xf32>
    %cst_88 = arith.constant dense<0.000000e+00> : vector<2x32xf32>
    %241 = tpu.matmul %239, %240, %cst_88 {dimension_numbers = #tpu.dot_dimension_numbers<[1], [0], [0], [1], [0, 0, 1, 1], [], []>} : vector<2x16xf32>, vector<16x32xf32>, vector<2x32xf32> -> vector<2x32xf32>
    %242 = vector.extract_strided_slice %238 {offsets = [0, 0], sizes = [2, 16], strides = [1, 1]} : vector<2x48xf32> to vector<2x16xf32>
    %243 = vector.extract_strided_slice %241 {offsets = [0, 0], sizes = [2, 16], strides = [1, 1]} : vector<2x32xf32> to vector<2x16xf32>
    %244 = arith.addf %242, %243 : vector<2x16xf32>
    %245 = arith.negf %244 : vector<2x16xf32>
    %246 = math.exp %245 : vector<2x16xf32>
    %cst_89 = arith.constant 1.000000e+00 : f32
    %247 = vector.broadcast %cst_89 : f32 to vector<2x16xf32>
    %248 = arith.addf %247, %246 : vector<2x16xf32>
    %249 = arith.divf %247, %248 : vector<2x16xf32>
    %250 = vector.extract_strided_slice %238 {offsets = [0, 16], sizes = [2, 16], strides = [1, 1]} : vector<2x48xf32> to vector<2x16xf32>
    %251 = vector.extract_strided_slice %241 {offsets = [0, 16], sizes = [2, 16], strides = [1, 1]} : vector<2x32xf32> to vector<2x16xf32>
    %252 = arith.addf %250, %251 : vector<2x16xf32>
    %253 = arith.negf %252 : vector<2x16xf32>
    %254 = math.exp %253 : vector<2x16xf32>
    %cst_90 = arith.constant 1.000000e+00 : f32
    %255 = vector.broadcast %cst_90 : f32 to vector<2x16xf32>
    %256 = arith.addf %255, %254 : vector<2x16xf32>
    %257 = arith.divf %255, %256 : vector<2x16xf32>
    %258 = vector.extract_strided_slice %238 {offsets = [0, 32], sizes = [2, 16], strides = [1, 1]} : vector<2x48xf32> to vector<2x16xf32>
    %259 = arith.mulf %249, %239 : vector<2x16xf32>
    %260 = vector.extract_strided_slice %3 {offsets = [0, 32], sizes = [16, 16], strides = [1, 1]} : vector<16x48xf32> to vector<16x16xf32>
    %cst_91 = arith.constant dense<0.000000e+00> : vector<2x16xf32>
    %261 = tpu.matmul %259, %260, %cst_91 {dimension_numbers = #tpu.dot_dimension_numbers<[1], [0], [0], [1], [0, 0, 1, 1], [], []>} : vector<2x16xf32>, vector<16x16xf32>, vector<2x16xf32> -> vector<2x16xf32>
    %262 = arith.addf %258, %261 : vector<2x16xf32>
    %263 = math.tanh %262 : vector<2x16xf32>
    %264 = arith.mulf %257, %239 : vector<2x16xf32>
    %cst_92 = arith.constant 1.000000e+00 : f32
    %265 = vector.broadcast %cst_92 : f32 to vector<2x16xf32>
    %266 = arith.subf %265, %257 : vector<2x16xf32>
    %267 = arith.mulf %266, %263 : vector<2x16xf32>
    %268 = arith.addf %264, %267 : vector<2x16xf32>
    %c0_93 = arith.constant 0 : index
    %c0_94 = arith.constant 0 : index
    %269 = vector.load %arg9[%c0_93, %c0_94] : memref<2x16xf32, #tpu.memory_space<vmem>>, vector<2x16xf32>
    tpu.vector_store %arg9[%c0_93, %c0_94], %268 {strides = array<i32>} : memref<2x16xf32, #tpu.memory_space<vmem>>, vector<2x16xf32>,
    %270 = arith.index_cast %c3_i32 : i32 to index
    %c0_95 = arith.constant 0 : index
    %c0_96 = arith.constant 0 : index
    %271 = vector.load %arg6[%270, %c0_95, %c0_96] : memref<8x2x16xf32, #tpu.memory_space<vmem>>, vector<1x2x16xf32>
    %272 = vector.shape_cast %271 : vector<1x2x16xf32> to vector<2x16xf32>
    %273 = vector.shape_cast %268 : vector<2x16xf32> to vector<1x2x16xf32>
    tpu.vector_store %arg6[%270, %c0_95, %c0_96], %273 {strides = array<i32>} : memref<8x2x16xf32, #tpu.memory_space<vmem>>, vector<1x2x16xf32>,
    %c7_i32_97 = arith.constant 7 : i32
    %274 = arith.subi %c7_i32_97, %c3_i32 : i32
    %275 = arith.index_cast %274 : i32 to index
    %c0_98 = arith.constant 0 : index
    %c0_99 = arith.constant 0 : index
    %276 = vector.load %arg2[%275, %c0_98, %c0_99] : memref<8x2x48xf32, #tpu.memory_space<vmem>>, vector<1x2x48xf32>
    %277 = vector.shape_cast %276 : vector<1x2x48xf32> to vector<2x48xf32>
    %c0_100 = arith.constant 0 : index
    %c0_101 = arith.constant 0 : index
    %278 = vector.load %arg10[%c0_100, %c0_101] : memref<2x16xf32, #tpu.memory_space<vmem>>, vector<2x16xf32>
    %279 = vector.extract_strided_slice %4 {offsets = [0, 0], sizes = [16, 32], strides = [1, 1]} : vector<16x48xf32> to vector<16x32xf32>
    %cst_102 = arith.constant dense<0.000000e+00> : vector<2x32xf32>
    %280 = tpu.matmul %278, %279, %cst_102 {dimension_numbers = #tpu.dot_dimension_numbers<[1], [0], [0], [1], [0, 0, 1, 1], [], []>} : vector<2x16xf32>, vector<16x32xf32>, vector<2x32xf32> -> vector<2x32xf32>
    %281 = vector.extract_strided_slice %277 {offsets = [0, 0], sizes = [2, 16], strides = [1, 1]} : vector<2x48xf32> to vector<2x16xf32>
    %282 = vector.extract_strided_slice %280 {offsets = [0, 0], sizes = [2, 16], strides = [1, 1]} : vector<2x32xf32> to vector<2x16xf32>
    %283 = arith.addf %281, %282 : vector<2x16xf32>
    %284 = arith.negf %283 : vector<2x16xf32>
    %285 = math.exp %284 : vector<2x16xf32>
    %cst_103 = arith.constant 1.000000e+00 : f32
    %286 = vector.broadcast %cst_103 : f32 to vector<2x16xf32>
    %287 = arith.addf %286, %285 : vector<2x16xf32>
    %288 = arith.divf %286, %287 : vector<2x16xf32>
    %289 = vector.extract_strided_slice %277 {offsets = [0, 16], sizes = [2, 16], strides = [1, 1]} : vector<2x48xf32> to vector<2x16xf32>
    %290 = vector.extract_strided_slice %280 {offsets = [0, 16], sizes = [2, 16], strides = [1, 1]} : vector<2x32xf32> to vector<2x16xf32>
    %291 = arith.addf %289, %290 : vector<2x16xf32>
    %292 = arith.negf %291 : vector<2x16xf32>
    %293 = math.exp %292 : vector<2x16xf32>
    %cst_104 = arith.constant 1.000000e+00 : f32
    %294 = vector.broadcast %cst_104 : f32 to vector<2x16xf32>
    %295 = arith.addf %294, %293 : vector<2x16xf32>
    %296 = arith.divf %294, %295 : vector<2x16xf32>
    %297 = vector.extract_strided_slice %277 {offsets = [0, 32], sizes = [2, 16], strides = [1, 1]} : vector<2x48xf32> to vector<2x16xf32>
    %298 = arith.mulf %288, %278 : vector<2x16xf32>
    %299 = vector.extract_strided_slice %4 {offsets = [0, 32], sizes = [16, 16], strides = [1, 1]} : vector<16x48xf32> to vector<16x16xf32>
    %cst_105 = arith.constant dense<0.000000e+00> : vector<2x16xf32>
    %300 = tpu.matmul %298, %299, %cst_105 {dimension_numbers = #tpu.dot_dimension_numbers<[1], [0], [0], [1], [0, 0, 1, 1], [], []>} : vector<2x16xf32>, vector<16x16xf32>, vector<2x16xf32> -> vector<2x16xf32>
    %301 = arith.addf %297, %300 : vector<2x16xf32>
    %302 = math.tanh %301 : vector<2x16xf32>
    %303 = arith.mulf %296, %278 : vector<2x16xf32>
    %cst_106 = arith.constant 1.000000e+00 : f32
    %304 = vector.broadcast %cst_106 : f32 to vector<2x16xf32>
    %305 = arith.subf %304, %296 : vector<2x16xf32>
    %306 = arith.mulf %305, %302 : vector<2x16xf32>
    %307 = arith.addf %303, %306 : vector<2x16xf32>
    %c0_107 = arith.constant 0 : index
    %c0_108 = arith.constant 0 : index
    %308 = vector.load %arg10[%c0_107, %c0_108] : memref<2x16xf32, #tpu.memory_space<vmem>>, vector<2x16xf32>
    tpu.vector_store %arg10[%c0_107, %c0_108], %307 {strides = array<i32>} : memref<2x16xf32, #tpu.memory_space<vmem>>, vector<2x16xf32>,
    %309 = arith.index_cast %274 : i32 to index
    %c0_109 = arith.constant 0 : index
    %c0_110 = arith.constant 0 : index
    %310 = vector.load %arg7[%309, %c0_109, %c0_110] : memref<8x2x16xf32, #tpu.memory_space<vmem>>, vector<1x2x16xf32>
    %311 = vector.shape_cast %310 : vector<1x2x16xf32> to vector<2x16xf32>
    %312 = vector.shape_cast %307 : vector<2x16xf32> to vector<1x2x16xf32>
    tpu.vector_store %arg7[%309, %c0_109, %c0_110], %312 {strides = array<i32>} : memref<8x2x16xf32, #tpu.memory_space<vmem>>, vector<1x2x16xf32>,
    %c4_i32 = arith.constant 4 : i32
    %313 = arith.index_cast %c4_i32 : i32 to index
    %c0_111 = arith.constant 0 : index
    %c0_112 = arith.constant 0 : index
    %314 = vector.load %arg1[%313, %c0_111, %c0_112] : memref<8x2x48xf32, #tpu.memory_space<vmem>>, vector<1x2x48xf32>
    %315 = vector.shape_cast %314 : vector<1x2x48xf32> to vector<2x48xf32>
    %c0_113 = arith.constant 0 : index
    %c0_114 = arith.constant 0 : index
    %316 = vector.load %arg9[%c0_113, %c0_114] : memref<2x16xf32, #tpu.memory_space<vmem>>, vector<2x16xf32>
    %317 = vector.extract_strided_slice %3 {offsets = [0, 0], sizes = [16, 32], strides = [1, 1]} : vector<16x48xf32> to vector<16x32xf32>
    %cst_115 = arith.constant dense<0.000000e+00> : vector<2x32xf32>
    %318 = tpu.matmul %316, %317, %cst_115 {dimension_numbers = #tpu.dot_dimension_numbers<[1], [0], [0], [1], [0, 0, 1, 1], [], []>} : vector<2x16xf32>, vector<16x32xf32>, vector<2x32xf32> -> vector<2x32xf32>
    %319 = vector.extract_strided_slice %315 {offsets = [0, 0], sizes = [2, 16], strides = [1, 1]} : vector<2x48xf32> to vector<2x16xf32>
    %320 = vector.extract_strided_slice %318 {offsets = [0, 0], sizes = [2, 16], strides = [1, 1]} : vector<2x32xf32> to vector<2x16xf32>
    %321 = arith.addf %319, %320 : vector<2x16xf32>
    %322 = arith.negf %321 : vector<2x16xf32>
    %323 = math.exp %322 : vector<2x16xf32>
    %cst_116 = arith.constant 1.000000e+00 : f32
    %324 = vector.broadcast %cst_116 : f32 to vector<2x16xf32>
    %325 = arith.addf %324, %323 : vector<2x16xf32>
    %326 = arith.divf %324, %325 : vector<2x16xf32>
    %327 = vector.extract_strided_slice %315 {offsets = [0, 16], sizes = [2, 16], strides = [1, 1]} : vector<2x48xf32> to vector<2x16xf32>
    %328 = vector.extract_strided_slice %318 {offsets = [0, 16], sizes = [2, 16], strides = [1, 1]} : vector<2x32xf32> to vector<2x16xf32>
    %329 = arith.addf %327, %328 : vector<2x16xf32>
    %330 = arith.negf %329 : vector<2x16xf32>
    %331 = math.exp %330 : vector<2x16xf32>
    %cst_117 = arith.constant 1.000000e+00 : f32
    %332 = vector.broadcast %cst_117 : f32 to vector<2x16xf32>
    %333 = arith.addf %332, %331 : vector<2x16xf32>
    %334 = arith.divf %332, %333 : vector<2x16xf32>
    %335 = vector.extract_strided_slice %315 {offsets = [0, 32], sizes = [2, 16], strides = [1, 1]} : vector<2x48xf32> to vector<2x16xf32>
    %336 = arith.mulf %326, %316 : vector<2x16xf32>
    %337 = vector.extract_strided_slice %3 {offsets = [0, 32], sizes = [16, 16], strides = [1, 1]} : vector<16x48xf32> to vector<16x16xf32>
    %cst_118 = arith.constant dense<0.000000e+00> : vector<2x16xf32>
    %338 = tpu.matmul %336, %337, %cst_118 {dimension_numbers = #tpu.dot_dimension_numbers<[1], [0], [0], [1], [0, 0, 1, 1], [], []>} : vector<2x16xf32>, vector<16x16xf32>, vector<2x16xf32> -> vector<2x16xf32>
    %339 = arith.addf %335, %338 : vector<2x16xf32>
    %340 = math.tanh %339 : vector<2x16xf32>
    %341 = arith.mulf %334, %316 : vector<2x16xf32>
    %cst_119 = arith.constant 1.000000e+00 : f32
    %342 = vector.broadcast %cst_119 : f32 to vector<2x16xf32>
    %343 = arith.subf %342, %334 : vector<2x16xf32>
    %344 = arith.mulf %343, %340 : vector<2x16xf32>
    %345 = arith.addf %341, %344 : vector<2x16xf32>
    %c0_120 = arith.constant 0 : index
    %c0_121 = arith.constant 0 : index
    %346 = vector.load %arg9[%c0_120, %c0_121] : memref<2x16xf32, #tpu.memory_space<vmem>>, vector<2x16xf32>
    tpu.vector_store %arg9[%c0_120, %c0_121], %345 {strides = array<i32>} : memref<2x16xf32, #tpu.memory_space<vmem>>, vector<2x16xf32>,
    %347 = arith.index_cast %c4_i32 : i32 to index
    %c0_122 = arith.constant 0 : index
    %c0_123 = arith.constant 0 : index
    %348 = vector.load %arg6[%347, %c0_122, %c0_123] : memref<8x2x16xf32, #tpu.memory_space<vmem>>, vector<1x2x16xf32>
    %349 = vector.shape_cast %348 : vector<1x2x16xf32> to vector<2x16xf32>
    %350 = vector.shape_cast %345 : vector<2x16xf32> to vector<1x2x16xf32>
    tpu.vector_store %arg6[%347, %c0_122, %c0_123], %350 {strides = array<i32>} : memref<8x2x16xf32, #tpu.memory_space<vmem>>, vector<1x2x16xf32>,
    %c7_i32_124 = arith.constant 7 : i32
    %351 = arith.subi %c7_i32_124, %c4_i32 : i32
    %352 = arith.index_cast %351 : i32 to index
    %c0_125 = arith.constant 0 : index
    %c0_126 = arith.constant 0 : index
    %353 = vector.load %arg2[%352, %c0_125, %c0_126] : memref<8x2x48xf32, #tpu.memory_space<vmem>>, vector<1x2x48xf32>
    %354 = vector.shape_cast %353 : vector<1x2x48xf32> to vector<2x48xf32>
    %c0_127 = arith.constant 0 : index
    %c0_128 = arith.constant 0 : index
    %355 = vector.load %arg10[%c0_127, %c0_128] : memref<2x16xf32, #tpu.memory_space<vmem>>, vector<2x16xf32>
    %356 = vector.extract_strided_slice %4 {offsets = [0, 0], sizes = [16, 32], strides = [1, 1]} : vector<16x48xf32> to vector<16x32xf32>
    %cst_129 = arith.constant dense<0.000000e+00> : vector<2x32xf32>
    %357 = tpu.matmul %355, %356, %cst_129 {dimension_numbers = #tpu.dot_dimension_numbers<[1], [0], [0], [1], [0, 0, 1, 1], [], []>} : vector<2x16xf32>, vector<16x32xf32>, vector<2x32xf32> -> vector<2x32xf32>
    %358 = vector.extract_strided_slice %354 {offsets = [0, 0], sizes = [2, 16], strides = [1, 1]} : vector<2x48xf32> to vector<2x16xf32>
    %359 = vector.extract_strided_slice %357 {offsets = [0, 0], sizes = [2, 16], strides = [1, 1]} : vector<2x32xf32> to vector<2x16xf32>
    %360 = arith.addf %358, %359 : vector<2x16xf32>
    %361 = arith.negf %360 : vector<2x16xf32>
    %362 = math.exp %361 : vector<2x16xf32>
    %cst_130 = arith.constant 1.000000e+00 : f32
    %363 = vector.broadcast %cst_130 : f32 to vector<2x16xf32>
    %364 = arith.addf %363, %362 : vector<2x16xf32>
    %365 = arith.divf %363, %364 : vector<2x16xf32>
    %366 = vector.extract_strided_slice %354 {offsets = [0, 16], sizes = [2, 16], strides = [1, 1]} : vector<2x48xf32> to vector<2x16xf32>
    %367 = vector.extract_strided_slice %357 {offsets = [0, 16], sizes = [2, 16], strides = [1, 1]} : vector<2x32xf32> to vector<2x16xf32>
    %368 = arith.addf %366, %367 : vector<2x16xf32>
    %369 = arith.negf %368 : vector<2x16xf32>
    %370 = math.exp %369 : vector<2x16xf32>
    %cst_131 = arith.constant 1.000000e+00 : f32
    %371 = vector.broadcast %cst_131 : f32 to vector<2x16xf32>
    %372 = arith.addf %371, %370 : vector<2x16xf32>
    %373 = arith.divf %371, %372 : vector<2x16xf32>
    %374 = vector.extract_strided_slice %354 {offsets = [0, 32], sizes = [2, 16], strides = [1, 1]} : vector<2x48xf32> to vector<2x16xf32>
    %375 = arith.mulf %365, %355 : vector<2x16xf32>
    %376 = vector.extract_strided_slice %4 {offsets = [0, 32], sizes = [16, 16], strides = [1, 1]} : vector<16x48xf32> to vector<16x16xf32>
    %cst_132 = arith.constant dense<0.000000e+00> : vector<2x16xf32>
    %377 = tpu.matmul %375, %376, %cst_132 {dimension_numbers = #tpu.dot_dimension_numbers<[1], [0], [0], [1], [0, 0, 1, 1], [], []>} : vector<2x16xf32>, vector<16x16xf32>, vector<2x16xf32> -> vector<2x16xf32>
    %378 = arith.addf %374, %377 : vector<2x16xf32>
    %379 = math.tanh %378 : vector<2x16xf32>
    %380 = arith.mulf %373, %355 : vector<2x16xf32>
    %cst_133 = arith.constant 1.000000e+00 : f32
    %381 = vector.broadcast %cst_133 : f32 to vector<2x16xf32>
    %382 = arith.subf %381, %373 : vector<2x16xf32>
    %383 = arith.mulf %382, %379 : vector<2x16xf32>
    %384 = arith.addf %380, %383 : vector<2x16xf32>
    %c0_134 = arith.constant 0 : index
    %c0_135 = arith.constant 0 : index
    %385 = vector.load %arg10[%c0_134, %c0_135] : memref<2x16xf32, #tpu.memory_space<vmem>>, vector<2x16xf32>
    tpu.vector_store %arg10[%c0_134, %c0_135], %384 {strides = array<i32>} : memref<2x16xf32, #tpu.memory_space<vmem>>, vector<2x16xf32>,
    %386 = arith.index_cast %351 : i32 to index
    %c0_136 = arith.constant 0 : index
    %c0_137 = arith.constant 0 : index
    %387 = vector.load %arg7[%386, %c0_136, %c0_137] : memref<8x2x16xf32, #tpu.memory_space<vmem>>, vector<1x2x16xf32>
    %388 = vector.shape_cast %387 : vector<1x2x16xf32> to vector<2x16xf32>
    %389 = vector.shape_cast %384 : vector<2x16xf32> to vector<1x2x16xf32>
    tpu.vector_store %arg7[%386, %c0_136, %c0_137], %389 {strides = array<i32>} : memref<8x2x16xf32, #tpu.memory_space<vmem>>, vector<1x2x16xf32>,
    %c5_i32 = arith.constant 5 : i32
    %390 = arith.index_cast %c5_i32 : i32 to index
    %c0_138 = arith.constant 0 : index
    %c0_139 = arith.constant 0 : index
    %391 = vector.load %arg1[%390, %c0_138, %c0_139] : memref<8x2x48xf32, #tpu.memory_space<vmem>>, vector<1x2x48xf32>
    %392 = vector.shape_cast %391 : vector<1x2x48xf32> to vector<2x48xf32>
    %c0_140 = arith.constant 0 : index
    %c0_141 = arith.constant 0 : index
    %393 = vector.load %arg9[%c0_140, %c0_141] : memref<2x16xf32, #tpu.memory_space<vmem>>, vector<2x16xf32>
    %394 = vector.extract_strided_slice %3 {offsets = [0, 0], sizes = [16, 32], strides = [1, 1]} : vector<16x48xf32> to vector<16x32xf32>
    %cst_142 = arith.constant dense<0.000000e+00> : vector<2x32xf32>
    %395 = tpu.matmul %393, %394, %cst_142 {dimension_numbers = #tpu.dot_dimension_numbers<[1], [0], [0], [1], [0, 0, 1, 1], [], []>} : vector<2x16xf32>, vector<16x32xf32>, vector<2x32xf32> -> vector<2x32xf32>
    %396 = vector.extract_strided_slice %392 {offsets = [0, 0], sizes = [2, 16], strides = [1, 1]} : vector<2x48xf32> to vector<2x16xf32>
    %397 = vector.extract_strided_slice %395 {offsets = [0, 0], sizes = [2, 16], strides = [1, 1]} : vector<2x32xf32> to vector<2x16xf32>
    %398 = arith.addf %396, %397 : vector<2x16xf32>
    %399 = arith.negf %398 : vector<2x16xf32>
    %400 = math.exp %399 : vector<2x16xf32>
    %cst_143 = arith.constant 1.000000e+00 : f32
    %401 = vector.broadcast %cst_143 : f32 to vector<2x16xf32>
    %402 = arith.addf %401, %400 : vector<2x16xf32>
    %403 = arith.divf %401, %402 : vector<2x16xf32>
    %404 = vector.extract_strided_slice %392 {offsets = [0, 16], sizes = [2, 16], strides = [1, 1]} : vector<2x48xf32> to vector<2x16xf32>
    %405 = vector.extract_strided_slice %395 {offsets = [0, 16], sizes = [2, 16], strides = [1, 1]} : vector<2x32xf32> to vector<2x16xf32>
    %406 = arith.addf %404, %405 : vector<2x16xf32>
    %407 = arith.negf %406 : vector<2x16xf32>
    %408 = math.exp %407 : vector<2x16xf32>
    %cst_144 = arith.constant 1.000000e+00 : f32
    %409 = vector.broadcast %cst_144 : f32 to vector<2x16xf32>
    %410 = arith.addf %409, %408 : vector<2x16xf32>
    %411 = arith.divf %409, %410 : vector<2x16xf32>
    %412 = vector.extract_strided_slice %392 {offsets = [0, 32], sizes = [2, 16], strides = [1, 1]} : vector<2x48xf32> to vector<2x16xf32>
    %413 = arith.mulf %403, %393 : vector<2x16xf32>
    %414 = vector.extract_strided_slice %3 {offsets = [0, 32], sizes = [16, 16], strides = [1, 1]} : vector<16x48xf32> to vector<16x16xf32>
    %cst_145 = arith.constant dense<0.000000e+00> : vector<2x16xf32>
    %415 = tpu.matmul %413, %414, %cst_145 {dimension_numbers = #tpu.dot_dimension_numbers<[1], [0], [0], [1], [0, 0, 1, 1], [], []>} : vector<2x16xf32>, vector<16x16xf32>, vector<2x16xf32> -> vector<2x16xf32>
    %416 = arith.addf %412, %415 : vector<2x16xf32>
    %417 = math.tanh %416 : vector<2x16xf32>
    %418 = arith.mulf %411, %393 : vector<2x16xf32>
    %cst_146 = arith.constant 1.000000e+00 : f32
    %419 = vector.broadcast %cst_146 : f32 to vector<2x16xf32>
    %420 = arith.subf %419, %411 : vector<2x16xf32>
    %421 = arith.mulf %420, %417 : vector<2x16xf32>
    %422 = arith.addf %418, %421 : vector<2x16xf32>
    %c0_147 = arith.constant 0 : index
    %c0_148 = arith.constant 0 : index
    %423 = vector.load %arg9[%c0_147, %c0_148] : memref<2x16xf32, #tpu.memory_space<vmem>>, vector<2x16xf32>
    tpu.vector_store %arg9[%c0_147, %c0_148], %422 {strides = array<i32>} : memref<2x16xf32, #tpu.memory_space<vmem>>, vector<2x16xf32>,
    %424 = arith.index_cast %c5_i32 : i32 to index
    %c0_149 = arith.constant 0 : index
    %c0_150 = arith.constant 0 : index
    %425 = vector.load %arg6[%424, %c0_149, %c0_150] : memref<8x2x16xf32, #tpu.memory_space<vmem>>, vector<1x2x16xf32>
    %426 = vector.shape_cast %425 : vector<1x2x16xf32> to vector<2x16xf32>
    %427 = vector.shape_cast %422 : vector<2x16xf32> to vector<1x2x16xf32>
    tpu.vector_store %arg6[%424, %c0_149, %c0_150], %427 {strides = array<i32>} : memref<8x2x16xf32, #tpu.memory_space<vmem>>, vector<1x2x16xf32>,
    %c7_i32_151 = arith.constant 7 : i32
    %428 = arith.subi %c7_i32_151, %c5_i32 : i32
    %429 = arith.index_cast %428 : i32 to index
    %c0_152 = arith.constant 0 : index
    %c0_153 = arith.constant 0 : index
    %430 = vector.load %arg2[%429, %c0_152, %c0_153] : memref<8x2x48xf32, #tpu.memory_space<vmem>>, vector<1x2x48xf32>
    %431 = vector.shape_cast %430 : vector<1x2x48xf32> to vector<2x48xf32>
    %c0_154 = arith.constant 0 : index
    %c0_155 = arith.constant 0 : index
    %432 = vector.load %arg10[%c0_154, %c0_155] : memref<2x16xf32, #tpu.memory_space<vmem>>, vector<2x16xf32>
    %433 = vector.extract_strided_slice %4 {offsets = [0, 0], sizes = [16, 32], strides = [1, 1]} : vector<16x48xf32> to vector<16x32xf32>
    %cst_156 = arith.constant dense<0.000000e+00> : vector<2x32xf32>
    %434 = tpu.matmul %432, %433, %cst_156 {dimension_numbers = #tpu.dot_dimension_numbers<[1], [0], [0], [1], [0, 0, 1, 1], [], []>} : vector<2x16xf32>, vector<16x32xf32>, vector<2x32xf32> -> vector<2x32xf32>
    %435 = vector.extract_strided_slice %431 {offsets = [0, 0], sizes = [2, 16], strides = [1, 1]} : vector<2x48xf32> to vector<2x16xf32>
    %436 = vector.extract_strided_slice %434 {offsets = [0, 0], sizes = [2, 16], strides = [1, 1]} : vector<2x32xf32> to vector<2x16xf32>
    %437 = arith.addf %435, %436 : vector<2x16xf32>
    %438 = arith.negf %437 : vector<2x16xf32>
    %439 = math.exp %438 : vector<2x16xf32>
    %cst_157 = arith.constant 1.000000e+00 : f32
    %440 = vector.broadcast %cst_157 : f32 to vector<2x16xf32>
    %441 = arith.addf %440, %439 : vector<2x16xf32>
    %442 = arith.divf %440, %441 : vector<2x16xf32>
    %443 = vector.extract_strided_slice %431 {offsets = [0, 16], sizes = [2, 16], strides = [1, 1]} : vector<2x48xf32> to vector<2x16xf32>
    %444 = vector.extract_strided_slice %434 {offsets = [0, 16], sizes = [2, 16], strides = [1, 1]} : vector<2x32xf32> to vector<2x16xf32>
    %445 = arith.addf %443, %444 : vector<2x16xf32>
    %446 = arith.negf %445 : vector<2x16xf32>
    %447 = math.exp %446 : vector<2x16xf32>
    %cst_158 = arith.constant 1.000000e+00 : f32
    %448 = vector.broadcast %cst_158 : f32 to vector<2x16xf32>
    %449 = arith.addf %448, %447 : vector<2x16xf32>
    %450 = arith.divf %448, %449 : vector<2x16xf32>
    %451 = vector.extract_strided_slice %431 {offsets = [0, 32], sizes = [2, 16], strides = [1, 1]} : vector<2x48xf32> to vector<2x16xf32>
    %452 = arith.mulf %442, %432 : vector<2x16xf32>
    %453 = vector.extract_strided_slice %4 {offsets = [0, 32], sizes = [16, 16], strides = [1, 1]} : vector<16x48xf32> to vector<16x16xf32>
    %cst_159 = arith.constant dense<0.000000e+00> : vector<2x16xf32>
    %454 = tpu.matmul %452, %453, %cst_159 {dimension_numbers = #tpu.dot_dimension_numbers<[1], [0], [0], [1], [0, 0, 1, 1], [], []>} : vector<2x16xf32>, vector<16x16xf32>, vector<2x16xf32> -> vector<2x16xf32>
    %455 = arith.addf %451, %454 : vector<2x16xf32>
    %456 = math.tanh %455 : vector<2x16xf32>
    %457 = arith.mulf %450, %432 : vector<2x16xf32>
    %cst_160 = arith.constant 1.000000e+00 : f32
    %458 = vector.broadcast %cst_160 : f32 to vector<2x16xf32>
    %459 = arith.subf %458, %450 : vector<2x16xf32>
    %460 = arith.mulf %459, %456 : vector<2x16xf32>
    %461 = arith.addf %457, %460 : vector<2x16xf32>
    %c0_161 = arith.constant 0 : index
    %c0_162 = arith.constant 0 : index
    %462 = vector.load %arg10[%c0_161, %c0_162] : memref<2x16xf32, #tpu.memory_space<vmem>>, vector<2x16xf32>
    tpu.vector_store %arg10[%c0_161, %c0_162], %461 {strides = array<i32>} : memref<2x16xf32, #tpu.memory_space<vmem>>, vector<2x16xf32>,
    %463 = arith.index_cast %428 : i32 to index
    %c0_163 = arith.constant 0 : index
    %c0_164 = arith.constant 0 : index
    %464 = vector.load %arg7[%463, %c0_163, %c0_164] : memref<8x2x16xf32, #tpu.memory_space<vmem>>, vector<1x2x16xf32>
    %465 = vector.shape_cast %464 : vector<1x2x16xf32> to vector<2x16xf32>
    %466 = vector.shape_cast %461 : vector<2x16xf32> to vector<1x2x16xf32>
    tpu.vector_store %arg7[%463, %c0_163, %c0_164], %466 {strides = array<i32>} : memref<8x2x16xf32, #tpu.memory_space<vmem>>, vector<1x2x16xf32>,
    %c6_i32 = arith.constant 6 : i32
    %467 = arith.index_cast %c6_i32 : i32 to index
    %c0_165 = arith.constant 0 : index
    %c0_166 = arith.constant 0 : index
    %468 = vector.load %arg1[%467, %c0_165, %c0_166] : memref<8x2x48xf32, #tpu.memory_space<vmem>>, vector<1x2x48xf32>
    %469 = vector.shape_cast %468 : vector<1x2x48xf32> to vector<2x48xf32>
    %c0_167 = arith.constant 0 : index
    %c0_168 = arith.constant 0 : index
    %470 = vector.load %arg9[%c0_167, %c0_168] : memref<2x16xf32, #tpu.memory_space<vmem>>, vector<2x16xf32>
    %471 = vector.extract_strided_slice %3 {offsets = [0, 0], sizes = [16, 32], strides = [1, 1]} : vector<16x48xf32> to vector<16x32xf32>
    %cst_169 = arith.constant dense<0.000000e+00> : vector<2x32xf32>
    %472 = tpu.matmul %470, %471, %cst_169 {dimension_numbers = #tpu.dot_dimension_numbers<[1], [0], [0], [1], [0, 0, 1, 1], [], []>} : vector<2x16xf32>, vector<16x32xf32>, vector<2x32xf32> -> vector<2x32xf32>
    %473 = vector.extract_strided_slice %469 {offsets = [0, 0], sizes = [2, 16], strides = [1, 1]} : vector<2x48xf32> to vector<2x16xf32>
    %474 = vector.extract_strided_slice %472 {offsets = [0, 0], sizes = [2, 16], strides = [1, 1]} : vector<2x32xf32> to vector<2x16xf32>
    %475 = arith.addf %473, %474 : vector<2x16xf32>
    %476 = arith.negf %475 : vector<2x16xf32>
    %477 = math.exp %476 : vector<2x16xf32>
    %cst_170 = arith.constant 1.000000e+00 : f32
    %478 = vector.broadcast %cst_170 : f32 to vector<2x16xf32>
    %479 = arith.addf %478, %477 : vector<2x16xf32>
    %480 = arith.divf %478, %479 : vector<2x16xf32>
    %481 = vector.extract_strided_slice %469 {offsets = [0, 16], sizes = [2, 16], strides = [1, 1]} : vector<2x48xf32> to vector<2x16xf32>
    %482 = vector.extract_strided_slice %472 {offsets = [0, 16], sizes = [2, 16], strides = [1, 1]} : vector<2x32xf32> to vector<2x16xf32>
    %483 = arith.addf %481, %482 : vector<2x16xf32>
    %484 = arith.negf %483 : vector<2x16xf32>
    %485 = math.exp %484 : vector<2x16xf32>
    %cst_171 = arith.constant 1.000000e+00 : f32
    %486 = vector.broadcast %cst_171 : f32 to vector<2x16xf32>
    %487 = arith.addf %486, %485 : vector<2x16xf32>
    %488 = arith.divf %486, %487 : vector<2x16xf32>
    %489 = vector.extract_strided_slice %469 {offsets = [0, 32], sizes = [2, 16], strides = [1, 1]} : vector<2x48xf32> to vector<2x16xf32>
    %490 = arith.mulf %480, %470 : vector<2x16xf32>
    %491 = vector.extract_strided_slice %3 {offsets = [0, 32], sizes = [16, 16], strides = [1, 1]} : vector<16x48xf32> to vector<16x16xf32>
    %cst_172 = arith.constant dense<0.000000e+00> : vector<2x16xf32>
    %492 = tpu.matmul %490, %491, %cst_172 {dimension_numbers = #tpu.dot_dimension_numbers<[1], [0], [0], [1], [0, 0, 1, 1], [], []>} : vector<2x16xf32>, vector<16x16xf32>, vector<2x16xf32> -> vector<2x16xf32>
    %493 = arith.addf %489, %492 : vector<2x16xf32>
    %494 = math.tanh %493 : vector<2x16xf32>
    %495 = arith.mulf %488, %470 : vector<2x16xf32>
    %cst_173 = arith.constant 1.000000e+00 : f32
    %496 = vector.broadcast %cst_173 : f32 to vector<2x16xf32>
    %497 = arith.subf %496, %488 : vector<2x16xf32>
    %498 = arith.mulf %497, %494 : vector<2x16xf32>
    %499 = arith.addf %495, %498 : vector<2x16xf32>
    %c0_174 = arith.constant 0 : index
    %c0_175 = arith.constant 0 : index
    %500 = vector.load %arg9[%c0_174, %c0_175] : memref<2x16xf32, #tpu.memory_space<vmem>>, vector<2x16xf32>
    tpu.vector_store %arg9[%c0_174, %c0_175], %499 {strides = array<i32>} : memref<2x16xf32, #tpu.memory_space<vmem>>, vector<2x16xf32>,
    %501 = arith.index_cast %c6_i32 : i32 to index
    %c0_176 = arith.constant 0 : index
    %c0_177 = arith.constant 0 : index
    %502 = vector.load %arg6[%501, %c0_176, %c0_177] : memref<8x2x16xf32, #tpu.memory_space<vmem>>, vector<1x2x16xf32>
    %503 = vector.shape_cast %502 : vector<1x2x16xf32> to vector<2x16xf32>
    %504 = vector.shape_cast %499 : vector<2x16xf32> to vector<1x2x16xf32>
    tpu.vector_store %arg6[%501, %c0_176, %c0_177], %504 {strides = array<i32>} : memref<8x2x16xf32, #tpu.memory_space<vmem>>, vector<1x2x16xf32>,
    %c7_i32_178 = arith.constant 7 : i32
    %505 = arith.subi %c7_i32_178, %c6_i32 : i32
    %506 = arith.index_cast %505 : i32 to index
    %c0_179 = arith.constant 0 : index
    %c0_180 = arith.constant 0 : index
    %507 = vector.load %arg2[%506, %c0_179, %c0_180] : memref<8x2x48xf32, #tpu.memory_space<vmem>>, vector<1x2x48xf32>
    %508 = vector.shape_cast %507 : vector<1x2x48xf32> to vector<2x48xf32>
    %c0_181 = arith.constant 0 : index
    %c0_182 = arith.constant 0 : index
    %509 = vector.load %arg10[%c0_181, %c0_182] : memref<2x16xf32, #tpu.memory_space<vmem>>, vector<2x16xf32>
    %510 = vector.extract_strided_slice %4 {offsets = [0, 0], sizes = [16, 32], strides = [1, 1]} : vector<16x48xf32> to vector<16x32xf32>
    %cst_183 = arith.constant dense<0.000000e+00> : vector<2x32xf32>
    %511 = tpu.matmul %509, %510, %cst_183 {dimension_numbers = #tpu.dot_dimension_numbers<[1], [0], [0], [1], [0, 0, 1, 1], [], []>} : vector<2x16xf32>, vector<16x32xf32>, vector<2x32xf32> -> vector<2x32xf32>
    %512 = vector.extract_strided_slice %508 {offsets = [0, 0], sizes = [2, 16], strides = [1, 1]} : vector<2x48xf32> to vector<2x16xf32>
    %513 = vector.extract_strided_slice %511 {offsets = [0, 0], sizes = [2, 16], strides = [1, 1]} : vector<2x32xf32> to vector<2x16xf32>
    %514 = arith.addf %512, %513 : vector<2x16xf32>
    %515 = arith.negf %514 : vector<2x16xf32>
    %516 = math.exp %515 : vector<2x16xf32>
    %cst_184 = arith.constant 1.000000e+00 : f32
    %517 = vector.broadcast %cst_184 : f32 to vector<2x16xf32>
    %518 = arith.addf %517, %516 : vector<2x16xf32>
    %519 = arith.divf %517, %518 : vector<2x16xf32>
    %520 = vector.extract_strided_slice %508 {offsets = [0, 16], sizes = [2, 16], strides = [1, 1]} : vector<2x48xf32> to vector<2x16xf32>
    %521 = vector.extract_strided_slice %511 {offsets = [0, 16], sizes = [2, 16], strides = [1, 1]} : vector<2x32xf32> to vector<2x16xf32>
    %522 = arith.addf %520, %521 : vector<2x16xf32>
    %523 = arith.negf %522 : vector<2x16xf32>
    %524 = math.exp %523 : vector<2x16xf32>
    %cst_185 = arith.constant 1.000000e+00 : f32
    %525 = vector.broadcast %cst_185 : f32 to vector<2x16xf32>
    %526 = arith.addf %525, %524 : vector<2x16xf32>
    %527 = arith.divf %525, %526 : vector<2x16xf32>
    %528 = vector.extract_strided_slice %508 {offsets = [0, 32], sizes = [2, 16], strides = [1, 1]} : vector<2x48xf32> to vector<2x16xf32>
    %529 = arith.mulf %519, %509 : vector<2x16xf32>
    %530 = vector.extract_strided_slice %4 {offsets = [0, 32], sizes = [16, 16], strides = [1, 1]} : vector<16x48xf32> to vector<16x16xf32>
    %cst_186 = arith.constant dense<0.000000e+00> : vector<2x16xf32>
    %531 = tpu.matmul %529, %530, %cst_186 {dimension_numbers = #tpu.dot_dimension_numbers<[1], [0], [0], [1], [0, 0, 1, 1], [], []>} : vector<2x16xf32>, vector<16x16xf32>, vector<2x16xf32> -> vector<2x16xf32>
    %532 = arith.addf %528, %531 : vector<2x16xf32>
    %533 = math.tanh %532 : vector<2x16xf32>
    %534 = arith.mulf %527, %509 : vector<2x16xf32>
    %cst_187 = arith.constant 1.000000e+00 : f32
    %535 = vector.broadcast %cst_187 : f32 to vector<2x16xf32>
    %536 = arith.subf %535, %527 : vector<2x16xf32>
    %537 = arith.mulf %536, %533 : vector<2x16xf32>
    %538 = arith.addf %534, %537 : vector<2x16xf32>
    %c0_188 = arith.constant 0 : index
    %c0_189 = arith.constant 0 : index
    %539 = vector.load %arg10[%c0_188, %c0_189] : memref<2x16xf32, #tpu.memory_space<vmem>>, vector<2x16xf32>
    tpu.vector_store %arg10[%c0_188, %c0_189], %538 {strides = array<i32>} : memref<2x16xf32, #tpu.memory_space<vmem>>, vector<2x16xf32>,
    %540 = arith.index_cast %505 : i32 to index
    %c0_190 = arith.constant 0 : index
    %c0_191 = arith.constant 0 : index
    %541 = vector.load %arg7[%540, %c0_190, %c0_191] : memref<8x2x16xf32, #tpu.memory_space<vmem>>, vector<1x2x16xf32>
    %542 = vector.shape_cast %541 : vector<1x2x16xf32> to vector<2x16xf32>
    %543 = vector.shape_cast %538 : vector<2x16xf32> to vector<1x2x16xf32>
    tpu.vector_store %arg7[%540, %c0_190, %c0_191], %543 {strides = array<i32>} : memref<8x2x16xf32, #tpu.memory_space<vmem>>, vector<1x2x16xf32>,
    %c7_i32_192 = arith.constant 7 : i32
    %544 = arith.index_cast %c7_i32_192 : i32 to index
    %c0_193 = arith.constant 0 : index
    %c0_194 = arith.constant 0 : index
    %545 = vector.load %arg1[%544, %c0_193, %c0_194] : memref<8x2x48xf32, #tpu.memory_space<vmem>>, vector<1x2x48xf32>
    %546 = vector.shape_cast %545 : vector<1x2x48xf32> to vector<2x48xf32>
    %c0_195 = arith.constant 0 : index
    %c0_196 = arith.constant 0 : index
    %547 = vector.load %arg9[%c0_195, %c0_196] : memref<2x16xf32, #tpu.memory_space<vmem>>, vector<2x16xf32>
    %548 = vector.extract_strided_slice %3 {offsets = [0, 0], sizes = [16, 32], strides = [1, 1]} : vector<16x48xf32> to vector<16x32xf32>
    %cst_197 = arith.constant dense<0.000000e+00> : vector<2x32xf32>
    %549 = tpu.matmul %547, %548, %cst_197 {dimension_numbers = #tpu.dot_dimension_numbers<[1], [0], [0], [1], [0, 0, 1, 1], [], []>} : vector<2x16xf32>, vector<16x32xf32>, vector<2x32xf32> -> vector<2x32xf32>
    %550 = vector.extract_strided_slice %546 {offsets = [0, 0], sizes = [2, 16], strides = [1, 1]} : vector<2x48xf32> to vector<2x16xf32>
    %551 = vector.extract_strided_slice %549 {offsets = [0, 0], sizes = [2, 16], strides = [1, 1]} : vector<2x32xf32> to vector<2x16xf32>
    %552 = arith.addf %550, %551 : vector<2x16xf32>
    %553 = arith.negf %552 : vector<2x16xf32>
    %554 = math.exp %553 : vector<2x16xf32>
    %cst_198 = arith.constant 1.000000e+00 : f32
    %555 = vector.broadcast %cst_198 : f32 to vector<2x16xf32>
    %556 = arith.addf %555, %554 : vector<2x16xf32>
    %557 = arith.divf %555, %556 : vector<2x16xf32>
    %558 = vector.extract_strided_slice %546 {offsets = [0, 16], sizes = [2, 16], strides = [1, 1]} : vector<2x48xf32> to vector<2x16xf32>
    %559 = vector.extract_strided_slice %549 {offsets = [0, 16], sizes = [2, 16], strides = [1, 1]} : vector<2x32xf32> to vector<2x16xf32>
    %560 = arith.addf %558, %559 : vector<2x16xf32>
    %561 = arith.negf %560 : vector<2x16xf32>
    %562 = math.exp %561 : vector<2x16xf32>
    %cst_199 = arith.constant 1.000000e+00 : f32
    %563 = vector.broadcast %cst_199 : f32 to vector<2x16xf32>
    %564 = arith.addf %563, %562 : vector<2x16xf32>
    %565 = arith.divf %563, %564 : vector<2x16xf32>
    %566 = vector.extract_strided_slice %546 {offsets = [0, 32], sizes = [2, 16], strides = [1, 1]} : vector<2x48xf32> to vector<2x16xf32>
    %567 = arith.mulf %557, %547 : vector<2x16xf32>
    %568 = vector.extract_strided_slice %3 {offsets = [0, 32], sizes = [16, 16], strides = [1, 1]} : vector<16x48xf32> to vector<16x16xf32>
    %cst_200 = arith.constant dense<0.000000e+00> : vector<2x16xf32>
    %569 = tpu.matmul %567, %568, %cst_200 {dimension_numbers = #tpu.dot_dimension_numbers<[1], [0], [0], [1], [0, 0, 1, 1], [], []>} : vector<2x16xf32>, vector<16x16xf32>, vector<2x16xf32> -> vector<2x16xf32>
    %570 = arith.addf %566, %569 : vector<2x16xf32>
    %571 = math.tanh %570 : vector<2x16xf32>
    %572 = arith.mulf %565, %547 : vector<2x16xf32>
    %cst_201 = arith.constant 1.000000e+00 : f32
    %573 = vector.broadcast %cst_201 : f32 to vector<2x16xf32>
    %574 = arith.subf %573, %565 : vector<2x16xf32>
    %575 = arith.mulf %574, %571 : vector<2x16xf32>
    %576 = arith.addf %572, %575 : vector<2x16xf32>
    %c0_202 = arith.constant 0 : index
    %c0_203 = arith.constant 0 : index
    %577 = vector.load %arg9[%c0_202, %c0_203] : memref<2x16xf32, #tpu.memory_space<vmem>>, vector<2x16xf32>
    tpu.vector_store %arg9[%c0_202, %c0_203], %576 {strides = array<i32>} : memref<2x16xf32, #tpu.memory_space<vmem>>, vector<2x16xf32>,
    %578 = arith.index_cast %c7_i32_192 : i32 to index
    %c0_204 = arith.constant 0 : index
    %c0_205 = arith.constant 0 : index
    %579 = vector.load %arg6[%578, %c0_204, %c0_205] : memref<8x2x16xf32, #tpu.memory_space<vmem>>, vector<1x2x16xf32>
    %580 = vector.shape_cast %579 : vector<1x2x16xf32> to vector<2x16xf32>
    %581 = vector.shape_cast %576 : vector<2x16xf32> to vector<1x2x16xf32>
    tpu.vector_store %arg6[%578, %c0_204, %c0_205], %581 {strides = array<i32>} : memref<8x2x16xf32, #tpu.memory_space<vmem>>, vector<1x2x16xf32>,
    %c7_i32_206 = arith.constant 7 : i32
    %582 = arith.subi %c7_i32_206, %c7_i32_192 : i32
    %583 = arith.index_cast %582 : i32 to index
    %c0_207 = arith.constant 0 : index
    %c0_208 = arith.constant 0 : index
    %584 = vector.load %arg2[%583, %c0_207, %c0_208] : memref<8x2x48xf32, #tpu.memory_space<vmem>>, vector<1x2x48xf32>
    %585 = vector.shape_cast %584 : vector<1x2x48xf32> to vector<2x48xf32>
    %c0_209 = arith.constant 0 : index
    %c0_210 = arith.constant 0 : index
    %586 = vector.load %arg10[%c0_209, %c0_210] : memref<2x16xf32, #tpu.memory_space<vmem>>, vector<2x16xf32>
    %587 = vector.extract_strided_slice %4 {offsets = [0, 0], sizes = [16, 32], strides = [1, 1]} : vector<16x48xf32> to vector<16x32xf32>
    %cst_211 = arith.constant dense<0.000000e+00> : vector<2x32xf32>
    %588 = tpu.matmul %586, %587, %cst_211 {dimension_numbers = #tpu.dot_dimension_numbers<[1], [0], [0], [1], [0, 0, 1, 1], [], []>} : vector<2x16xf32>, vector<16x32xf32>, vector<2x32xf32> -> vector<2x32xf32>
    %589 = vector.extract_strided_slice %585 {offsets = [0, 0], sizes = [2, 16], strides = [1, 1]} : vector<2x48xf32> to vector<2x16xf32>
    %590 = vector.extract_strided_slice %588 {offsets = [0, 0], sizes = [2, 16], strides = [1, 1]} : vector<2x32xf32> to vector<2x16xf32>
    %591 = arith.addf %589, %590 : vector<2x16xf32>
    %592 = arith.negf %591 : vector<2x16xf32>
    %593 = math.exp %592 : vector<2x16xf32>
    %cst_212 = arith.constant 1.000000e+00 : f32
    %594 = vector.broadcast %cst_212 : f32 to vector<2x16xf32>
    %595 = arith.addf %594, %593 : vector<2x16xf32>
    %596 = arith.divf %594, %595 : vector<2x16xf32>
    %597 = vector.extract_strided_slice %585 {offsets = [0, 16], sizes = [2, 16], strides = [1, 1]} : vector<2x48xf32> to vector<2x16xf32>
    %598 = vector.extract_strided_slice %588 {offsets = [0, 16], sizes = [2, 16], strides = [1, 1]} : vector<2x32xf32> to vector<2x16xf32>
    %599 = arith.addf %597, %598 : vector<2x16xf32>
    %600 = arith.negf %599 : vector<2x16xf32>
    %601 = math.exp %600 : vector<2x16xf32>
    %cst_213 = arith.constant 1.000000e+00 : f32
    %602 = vector.broadcast %cst_213 : f32 to vector<2x16xf32>
    %603 = arith.addf %602, %601 : vector<2x16xf32>
    %604 = arith.divf %602, %603 : vector<2x16xf32>
    %605 = vector.extract_strided_slice %585 {offsets = [0, 32], sizes = [2, 16], strides = [1, 1]} : vector<2x48xf32> to vector<2x16xf32>
    %606 = arith.mulf %596, %586 : vector<2x16xf32>
    %607 = vector.extract_strided_slice %4 {offsets = [0, 32], sizes = [16, 16], strides = [1, 1]} : vector<16x48xf32> to vector<16x16xf32>
    %cst_214 = arith.constant dense<0.000000e+00> : vector<2x16xf32>
    %608 = tpu.matmul %606, %607, %cst_214 {dimension_numbers = #tpu.dot_dimension_numbers<[1], [0], [0], [1], [0, 0, 1, 1], [], []>} : vector<2x16xf32>, vector<16x16xf32>, vector<2x16xf32> -> vector<2x16xf32>
    %609 = arith.addf %605, %608 : vector<2x16xf32>
    %610 = math.tanh %609 : vector<2x16xf32>
    %611 = arith.mulf %604, %586 : vector<2x16xf32>
    %cst_215 = arith.constant 1.000000e+00 : f32
    %612 = vector.broadcast %cst_215 : f32 to vector<2x16xf32>
    %613 = arith.subf %612, %604 : vector<2x16xf32>
    %614 = arith.mulf %613, %610 : vector<2x16xf32>
    %615 = arith.addf %611, %614 : vector<2x16xf32>
    %c0_216 = arith.constant 0 : index
    %c0_217 = arith.constant 0 : index
    %616 = vector.load %arg10[%c0_216, %c0_217] : memref<2x16xf32, #tpu.memory_space<vmem>>, vector<2x16xf32>
    tpu.vector_store %arg10[%c0_216, %c0_217], %615 {strides = array<i32>} : memref<2x16xf32, #tpu.memory_space<vmem>>, vector<2x16xf32>,
    %617 = arith.index_cast %582 : i32 to index
    %c0_218 = arith.constant 0 : index
    %c0_219 = arith.constant 0 : index
    %618 = vector.load %arg7[%617, %c0_218, %c0_219] : memref<8x2x16xf32, #tpu.memory_space<vmem>>, vector<1x2x16xf32>
    %619 = vector.shape_cast %618 : vector<1x2x16xf32> to vector<2x16xf32>
    %620 = vector.shape_cast %615 : vector<2x16xf32> to vector<1x2x16xf32>
    tpu.vector_store %arg7[%617, %c0_218, %c0_219], %620 {strides = array<i32>} : memref<8x2x16xf32, #tpu.memory_space<vmem>>, vector<1x2x16xf32>,
    %c8_i32 = arith.constant 8 : i32
    %c0_i32_220 = arith.constant 0 : i32
    %621 = arith.cmpi eq, %arg0, %c0_i32_220 : i32
    %622 = arith.extui %621 : i1 to i32
    %c0_i32_221 = arith.constant 0 : i32
    %623 = arith.cmpi ne, %622, %c0_i32_221 : i32
    scf.if %623 {
      %c0_222 = arith.constant 0 : index
      %c0_223 = arith.constant 0 : index
      %624 = vector.load %arg9[%c0_222, %c0_223] : memref<2x16xf32, #tpu.memory_space<vmem>>, vector<2x16xf32>
      %c0_224 = arith.constant 0 : index
      %c0_225 = arith.constant 0 : index
      %625 = vector.load %arg10[%c0_224, %c0_225] : memref<2x16xf32, #tpu.memory_space<vmem>>, vector<2x16xf32>
      %626 = tpu.concatenate %624, %625 in 1 : vector<2x16xf32>, vector<2x16xf32> -> vector<2x32xf32>
      %c0_226 = arith.constant 0 : index
      %c0_227 = arith.constant 0 : index
      %627 = vector.load %arg8[%c0_226, %c0_227] : memref<2x32xf32, #tpu.memory_space<vmem>>, vector<2x32xf32>
      tpu.vector_store %arg8[%c0_226, %c0_227], %626 {strides = array<i32>} : memref<2x32xf32, #tpu.memory_space<vmem>>, vector<2x32xf32>,
    } else {
    }
    return
  }
  func.func @transform_0(%arg0: i32) -> (i32, i32, i32) {
    %c0_i32 = arith.constant 0 : i32
    %c0_i32_0 = arith.constant 0 : i32
    %c0_i32_1 = arith.constant 0 : i32
    return %arg0, %c0_i32, %c0_i32_0 : i32, i32, i32
  }
  func.func @transform_1(%arg0: i32) -> (i32, i32, i32) {
    %c0_i32 = arith.constant 0 : i32
    %0 = arith.subi %c0_i32, %arg0 : i32
    %c0_i32_0 = arith.constant 0 : i32
    %c0_i32_1 = arith.constant 0 : i32
    %c0_i32_2 = arith.constant 0 : i32
    return %0, %c0_i32_0, %c0_i32_1 : i32, i32, i32
  }
  func.func @transform_2(%arg0: i32) -> (i32, i32) {
    %c0_i32 = arith.constant 0 : i32
    %c0_i32_0 = arith.constant 0 : i32
    %c0_i32_1 = arith.constant 0 : i32
    return %c0_i32, %c0_i32_0 : i32, i32
  }
  func.func @transform_3(%arg0: i32) -> (i32, i32) {
    %c0_i32 = arith.constant 0 : i32
    %c0_i32_0 = arith.constant 0 : i32
    %c0_i32_1 = arith.constant 0 : i32
    return %c0_i32, %c0_i32_0 : i32, i32
  }
  func.func @transform_4(%arg0: i32) -> (i32, i32) {
    %c0_i32 = arith.constant 0 : i32
    %c0_i32_0 = arith.constant 0 : i32
    %c0_i32_1 = arith.constant 0 : i32
    return %c0_i32, %c0_i32_0 : i32, i32
  }
  func.func @transform_5(%arg0: i32) -> (i32, i32, i32) {
    %c0_i32 = arith.constant 0 : i32
    %c0_i32_0 = arith.constant 0 : i32
    %c0_i32_1 = arith.constant 0 : i32
    return %arg0, %c0_i32, %c0_i32_0 : i32, i32, i32
  }
  func.func @transform_6(%arg0: i32) -> (i32, i32, i32) {
    %c0_i32 = arith.constant 0 : i32
    %0 = arith.subi %c0_i32, %arg0 : i32
    %c0_i32_0 = arith.constant 0 : i32
    %c0_i32_1 = arith.constant 0 : i32
    %c0_i32_2 = arith.constant 0 : i32
    return %0, %c0_i32_0, %c0_i32_1 : i32, i32, i32
  }
  func.func @transform_7(%arg0: i32) -> (i32, i32) {
    %c0_i32 = arith.constant 0 : i32
    %c0_i32_0 = arith.constant 0 : i32
    %c0_i32_1 = arith.constant 0 : i32
    return %c0_i32, %c0_i32_0 : i32, i32
  }
}

</mosaic_0001>

<llo_original>
// kernel: tpu_custom_call.1
$region0: #{tpu_custom_call.1}
  #allocation0 [shape = 'u32[]', space=smem, size = 0x4, offset = 0x4, fixed_abs, tag = 'smem constant byte address 0x4 - core index']
  #allocation1 [shape = 'u32[144,128]{1,0:T(1,128)}', space=vmem, size = 0x12000, scoped, tag = 'internal scratch']
  #allocation2 [shape = 'f32[2,16]{1,0:T(2,128)}', space=vmem, size = 0x400, scoped, tag = 'scratch operand']
  #allocation3 [shape = 'f32[2,16]{1,0:T(2,128)}', space=vmem, size = 0x400, scoped, tag = 'scratch operand']
  %s0 = inlined_call_operand.hbm [shape: f32[8,2,48], index: 0, kind: input, shape index: {}]
  %s1 = inlined_call_operand.hbm [shape: f32[8,2,48], index: 1, kind: input, shape index: {}]
  %s2 = inlined_call_operand.vmem [shape: f32[2,32], index: 2, kind: input, shape index: {}]
  %s3 = inlined_call_operand.hbm [shape: f32[16,48], index: 3, kind: input, shape index: {}]
  %s4 = inlined_call_operand.hbm [shape: f32[16,48], index: 4, kind: input, shape index: {}]
  %s5 = inlined_call_operand.hbm [shape: f32[8,2,16], index: 5, kind: output, shape index: {0}]
  %s6 = inlined_call_operand.hbm [shape: f32[8,2,16], index: 6, kind: output, shape index: {1}]
  %s7 = inlined_call_operand.hbm [shape: f32[2,32], index: 7, kind: output, shape index: {2}]
  %8 = xla_tuple %s5, %s6, %s7
  %s9 = sld [smem:[#allocation0]]
  $region70: #{tpu_custom_call.1} parent=0
    _
  %s11 = ssub.s32 1, %s9
  %s12 = scalar_select 0, %s11, %s9
  $region1: #{tpu_custom_call.1} parent=0
    #allocation4 [shape = 'u8[8192]{0}', space=vmem, size = 0x2000, scoped, tag = 'input window, operand 0, single buffered']
    #allocation5 [shape = 's32[1]{0}', space=sflag, size = 0x4, scoped, tag = 'scoped memory for tpu_custom_call.1']
    #allocation6 [shape = 's32[1]{0}', space=sflag, size = 0x4, scoped, tag = 'scoped memory for tpu_custom_call.1']
    #allocation7 [shape = 'u8[8192]{0}', space=vmem, size = 0x2000, scoped, tag = 'input window, operand 1, single buffered']
    #allocation8 [shape = 's32[1]{0}', space=sflag, size = 0x4, scoped, tag = 'scoped memory for tpu_custom_call.1']
    #allocation9 [shape = 'u8[8192]{0}', space=vmem, size = 0x2000, scoped, tag = 'input window, operand 3, single buffered']
    #allocation10 [shape = 'u8[8192]{0}', space=vmem, size = 0x2000, scoped, tag = 'input window, operand 4, single buffered']
    #allocation11 [shape = 's32[1]{0}', space=sflag, size = 0x4, scoped, tag = 'scoped memory for tpu_custom_call.1']
    #allocation12 [shape = 'u8[8192]{0}', space=vmem, size = 0x2000, scoped, tag = 'output window, operand 0, single buffered']
    #allocation13 [shape = 'u8[8192]{0}', space=vmem, size = 0x2000, scoped, tag = 'output window, operand 1, single buffered']
    #allocation14 [shape = 's32[1]{0}', space=sflag, size = 0x4, scoped, tag = 'scoped memory for tpu_custom_call.1']
    #allocation15 [shape = 'u8[1024]{0}', space=vmem, size = 0x400, scoped, tag = 'output window, operand 2, single buffered']
    %13 = vsyncpa [#allocation5], 0
    %14 = vsyncpa [#allocation8], 0
    %15 = vsyncpa [#allocation11], 0
    %16 = vsyncpa [#allocation6], 0
    %17 = vsyncpa [#allocation14], 0
    // Predicated region
    $region2: #{tpu_custom_call.1} parent=1 // pred_check
      _
    $region3: #{tpu_custom_call.1} parent=1 // pred_check_branch
      %19 = sbr.rel (0) target = $region5
    $region4: #{tpu_custom_call.1} parent=1 // pred_region
      %s21 = ssub.s32 256, 256
      %22 = vsyncadd [#allocation5], %s21
      %s23 = sshll.u32 [#allocation4], 4
      %s24 = int_to_ptr.vmem [resolvable:$true] %s23
      %29 = dma.hbm_to_vmem [thread:$0]  %s0, 256, %s24, [#allocation5], 32, 32, 2
    $region5: #{tpu_custom_call.1} parent=1 // pred_fallthru
      _
    // Predicated region
    $region6: #{tpu_custom_call.1} parent=1 // pred_check
      _
    $region7: #{tpu_custom_call.1} parent=1 // pred_check_branch
      %31 = sbr.rel (0) target = $region9
    $region8: #{tpu_custom_call.1} parent=1 // pred_region
      %s32 = ssub.s32 0, 0
      %s33 = smul.u32 8, %s32
      %s35 = ssub.s32 256, 256
      %36 = vsyncadd [#allocation8], %s35
      %s37 = smul.addr %s33, 32
      %s38 = scalar_lea.hbm %s1, %s37
      %s39 = sshll.u32 [#allocation7], 4
      %s40 = int_to_ptr.vmem [resolvable:$true] %s39
      %45 = dma.hbm_to_vmem [thread:$0]  %s38, 256, %s40, [#allocation8], 32, 32, 2
    $region9: #{tpu_custom_call.1} parent=1 // pred_fallthru
      _
    // Predicated region
    $region10: #{tpu_custom_call.1} parent=1 // pred_check
      _
    $region11: #{tpu_custom_call.1} parent=1 // pred_check_branch
      %47 = sbr.rel (0) target = $region13
    $region12: #{tpu_custom_call.1} parent=1 // pred_region
      _
    $region13: #{tpu_custom_call.1} parent=1 // pred_fallthru
      _
    // Predicated region
    $region14: #{tpu_custom_call.1} parent=1 // pred_check
      _
    $region15: #{tpu_custom_call.1} parent=1 // pred_check_branch
      %49 = sbr.rel (0) target = $region17
    $region16: #{tpu_custom_call.1} parent=1 // pred_region
      %s51 = ssub.s32 256, 256
      %52 = vsyncadd [#allocation8], %s51
      %s53 = sshll.u32 [#allocation9], 4
      %s54 = int_to_ptr.vmem [resolvable:$true] %s53
      %59 = dma.hbm_to_vmem [thread:$0]  %s3, 256, %s54, [#allocation8], 128, 128, 8
    $region17: #{tpu_custom_call.1} parent=1 // pred_fallthru
      _
    // Predicated region
    $region18: #{tpu_custom_call.1} parent=1 // pred_check
      _
    $region19: #{tpu_custom_call.1} parent=1 // pred_check_branch
      %61 = sbr.rel (0) target = $region21
    $region20: #{tpu_custom_call.1} parent=1 // pred_region
      %s63 = ssub.s32 256, 256
      %64 = vsyncadd [#allocation11], %s63
      %s65 = sshll.u32 [#allocation10], 4
      %s66 = int_to_ptr.vmem [resolvable:$true] %s65
      %71 = dma.hbm_to_vmem [thread:$0]  %s4, 256, %s66, [#allocation11], 128, 128, 8
    $region21: #{tpu_custom_call.1} parent=1 // pred_fallthru
      _
    // Predicated region
    $region22: #{tpu_custom_call.1} parent=1 // pred_check
      _
    $region23: #{tpu_custom_call.1} parent=1 // pred_check_branch
      %73 = sbr.rel (0) target = $region25
    $region24: #{tpu_custom_call.1} parent=1 // pred_region
      %74 = dma.done [#allocation5], 256
    $region25: #{tpu_custom_call.1} parent=1 // pred_fallthru
      _
    // Predicated region
    $region26: #{tpu_custom_call.1} parent=1 // pred_check
      _
    $region27: #{tpu_custom_call.1} parent=1 // pred_check_branch
      %76 = sbr.rel (0) target = $region29
    $region28: #{tpu_custom_call.1} parent=1 // pred_region
      %77 = dma.done [#allocation8], 256
    $region29: #{tpu_custom_call.1} parent=1 // pred_fallthru
      _
    // Predicated region
    $region30: #{tpu_custom_call.1} parent=1 // pred_check
      _
    $region31: #{tpu_custom_call.1} parent=1 // pred_check_branch
      %79 = sbr.rel (0) target = $region33
    $region32: #{tpu_custom_call.1} parent=1 // pred_region
      %80 = dma.done [#allocation8], 256
    $region33: #{tpu_custom_call.1} parent=1 // pred_fallthru
      _
    // Predicated region
    $region34: #{tpu_custom_call.1} parent=1 // pred_check
      _
    $region35: #{tpu_custom_call.1} parent=1 // pred_check_branch
      %82 = sbr.rel (0) target = $region37
    $region36: #{tpu_custom_call.1} parent=1 // pred_region
      %83 = dma.done [#allocation11], 256
    $region37: #{tpu_custom_call.1} parent=1 // pred_fallthru
      _
    %s84 = ssub.s32 0, 0
    %s85 = smul.u32 8, %s84
    %s86 = ssub.s32 0, 0
    %s87 = smul.u32 8, %s86
    %p88 = scmp.eq.s32.totalorder 0, 0
    // Predicated region
    $region38: #{tpu_custom_call.1} parent=1 // pred_check
      %p89 = pneg %p88
    $region39: #{tpu_custom_call.1} parent=1 // pred_check_branch
      %91 = sbr.rel (%p89) target = $region41
    $region40: #{tpu_custom_call.1} parent=1 // pred_region
      %v92 = vld [vmem:[%s2] sm:$0x3]
      %vm93 = vcmask 123904
      %94 = vst.msk [vmem:[#allocation2] sm:$0x3] %vm93, %v92
      %96 = vrot.lane.b32.xlu0 %v92, 112
      %v97 = vpop.permute.xlu0 %96
      %99 = vst.msk [vmem:[#allocation3] sm:$0x3] %vm93, %v97
    $region41: #{tpu_custom_call.1} parent=1 // pred_fallthru
      _
    %v100 = vld [vmem:[#allocation9] sm:$0xff]
    %v101 = vld [vmem:[#allocation9 + $0x8] sm:$0xff]
    %v102 = vld [vmem:[#allocation10] sm:$0xff]
    %v103 = vld [vmem:[#allocation10 + $0x8] sm:$0xff]
    %v104 = vld [vmem:[#allocation4] sm:$0x3]
    %v105 = vld [vmem:[#allocation2] sm:$0x3]
    %vm106 = vcmask 130048
    %v108 = vsel %vm106, %v105, 0
    %110 = vmatprep.subr.mxu0 0.0
    %111 = vmatpush1.msra.mxu0 %v100
    %112 = vmatprep.subr.mxu0 0.0
    %113 = vmatpush1.msra.mxu0 %v101
    %114 = vmatprep.subr.mxu0 0.0
    %115 = vmatpush1.msra.mxu0 0.0
    %116 = vmatprep.subr.mxu0 0.0
    %117 = vmatpush1.msra.mxu0 0.0
    %118 = vmatprep.subr.mxu0 0.0
    %119 = vmatpush1.msra.mxu0 0.0
    %120 = vmatprep.subr.mxu0 0.0
    %121 = vmatpush1.msra.mxu0 0.0
    %122 = vmatprep.subr.mxu0 0.0
    %123 = vmatpush1.msra.mxu0 0.0
    %124 = vmatprep.subr.mxu0 0.0
    %125 = vmatpush1.msra.mxu0 0.0
    %126 = vmatprep.subr.mxu0 0.0
    %127 = vmatpush1.msra.mxu0 0.0
    %128 = vmatprep.subr.mxu0 0.0
    %129 = vmatpush1.msra.mxu0 0.0
    %130 = vmatprep.subr.mxu0 0.0
    %131 = vmatpush1.msra.mxu0 0.0
    %132 = vmatprep.subr.mxu0 0.0
    %133 = vmatpush1.msra.mxu0 0.0
    %134 = vmatprep.subr.mxu0 0.0
    %135 = vmatpush1.msra.mxu0 0.0
    %136 = vmatprep.subr.mxu0 0.0
    %137 = vmatpush1.msra.mxu0 0.0
    %138 = vmatprep.subr.mxu0 0.0
    %139 = vmatpush1.msra.mxu0 0.0
    %140 = vmatprep.subr.mxu0 0.0
    %141 = vmatpush1.msra.mxu0 0.0
    %142 = vmatprep.subr.mxu0 0.0
    %143 = vmatpush1.msra.mxu0 0.0
    %144 = vmatprep.subr.mxu0 0.0
    %145 = vmatpush1.msra.mxu0 0.0
    %146 = vmatprep.subr.mxu0 0.0
    %147 = vmatpush1.msra.mxu0 0.0
    %148 = vmatprep.subr.mxu0 0.0
    %149 = vmatpush1.msra.mxu0 0.0
    %150 = vmatprep.subr.mxu0 0.0
    %151 = vmatpush1.msra.mxu0 0.0
    %152 = vmatprep.subr.mxu0 0.0
    %153 = vmatpush1.msra.mxu0 0.0
    %154 = vmatprep.subr.mxu0 0.0
    %155 = vmatpush1.msra.mxu0 0.0
    %156 = vmatprep.subr.mxu0 0.0
    %157 = vmatpush1.msra.mxu0 0.0
    %158 = vmatprep.subr.mxu0 0.0
    %159 = vmatpush1.msra.mxu0 0.0
    %160 = vmatprep.subr.mxu0 0.0
    %161 = vmatpush1.msra.mxu0 0.0
    %162 = vmatprep.subr.mxu0 0.0
    %163 = vmatpush1.msra.mxu0 0.0
    %164 = vmatprep.subr.mxu0 0.0
    %165 = vmatpush1.msra.mxu0 0.0
    %166 = vmatprep.subr.mxu0 0.0
    %167 = vmatpush1.msra.mxu0 0.0
    %168 = vmatprep.subr.mxu0 0.0
    %169 = vmatpush1.msra.mxu0 0.0
    %170 = vmatprep.subr.mxu0 0.0
    %171 = vmatpush1.msra.mxu0 0.0
    %172 = vmatprep.subr.mxu0 0.0
    %173 = vmatpush1.msra.mxu0 0.0
    %174 = vmatprep.mubr.f32.mxu0 0.0
    %175 = vmatmul.mubr.f32.gmra.mrb[0].mxu0 %v108
    %v176 = vpop.f32.mrb[0].mxu0
    %v177 = vadd.f32 0.0, %v176
    %v178 = vpop.f32.mrb[0].mxu0
    %179 = vdwg.mxu0
    %v180 = vadd.f32 %v104, %v177
    %v181 = vxor.u32 %v180, 2147483648
    %v182 = vmul.f32 %v181, 1.442695
    %v183 = vpow.pop %v182
    %v184 = vadd.f32 %v183, 1.0
    %v185 = vrcp.pop %v184
    %v186 = vmul.f32 1.0, %v185
    %v187 = vmul.f32 %v186, %v105
    %190 = vrot.lane.b32.xlu0 %v100, 96
    %v191 = vpop.permute.xlu0 %190
    %192 = vrot.lane.b32.xlu0 %v101, 96
    %v193 = vpop.permute.xlu0 %192
    %v197 = vsel %vm106, %v187, 0
    %199 = vmatprep.subr.mxu0 0.0
    %200 = vmatpush1.msra.mxu0 %v191
    %201 = vmatprep.subr.mxu0 0.0
    %202 = vmatpush1.msra.mxu0 %v193
    %203 = vmatprep.subr.mxu0 0.0
    %204 = vmatpush1.msra.mxu0 0.0
    %205 = vmatprep.subr.mxu0 0.0
    %206 = vmatpush1.msra.mxu0 0.0
    %207 = vmatprep.subr.mxu0 0.0
    %208 = vmatpush1.msra.mxu0 0.0
    %209 = vmatprep.subr.mxu0 0.0
    %210 = vmatpush1.msra.mxu0 0.0
    %211 = vmatprep.subr.mxu0 0.0
    %212 = vmatpush1.msra.mxu0 0.0
    %213 = vmatprep.subr.mxu0 0.0
    %214 = vmatpush1.msra.mxu0 0.0
    %215 = vmatprep.subr.mxu0 0.0
    %216 = vmatpush1.msra.mxu0 0.0
    %217 = vmatprep.subr.mxu0 0.0
    %218 = vmatpush1.msra.mxu0 0.0
    %219 = vmatprep.subr.mxu0 0.0
    %220 = vmatpush1.msra.mxu0 0.0
    %221 = vmatprep.subr.mxu0 0.0
    %222 = vmatpush1.msra.mxu0 0.0
    %223 = vmatprep.subr.mxu0 0.0
    %224 = vmatpush1.msra.mxu0 0.0
    %225 = vmatprep.subr.mxu0 0.0
    %226 = vmatpush1.msra.mxu0 0.0
    %227 = vmatprep.subr.mxu0 0.0
    %228 = vmatpush1.msra.mxu0 0.0
    %229 = vmatprep.subr.mxu0 0.0
    %230 = vmatpush1.msra.mxu0 0.0
    %231 = vmatprep.subr.mxu0 0.0
    %232 = vmatpush1.msra.mxu0 0.0
    %233 = vmatprep.subr.mxu0 0.0
    %234 = vmatpush1.msra.mxu0 0.0
    %235 = vmatprep.subr.mxu0 0.0
    %236 = vmatpush1.msra.mxu0 0.0
    %237 = vmatprep.subr.mxu0 0.0
    %238 = vmatpush1.msra.mxu0 0.0
    %239 = vmatprep.subr.mxu0 0.0
    %240 = vmatpush1.msra.mxu0 0.0
    %241 = vmatprep.subr.mxu0 0.0
    %242 = vmatpush1.msra.mxu0 0.0
    %243 = vmatprep.subr.mxu0 0.0
    %244 = vmatpush1.msra.mxu0 0.0
    %245 = vmatprep.subr.mxu0 0.0
    %246 = vmatpush1.msra.mxu0 0.0
    %247 = vmatprep.subr.mxu0 0.0
    %248 = vmatpush1.msra.mxu0 0.0
    %249 = vmatprep.subr.mxu0 0.0
    %250 = vmatpush1.msra.mxu0 0.0
    %251 = vmatprep.subr.mxu0 0.0
    %252 = vmatpush1.msra.mxu0 0.0
    %253 = vmatprep.subr.mxu0 0.0
    %254 = vmatpush1.msra.mxu0 0.0
    %255 = vmatprep.subr.mxu0 0.0
    %256 = vmatpush1.msra.mxu0 0.0
    %257 = vmatprep.subr.mxu0 0.0
    %258 = vmatpush1.msra.mxu0 0.0
    %259 = vmatprep.subr.mxu0 0.0
    %260 = vmatpush1.msra.mxu0 0.0
    %261 = vmatprep.subr.mxu0 0.0
    %262 = vmatpush1.msra.mxu0 0.0
    %263 = vmatprep.mubr.f32.mxu0 0.0
    %264 = vmatmul.mubr.f32.gmra.mrb[0].mxu0 %v197
    %v265 = vpop.f32.mrb[0].mxu0
    %v266 = vadd.f32 0.0, %v265
    %v267 = vpop.f32.mrb[0].mxu0
    %268 = vdwg.mxu0
    %270 = vrot.lane.b32.xlu0 %v266, 32
    %v271 = vpop.permute.xlu0 %270
    %v273 = vadd.f32 %v104, %v271
    %v274 = vtanh.pop %v273
    %275 = vrot.lane.b32.xlu0 %v105, 16
    %v276 = vpop.permute.xlu0 %275
    %v278 = vmul.f32 %v186, %v276
    %v279 = vsub.f32 1.0, %v186
    %281 = vrot.lane.b32.xlu0 %v274, 112
    %v282 = vpop.permute.xlu0 %281
    %v284 = vmul.f32 %v279, %v282
    %v285 = vadd.f32 %v278, %v284
    %287 = vrot.lane.b32.xlu0 %v285, 112
    %v288 = vpop.permute.xlu0 %287
    %vm290 = vcmask 123904
    %291 = vst.msk [vmem:[#allocation2] sm:$0x3] %vm290, %v288
    %292 = vst.msk [vmem:[#allocation12] sm:$0x3] %vm290, %v288
    %s293 = scalar_lea.vmem [#allocation7], 14
    %v294 = vld [vmem:[%s293] sm:$0x3]
    %v295 = vld [vmem:[#allocation3] sm:$0x3]
    %v297 = vsel %vm106, %v295, 0
    %299 = vmatprep.subr.mxu0 0.0
    %300 = vmatpush1.msra.mxu0 %v102
    %301 = vmatprep.subr.mxu0 0.0
    %302 = vmatpush1.msra.mxu0 %v103
    %303 = vmatprep.subr.mxu0 0.0
    %304 = vmatpush1.msra.mxu0 0.0
    %305 = vmatprep.subr.mxu0 0.0
    %306 = vmatpush1.msra.mxu0 0.0
    %307 = vmatprep.subr.mxu0 0.0
    %308 = vmatpush1.msra.mxu0 0.0
    %309 = vmatprep.subr.mxu0 0.0
    %310 = vmatpush1.msra.mxu0 0.0
    %311 = vmatprep.subr.mxu0 0.0
    %312 = vmatpush1.msra.mxu0 0.0
    %313 = vmatprep.subr.mxu0 0.0
    %314 = vmatpush1.msra.mxu0 0.0
    %315 = vmatprep.subr.mxu0 0.0
    %316 = vmatpush1.msra.mxu0 0.0
    %317 = vmatprep.subr.mxu0 0.0
    %318 = vmatpush1.msra.mxu0 0.0
    %319 = vmatprep.subr.mxu0 0.0
    %320 = vmatpush1.msra.mxu0 0.0
    %321 = vmatprep.subr.mxu0 0.0
    %322 = vmatpush1.msra.mxu0 0.0
    %323 = vmatprep.subr.mxu0 0.0
    %324 = vmatpush1.msra.mxu0 0.0
    %325 = vmatprep.subr.mxu0 0.0
    %326 = vmatpush1.msra.mxu0 0.0
    %327 = vmatprep.subr.mxu0 0.0
    %328 = vmatpush1.msra.mxu0 0.0
    %329 = vmatprep.subr.mxu0 0.0
    %330 = vmatpush1.msra.mxu0 0.0
    %331 = vmatprep.subr.mxu0 0.0
    %332 = vmatpush1.msra.mxu0 0.0
    %333 = vmatprep.subr.mxu0 0.0
    %334 = vmatpush1.msra.mxu0 0.0
    %335 = vmatprep.subr.mxu0 0.0
    %336 = vmatpush1.msra.mxu0 0.0
    %337 = vmatprep.subr.mxu0 0.0
    %338 = vmatpush1.msra.mxu0 0.0
    %339 = vmatprep.subr.mxu0 0.0
    %340 = vmatpush1.msra.mxu0 0.0
    %341 = vmatprep.subr.mxu0 0.0
    %342 = vmatpush1.msra.mxu0 0.0
    %343 = vmatprep.subr.mxu0 0.0
    %344 = vmatpush1.msra.mxu0 0.0
    %345 = vmatprep.subr.mxu0 0.0
    %346 = vmatpush1.msra.mxu0 0.0
    %347 = vmatprep.subr.mxu0 0.0
    %348 = vmatpush1.msra.mxu0 0.0
    %349 = vmatprep.subr.mxu0 0.0
    %350 = vmatpush1.msra.mxu0 0.0
    %351 = vmatprep.subr.mxu0 0.0
    %352 = vmatpush1.msra.mxu0 0.0
    %353 = vmatprep.subr.mxu0 0.0
    %354 = vmatpush1.msra.mxu0 0.0
    %355 = vmatprep.subr.mxu0 0.0
    %356 = vmatpush1.msra.mxu0 0.0
    %357 = vmatprep.subr.mxu0 0.0
    %358 = vmatpush1.msra.mxu0 0.0
    %359 = vmatprep.subr.mxu0 0.0
    %360 = vmatpush1.msra.mxu0 0.0
    %361 = vmatprep.subr.mxu0 0.0
    %362 = vmatpush1.msra.mxu0 0.0
    %363 = vmatprep.mubr.f32.mxu0 0.0
    %364 = vmatmul.mubr.f32.gmra.mrb[0].mxu0 %v297
    %v365 = vpop.f32.mrb[0].mxu0
    %v366 = vadd.f32 0.0, %v365
    %v367 = vpop.f32.mrb[0].mxu0
    %368 = vdwg.mxu0
    %v369 = vadd.f32 %v294, %v366
    %v370 = vxor.u32 %v369, 2147483648
    %v371 = vmul.f32 %v370, 1.442695
    %v372 = vpow.pop %v371
    %v373 = vadd.f32 %v372, 1.0
    %v374 = vrcp.pop %v373
    %v375 = vmul.f32 1.0, %v374
    %v376 = vmul.f32 %v375, %v295
    %379 = vrot.lane.b32.xlu0 %v102, 96
    %v380 = vpop.permute.xlu0 %379
    %381 = vrot.lane.b32.xlu0 %v103, 96
    %v382 = vpop.permute.xlu0 %381
    %v386 = vsel %vm106, %v376, 0
    %388 = vmatprep.subr.mxu0 0.0
    %389 = vmatpush1.msra.mxu0 %v380
    %390 = vmatprep.subr.mxu0 0.0
    %391 = vmatpush1.msra.mxu0 %v382
    %392 = vmatprep.subr.mxu0 0.0
    %393 = vmatpush1.msra.mxu0 0.0
    %394 = vmatprep.subr.mxu0 0.0
    %395 = vmatpush1.msra.mxu0 0.0
    %396 = vmatprep.subr.mxu0 0.0
    %397 = vmatpush1.msra.mxu0 0.0
    %398 = vmatprep.subr.mxu0 0.0
    %399 = vmatpush1.msra.mxu0 0.0
    %400 = vmatprep.subr.mxu0 0.0
    %401 = vmatpush1.msra.mxu0 0.0
    %402 = vmatprep.subr.mxu0 0.0
    %403 = vmatpush1.msra.mxu0 0.0
    %404 = vmatprep.subr.mxu0 0.0
    %405 = vmatpush1.msra.mxu0 0.0
    %406 = vmatprep.subr.mxu0 0.0
    %407 = vmatpush1.msra.mxu0 0.0
    %408 = vmatprep.subr.mxu0 0.0
    %409 = vmatpush1.msra.mxu0 0.0
    %410 = vmatprep.subr.mxu0 0.0
    %411 = vmatpush1.msra.mxu0 0.0
    %412 = vmatprep.subr.mxu0 0.0
    %413 = vmatpush1.msra.mxu0 0.0
    %414 = vmatprep.subr.mxu0 0.0
    %415 = vmatpush1.msra.mxu0 0.0
    %416 = vmatprep.subr.mxu0 0.0
    %417 = vmatpush1.msra.mxu0 0.0
    %418 = vmatprep.subr.mxu0 0.0
    %419 = vmatpush1.msra.mxu0 0.0
    %420 = vmatprep.subr.mxu0 0.0
    %421 = vmatpush1.msra.mxu0 0.0
    %422 = vmatprep.subr.mxu0 0.0
    %423 = vmatpush1.msra.mxu0 0.0
    %424 = vmatprep.subr.mxu0 0.0
    %425 = vmatpush1.msra.mxu0 0.0
    %426 = vmatprep.subr.mxu0 0.0
    %427 = vmatpush1.msra.mxu0 0.0
    %428 = vmatprep.subr.mxu0 0.0
    %429 = vmatpush1.msra.mxu0 0.0
    %430 = vmatprep.subr.mxu0 0.0
    %431 = vmatpush1.msra.mxu0 0.0
    %432 = vmatprep.subr.mxu0 0.0
    %433 = vmatpush1.msra.mxu0 0.0
    %434 = vmatprep.subr.mxu0 0.0
    %435 = vmatpush1.msra.mxu0 0.0
    %436 = vmatprep.subr.mxu0 0.0
    %437 = vmatpush1.msra.mxu0 0.0
    %438 = vmatprep.subr.mxu0 0.0
    %439 = vmatpush1.msra.mxu0 0.0
    %440 = vmatprep.subr.mxu0 0.0
    %441 = vmatpush1.msra.mxu0 0.0
    %442 = vmatprep.subr.mxu0 0.0
    %443 = vmatpush1.msra.mxu0 0.0
    %444 = vmatprep.subr.mxu0 0.0
    %445 = vmatpush1.msra.mxu0 0.0
    %446 = vmatprep.subr.mxu0 0.0
    %447 = vmatpush1.msra.mxu0 0.0
    %448 = vmatprep.subr.mxu0 0.0
    %449 = vmatpush1.msra.mxu0 0.0
    %450 = vmatprep.subr.mxu0 0.0
    %451 = vmatpush1.msra.mxu0 0.0
    %452 = vmatprep.mubr.f32.mxu0 0.0
    %453 = vmatmul.mubr.f32.gmra.mrb[0].mxu0 %v386
    %v454 = vpop.f32.mrb[0].mxu0
    %v455 = vadd.f32 0.0, %v454
    %v456 = vpop.f32.mrb[0].mxu0
    %457 = vdwg.mxu0
    %459 = vrot.lane.b32.xlu0 %v455, 32
    %v460 = vpop.permute.xlu0 %459
    %v462 = vadd.f32 %v294, %v460
    %v463 = vtanh.pop %v462
    %464 = vrot.lane.b32.xlu0 %v295, 16
    %v465 = vpop.permute.xlu0 %464
    %v467 = vmul.f32 %v375, %v465
    %v468 = vsub.f32 1.0, %v375
    %470 = vrot.lane.b32.xlu0 %v463, 112
    %v471 = vpop.permute.xlu0 %470
    %v473 = vmul.f32 %v468, %v471
    %v474 = vadd.f32 %v467, %v473
    %476 = vrot.lane.b32.xlu0 %v474, 112
    %v477 = vpop.permute.xlu0 %476
    %479 = vst.msk [vmem:[#allocation3] sm:$0x3] %vm290, %v477
    %s480 = scalar_lea.vmem [#allocation13], 14
    %481 = vst.msk [vmem:[%s480] sm:$0x3] %vm290, %v477
    %s482 = scalar_lea.vmem [#allocation4], 2
    %v483 = vld [vmem:[%s482] sm:$0x3]
    %v484 = vld [vmem:[#allocation2] sm:$0x3]
    %v486 = vsel %vm106, %v484, 0
    %488 = vmatprep.subr.mxu0 0.0
    %489 = vmatpush1.msra.mxu0 %v100
    %490 = vmatprep.subr.mxu0 0.0
    %491 = vmatpush1.msra.mxu0 %v101
    %492 = vmatprep.subr.mxu0 0.0
    %493 = vmatpush1.msra.mxu0 0.0
    %494 = vmatprep.subr.mxu0 0.0
    %495 = vmatpush1.msra.mxu0 0.0
    %496 = vmatprep.subr.mxu0 0.0
    %497 = vmatpush1.msra.mxu0 0.0
    %498 = vmatprep.subr.mxu0 0.0
    %499 = vmatpush1.msra.mxu0 0.0
    %500 = vmatprep.subr.mxu0 0.0
    %501 = vmatpush1.msra.mxu0 0.0
    %502 = vmatprep.subr.mxu0 0.0
    %503 = vmatpush1.msra.mxu0 0.0
    %504 = vmatprep.subr.mxu0 0.0
    %505 = vmatpush1.msra.mxu0 0.0
    %506 = vmatprep.subr.mxu0 0.0
    %507 = vmatpush1.msra.mxu0 0.0
    %508 = vmatprep.subr.mxu0 0.0
    %509 = vmatpush1.msra.mxu0 0.0
    %510 = vmatprep.subr.mxu0 0.0
    %511 = vmatpush1.msra.mxu0 0.0
    %512 = vmatprep.subr.mxu0 0.0
    %513 = vmatpush1.msra.mxu0 0.0
    %514 = vmatprep.subr.mxu0 0.0
    %515 = vmatpush1.msra.mxu0 0.0
    %516 = vmatprep.subr.mxu0 0.0
    %517 = vmatpush1.msra.mxu0 0.0
    %518 = vmatprep.subr.mxu0 0.0
    %519 = vmatpush1.msra.mxu0 0.0
    %520 = vmatprep.subr.mxu0 0.0
    %521 = vmatpush1.msra.mxu0 0.0
    %522 = vmatprep.subr.mxu0 0.0
    %523 = vmatpush1.msra.mxu0 0.0
    %524 = vmatprep.subr.mxu0 0.0
    %525 = vmatpush1.msra.mxu0 0.0
    %526 = vmatprep.subr.mxu0 0.0
    %527 = vmatpush1.msra.mxu0 0.0
    %528 = vmatprep.subr.mxu0 0.0
    %529 = vmatpush1.msra.mxu0 0.0
    %530 = vmatprep.subr.mxu0 0.0
    %531 = vmatpush1.msra.mxu0 0.0
    %532 = vmatprep.subr.mxu0 0.0
    %533 = vmatpush1.msra.mxu0 0.0
    %534 = vmatprep.subr.mxu0 0.0
    %535 = vmatpush1.msra.mxu0 0.0
    %536 = vmatprep.subr.mxu0 0.0
    %537 = vmatpush1.msra.mxu0 0.0
    %538 = vmatprep.subr.mxu0 0.0
    %539 = vmatpush1.msra.mxu0 0.0
    %540 = vmatprep.subr.mxu0 0.0
    %541 = vmatpush1.msra.mxu0 0.0
    %542 = vmatprep.subr.mxu0 0.0
    %543 = vmatpush1.msra.mxu0 0.0
    %544 = vmatprep.subr.mxu0 0.0
    %545 = vmatpush1.msra.mxu0 0.0
    %546 = vmatprep.subr.mxu0 0.0
    %547 = vmatpush1.msra.mxu0 0.0
    %548 = vmatprep.subr.mxu0 0.0
    %549 = vmatpush1.msra.mxu0 0.0
    %550 = vmatprep.subr.mxu0 0.0
    %551 = vmatpush1.msra.mxu0 0.0
    %552 = vmatprep.mubr.f32.mxu0 0.0
    %553 = vmatmul.mubr.f32.gmra.mrb[0].mxu0 %v486
    %v554 = vpop.f32.mrb[0].mxu0
    %v555 = vadd.f32 0.0, %v554
    %v556 = vpop.f32.mrb[0].mxu0
    %557 = vdwg.mxu0
    %v558 = vadd.f32 %v483, %v555
    %v559 = vxor.u32 %v558, 2147483648
    %v560 = vmul.f32 %v559, 1.442695
    %v561 = vpow.pop %v560
    %v562 = vadd.f32 %v561, 1.0
    %v563 = vrcp.pop %v562
    %v564 = vmul.f32 1.0, %v563
    %v565 = vmul.f32 %v564, %v484
    %v567 = vsel %vm106, %v565, 0
    %569 = vmatprep.subr.mxu0 0.0
    %570 = vmatpush1.msra.mxu0 %v191
    %571 = vmatprep.subr.mxu0 0.0
    %572 = vmatpush1.msra.mxu0 %v193
    %573 = vmatprep.subr.mxu0 0.0
    %574 = vmatpush1.msra.mxu0 0.0
    %575 = vmatprep.subr.mxu0 0.0
    %576 = vmatpush1.msra.mxu0 0.0
    %577 = vmatprep.subr.mxu0 0.0
    %578 = vmatpush1.msra.mxu0 0.0
    %579 = vmatprep.subr.mxu0 0.0
    %580 = vmatpush1.msra.mxu0 0.0
    %581 = vmatprep.subr.mxu0 0.0
    %582 = vmatpush1.msra.mxu0 0.0
    %583 = vmatprep.subr.mxu0 0.0
    %584 = vmatpush1.msra.mxu0 0.0
    %585 = vmatprep.subr.mxu0 0.0
    %586 = vmatpush1.msra.mxu0 0.0
    %587 = vmatprep.subr.mxu0 0.0
    %588 = vmatpush1.msra.mxu0 0.0
    %589 = vmatprep.subr.mxu0 0.0
    %590 = vmatpush1.msra.mxu0 0.0
    %591 = vmatprep.subr.mxu0 0.0
    %592 = vmatpush1.msra.mxu0 0.0
    %593 = vmatprep.subr.mxu0 0.0
    %594 = vmatpush1.msra.mxu0 0.0
    %595 = vmatprep.subr.mxu0 0.0
    %596 = vmatpush1.msra.mxu0 0.0
    %597 = vmatprep.subr.mxu0 0.0
    %598 = vmatpush1.msra.mxu0 0.0
    %599 = vmatprep.subr.mxu0 0.0
    %600 = vmatpush1.msra.mxu0 0.0
    %601 = vmatprep.subr.mxu0 0.0
    %602 = vmatpush1.msra.mxu0 0.0
    %603 = vmatprep.subr.mxu0 0.0
    %604 = vmatpush1.msra.mxu0 0.0
    %605 = vmatprep.subr.mxu0 0.0
    %606 = vmatpush1.msra.mxu0 0.0
    %607 = vmatprep.subr.mxu0 0.0
    %608 = vmatpush1.msra.mxu0 0.0
    %609 = vmatprep.subr.mxu0 0.0
    %610 = vmatpush1.msra.mxu0 0.0
    %611 = vmatprep.subr.mxu0 0.0
    %612 = vmatpush1.msra.mxu0 0.0
    %613 = vmatprep.subr.mxu0 0.0
    %614 = vmatpush1.msra.mxu0 0.0
    %615 = vmatprep.subr.mxu0 0.0
    %616 = vmatpush1.msra.mxu0 0.0
    %617 = vmatprep.subr.mxu0 0.0
    %618 = vmatpush1.msra.mxu0 0.0
    %619 = vmatprep.subr.mxu0 0.0
    %620 = vmatpush1.msra.mxu0 0.0
    %621 = vmatprep.subr.mxu0 0.0
    %622 = vmatpush1.msra.mxu0 0.0
    %623 = vmatprep.subr.mxu0 0.0
    %624 = vmatpush1.msra.mxu0 0.0
    %625 = vmatprep.subr.mxu0 0.0
    %626 = vmatpush1.msra.mxu0 0.0
    %627 = vmatprep.subr.mxu0 0.0
    %628 = vmatpush1.msra.mxu0 0.0
    %629 = vmatprep.subr.mxu0 0.0
    %630 = vmatpush1.msra.mxu0 0.0
    %631 = vmatprep.subr.mxu0 0.0
    %632 = vmatpush1.msra.mxu0 0.0
    %633 = vmatprep.mubr.f32.mxu0 0.0
    %634 = vmatmul.mubr.f32.gmra.mrb[0].mxu0 %v567
    %v635 = vpop.f32.mrb[0].mxu0
    %v636 = vadd.f32 0.0, %v635
    %v637 = vpop.f32.mrb[0].mxu0
    %638 = vdwg.mxu0
    %640 = vrot.lane.b32.xlu0 %v636, 32
    %v641 = vpop.permute.xlu0 %640
    %v643 = vadd.f32 %v483, %v641
    %v644 = vtanh.pop %v643
    %645 = vrot.lane.b32.xlu0 %v484, 16
    %v646 = vpop.permute.xlu0 %645
    %v648 = vmul.f32 %v564, %v646
    %v649 = vsub.f32 1.0, %v564
    %651 = vrot.lane.b32.xlu0 %v644, 112
    %v652 = vpop.permute.xlu0 %651
    %v654 = vmul.f32 %v649, %v652
    %v655 = vadd.f32 %v648, %v654
    %657 = vrot.lane.b32.xlu0 %v655, 112
    %v658 = vpop.permute.xlu0 %657
    %660 = vst.msk [vmem:[#allocation2] sm:$0x3] %vm290, %v658
    %s661 = scalar_lea.vmem [#allocation12], 2
    %662 = vst.msk [vmem:[%s661] sm:$0x3] %vm290, %v658
    %s663 = scalar_lea.vmem [#allocation7], 12
    %v664 = vld [vmem:[%s663] sm:$0x3]
    %v665 = vld [vmem:[#allocation3] sm:$0x3]
    %v667 = vsel %vm106, %v665, 0
    %669 = vmatprep.subr.mxu0 0.0
    %670 = vmatpush1.msra.mxu0 %v102
    %671 = vmatprep.subr.mxu0 0.0
    %672 = vmatpush1.msra.mxu0 %v103
    %673 = vmatprep.subr.mxu0 0.0
    %674 = vmatpush1.msra.mxu0 0.0
    %675 = vmatprep.subr.mxu0 0.0
    %676 = vmatpush1.msra.mxu0 0.0
    %677 = vmatprep.subr.mxu0 0.0
    %678 = vmatpush1.msra.mxu0 0.0
    %679 = vmatprep.subr.mxu0 0.0
    %680 = vmatpush1.msra.mxu0 0.0
    %681 = vmatprep.subr.mxu0 0.0
    %682 = vmatpush1.msra.mxu0 0.0
    %683 = vmatprep.subr.mxu0 0.0
    %684 = vmatpush1.msra.mxu0 0.0
    %685 = vmatprep.subr.mxu0 0.0
    %686 = vmatpush1.msra.mxu0 0.0
    %687 = vmatprep.subr.mxu0 0.0
    %688 = vmatpush1.msra.mxu0 0.0
    %689 = vmatprep.subr.mxu0 0.0
    %690 = vmatpush1.msra.mxu0 0.0
    %691 = vmatprep.subr.mxu0 0.0
    %692 = vmatpush1.msra.mxu0 0.0
    %693 = vmatprep.subr.mxu0 0.0
    %694 = vmatpush1.msra.mxu0 0.0
    %695 = vmatprep.subr.mxu0 0.0
    %696 = vmatpush1.msra.mxu0 0.0
    %697 = vmatprep.subr.mxu0 0.0
    %698 = vmatpush1.msra.mxu0 0.0
    %699 = vmatprep.subr.mxu0 0.0
    %700 = vmatpush1.msra.mxu0 0.0
    %701 = vmatprep.subr.mxu0 0.0
    %702 = vmatpush1.msra.mxu0 0.0
    %703 = vmatprep.subr.mxu0 0.0
    %704 = vmatpush1.msra.mxu0 0.0
    %705 = vmatprep.subr.mxu0 0.0
    %706 = vmatpush1.msra.mxu0 0.0
    %707 = vmatprep.subr.mxu0 0.0
    %708 = vmatpush1.msra.mxu0 0.0
    %709 = vmatprep.subr.mxu0 0.0
    %710 = vmatpush1.msra.mxu0 0.0
    %711 = vmatprep.subr.mxu0 0.0
    %712 = vmatpush1.msra.mxu0 0.0
    %713 = vmatprep.subr.mxu0 0.0
    %714 = vmatpush1.msra.mxu0 0.0
    %715 = vmatprep.subr.mxu0 0.0
    %716 = vmatpush1.msra.mxu0 0.0
    %717 = vmatprep.subr.mxu0 0.0
    %718 = vmatpush1.msra.mxu0 0.0
    %719 = vmatprep.subr.mxu0 0.0
    %720 = vmatpush1.msra.mxu0 0.0
    %721 = vmatprep.subr.mxu0 0.0
    %722 = vmatpush1.msra.mxu0 0.0
    %723 = vmatprep.subr.mxu0 0.0
    %724 = vmatpush1.msra.mxu0 0.0
    %725 = vmatprep.subr.mxu0 0.0
    %726 = vmatpush1.msra.mxu0 0.0
    %727 = vmatprep.subr.mxu0 0.0
    %728 = vmatpush1.msra.mxu0 0.0
    %729 = vmatprep.subr.mxu0 0.0
    %730 = vmatpush1.msra.mxu0 0.0
    %731 = vmatprep.subr.mxu0 0.0
    %732 = vmatpush1.msra.mxu0 0.0
    %733 = vmatprep.mubr.f32.mxu0 0.0
    %734 = vmatmul.mubr.f32.gmra.mrb[0].mxu0 %v667
    %v735 = vpop.f32.mrb[0].mxu0
    %v736 = vadd.f32 0.0, %v735
    %v737 = vpop.f32.mrb[0].mxu0
    %738 = vdwg.mxu0
    %v739 = vadd.f32 %v664, %v736
    %v740 = vxor.u32 %v739, 2147483648
    %v741 = vmul.f32 %v740, 1.442695
    %v742 = vpow.pop %v741
    %v743 = vadd.f32 %v742, 1.0
    %v744 = vrcp.pop %v743
    %v745 = vmul.f32 1.0, %v744
    %v746 = vmul.f32 %v745, %v665
    %v748 = vsel %vm106, %v746, 0
    %750 = vmatprep.subr.mxu0 0.0
    %751 = vmatpush1.msra.mxu0 %v380
    %752 = vmatprep.subr.mxu0 0.0
    %753 = vmatpush1.msra.mxu0 %v382
    %754 = vmatprep.subr.mxu0 0.0
    %755 = vmatpush1.msra.mxu0 0.0
    %756 = vmatprep.subr.mxu0 0.0
    %757 = vmatpush1.msra.mxu0 0.0
    %758 = vmatprep.subr.mxu0 0.0
    %759 = vmatpush1.msra.mxu0 0.0
    %760 = vmatprep.subr.mxu0 0.0
    %761 = vmatpush1.msra.mxu0 0.0
    %762 = vmatprep.subr.mxu0 0.0
    %763 = vmatpush1.msra.mxu0 0.0
    %764 = vmatprep.subr.mxu0 0.0
    %765 = vmatpush1.msra.mxu0 0.0
    %766 = vmatprep.subr.mxu0 0.0
    %767 = vmatpush1.msra.mxu0 0.0
    %768 = vmatprep.subr.mxu0 0.0
    %769 = vmatpush1.msra.mxu0 0.0
    %770 = vmatprep.subr.mxu0 0.0
    %771 = vmatpush1.msra.mxu0 0.0
    %772 = vmatprep.subr.mxu0 0.0
    %773 = vmatpush1.msra.mxu0 0.0
    %774 = vmatprep.subr.mxu0 0.0
    %775 = vmatpush1.msra.mxu0 0.0
    %776 = vmatprep.subr.mxu0 0.0
    %777 = vmatpush1.msra.mxu0 0.0
    %778 = vmatprep.subr.mxu0 0.0
    %779 = vmatpush1.msra.mxu0 0.0
    %780 = vmatprep.subr.mxu0 0.0
    %781 = vmatpush1.msra.mxu0 0.0
    %782 = vmatprep.subr.mxu0 0.0
    %783 = vmatpush1.msra.mxu0 0.0
    %784 = vmatprep.subr.mxu0 0.0
    %785 = vmatpush1.msra.mxu0 0.0
    %786 = vmatprep.subr.mxu0 0.0
    %787 = vmatpush1.msra.mxu0 0.0
    %788 = vmatprep.subr.mxu0 0.0
    %789 = vmatpush1.msra.mxu0 0.0
    %790 = vmatprep.subr.mxu0 0.0
    %791 = vmatpush1.msra.mxu0 0.0
    %792 = vmatprep.subr.mxu0 0.0
    %793 = vmatpush1.msra.mxu0 0.0
    %794 = vmatprep.subr.mxu0 0.0
    %795 = vmatpush1.msra.mxu0 0.0
    %796 = vmatprep.subr.mxu0 0.0
    %797 = vmatpush1.msra.mxu0 0.0
    %798 = vmatprep.subr.mxu0 0.0
    %799 = vmatpush1.msra.mxu0 0.0
    %800 = vmatprep.subr.mxu0 0.0
    %801 = vmatpush1.msra.mxu0 0.0
    %802 = vmatprep.subr.mxu0 0.0
    %803 = vmatpush1.msra.mxu0 0.0
    %804 = vmatprep.subr.mxu0 0.0
    %805 = vmatpush1.msra.mxu0 0.0
    %806 = vmatprep.subr.mxu0 0.0
    %807 = vmatpush1.msra.mxu0 0.0
    %808 = vmatprep.subr.mxu0 0.0
    %809 = vmatpush1.msra.mxu0 0.0
    %810 = vmatprep.subr.mxu0 0.0
    %811 = vmatpush1.msra.mxu0 0.0
    %812 = vmatprep.subr.mxu0 0.0
    %813 = vmatpush1.msra.mxu0 0.0
    %814 = vmatprep.mubr.f32.mxu0 0.0
    %815 = vmatmul.mubr.f32.gmra.mrb[0].mxu0 %v748
    %v816 = vpop.f32.mrb[0].mxu0
    %v817 = vadd.f32 0.0, %v816
    %v818 = vpop.f32.mrb[0].mxu0
    %819 = vdwg.mxu0
    %821 = vrot.lane.b32.xlu0 %v817, 32
    %v822 = vpop.permute.xlu0 %821
    %v824 = vadd.f32 %v664, %v822
    %v825 = vtanh.pop %v824
    %826 = vrot.lane.b32.xlu0 %v665, 16
    %v827 = vpop.permute.xlu0 %826
    %v829 = vmul.f32 %v745, %v827
    %v830 = vsub.f32 1.0, %v745
    %832 = vrot.lane.b32.xlu0 %v825, 112
    %v833 = vpop.permute.xlu0 %832
    %v835 = vmul.f32 %v830, %v833
    %v836 = vadd.f32 %v829, %v835
    %838 = vrot.lane.b32.xlu0 %v836, 112
    %v839 = vpop.permute.xlu0 %838
    %841 = vst.msk [vmem:[#allocation3] sm:$0x3] %vm290, %v839
    %s842 = scalar_lea.vmem [#allocation13], 12
    %843 = vst.msk [vmem:[%s842] sm:$0x3] %vm290, %v839
    %s844 = scalar_lea.vmem [#allocation4], 4
    %v845 = vld [vmem:[%s844] sm:$0x3]
    %v846 = vld [vmem:[#allocation2] sm:$0x3]
    %v848 = vsel %vm106, %v846, 0
    %850 = vmatprep.subr.mxu0 0.0
    %851 = vmatpush1.msra.mxu0 %v100
    %852 = vmatprep.subr.mxu0 0.0
    %853 = vmatpush1.msra.mxu0 %v101
    %854 = vmatprep.subr.mxu0 0.0
    %855 = vmatpush1.msra.mxu0 0.0
    %856 = vmatprep.subr.mxu0 0.0
    %857 = vmatpush1.msra.mxu0 0.0
    %858 = vmatprep.subr.mxu0 0.0
    %859 = vmatpush1.msra.mxu0 0.0
    %860 = vmatprep.subr.mxu0 0.0
    %861 = vmatpush1.msra.mxu0 0.0
    %862 = vmatprep.subr.mxu0 0.0
    %863 = vmatpush1.msra.mxu0 0.0
    %864 = vmatprep.subr.mxu0 0.0
    %865 = vmatpush1.msra.mxu0 0.0
    %866 = vmatprep.subr.mxu0 0.0
    %867 = vmatpush1.msra.mxu0 0.0
    %868 = vmatprep.subr.mxu0 0.0
    %869 = vmatpush1.msra.mxu0 0.0
    %870 = vmatprep.subr.mxu0 0.0
    %871 = vmatpush1.msra.mxu0 0.0
    %872 = vmatprep.subr.mxu0 0.0
    %873 = vmatpush1.msra.mxu0 0.0
    %874 = vmatprep.subr.mxu0 0.0
    %875 = vmatpush1.msra.mxu0 0.0
    %876 = vmatprep.subr.mxu0 0.0
    %877 = vmatpush1.msra.mxu0 0.0
    %878 = vmatprep.subr.mxu0 0.0
    %879 = vmatpush1.msra.mxu0 0.0
    %880 = vmatprep.subr.mxu0 0.0
    %881 = vmatpush1.msra.mxu0 0.0
    %882 = vmatprep.subr.mxu0 0.0
    %883 = vmatpush1.msra.mxu0 0.0
    %884 = vmatprep.subr.mxu0 0.0
    %885 = vmatpush1.msra.mxu0 0.0
    %886 = vmatprep.subr.mxu0 0.0
    %887 = vmatpush1.msra.mxu0 0.0
    %888 = vmatprep.subr.mxu0 0.0
    %889 = vmatpush1.msra.mxu0 0.0
    %890 = vmatprep.subr.mxu0 0.0
    %891 = vmatpush1.msra.mxu0 0.0
    %892 = vmatprep.subr.mxu0 0.0
    %893 = vmatpush1.msra.mxu0 0.0
    %894 = vmatprep.subr.mxu0 0.0
    %895 = vmatpush1.msra.mxu0 0.0
    %896 = vmatprep.subr.mxu0 0.0
    %897 = vmatpush1.msra.mxu0 0.0
    %898 = vmatprep.subr.mxu0 0.0
    %899 = vmatpush1.msra.mxu0 0.0
    %900 = vmatprep.subr.mxu0 0.0
    %901 = vmatpush1.msra.mxu0 0.0
    %902 = vmatprep.subr.mxu0 0.0
    %903 = vmatpush1.msra.mxu0 0.0
    %904 = vmatprep.subr.mxu0 0.0
    %905 = vmatpush1.msra.mxu0 0.0
    %906 = vmatprep.subr.mxu0 0.0
    %907 = vmatpush1.msra.mxu0 0.0
    %908 = vmatprep.subr.mxu0 0.0
    %909 = vmatpush1.msra.mxu0 0.0
    %910 = vmatprep.subr.mxu0 0.0
    %911 = vmatpush1.msra.mxu0 0.0
    %912 = vmatprep.subr.mxu0 0.0
    %913 = vmatpush1.msra.mxu0 0.0
    %914 = vmatprep.mubr.f32.mxu0 0.0
    %915 = vmatmul.mubr.f32.gmra.mrb[0].mxu0 %v848
    %v916 = vpop.f32.mrb[0].mxu0
    %v917 = vadd.f32 0.0, %v916
    %v918 = vpop.f32.mrb[0].mxu0
    %919 = vdwg.mxu0
    %v920 = vadd.f32 %v845, %v917
    %v921 = vxor.u32 %v920, 2147483648
    %v922 = vmul.f32 %v921, 1.442695
    %v923 = vpow.pop %v922
    %v924 = vadd.f32 %v923, 1.0
    %v925 = vrcp.pop %v924
    %v926 = vmul.f32 1.0, %v925
    %v927 = vmul.f32 %v926, %v846
    %v929 = vsel %vm106, %v927, 0
    %931 = vmatprep.subr.mxu0 0.0
    %932 = vmatpush1.msra.mxu0 %v191
    %933 = vmatprep.subr.mxu0 0.0
    %934 = vmatpush1.msra.mxu0 %v193
    %935 = vmatprep.subr.mxu0 0.0
    %936 = vmatpush1.msra.mxu0 0.0
    %937 = vmatprep.subr.mxu0 0.0
    %938 = vmatpush1.msra.mxu0 0.0
    %939 = vmatprep.subr.mxu0 0.0
    %940 = vmatpush1.msra.mxu0 0.0
    %941 = vmatprep.subr.mxu0 0.0
    %942 = vmatpush1.msra.mxu0 0.0
    %943 = vmatprep.subr.mxu0 0.0
    %944 = vmatpush1.msra.mxu0 0.0
    %945 = vmatprep.subr.mxu0 0.0
    %946 = vmatpush1.msra.mxu0 0.0
    %947 = vmatprep.subr.mxu0 0.0
    %948 = vmatpush1.msra.mxu0 0.0
    %949 = vmatprep.subr.mxu0 0.0
    %950 = vmatpush1.msra.mxu0 0.0
    %951 = vmatprep.subr.mxu0 0.0
    %952 = vmatpush1.msra.mxu0 0.0
    %953 = vmatprep.subr.mxu0 0.0
    %954 = vmatpush1.msra.mxu0 0.0
    %955 = vmatprep.subr.mxu0 0.0
    %956 = vmatpush1.msra.mxu0 0.0
    %957 = vmatprep.subr.mxu0 0.0
    %958 = vmatpush1.msra.mxu0 0.0
    %959 = vmatprep.subr.mxu0 0.0
    %960 = vmatpush1.msra.mxu0 0.0
    %961 = vmatprep.subr.mxu0 0.0
    %962 = vmatpush1.msra.mxu0 0.0
    %963 = vmatprep.subr.mxu0 0.0
    %964 = vmatpush1.msra.mxu0 0.0
    %965 = vmatprep.subr.mxu0 0.0
    %966 = vmatpush1.msra.mxu0 0.0
    %967 = vmatprep.subr.mxu0 0.0
    %968 = vmatpush1.msra.mxu0 0.0
    %969 = vmatprep.subr.mxu0 0.0
    %970 = vmatpush1.msra.mxu0 0.0
    %971 = vmatprep.subr.mxu0 0.0
    %972 = vmatpush1.msra.mxu0 0.0
    %973 = vmatprep.subr.mxu0 0.0
    %974 = vmatpush1.msra.mxu0 0.0
    %975 = vmatprep.subr.mxu0 0.0
    %976 = vmatpush1.msra.mxu0 0.0
    %977 = vmatprep.subr.mxu0 0.0
    %978 = vmatpush1.msra.mxu0 0.0
    %979 = vmatprep.subr.mxu0 0.0
    %980 = vmatpush1.msra.mxu0 0.0
    %981 = vmatprep.subr.mxu0 0.0
    %982 = vmatpush1.msra.mxu0 0.0
    %983 = vmatprep.subr.mxu0 0.0
    %984 = vmatpush1.msra.mxu0 0.0
    %985 = vmatprep.subr.mxu0 0.0
    %986 = vmatpush1.msra.mxu0 0.0
    %987 = vmatprep.subr.mxu0 0.0
    %988 = vmatpush1.msra.mxu0 0.0
    %989 = vmatprep.subr.mxu0 0.0
    %990 = vmatpush1.msra.mxu0 0.0
    %991 = vmatprep.subr.mxu0 0.0
    %992 = vmatpush1.msra.mxu0 0.0
    %993 = vmatprep.subr.mxu0 0.0
    %994 = vmatpush1.msra.mxu0 0.0
    %995 = vmatprep.mubr.f32.mxu0 0.0
    %996 = vmatmul.mubr.f32.gmra.mrb[0].mxu0 %v929
    %v997 = vpop.f32.mrb[0].mxu0
    %v998 = vadd.f32 0.0, %v997
    %v999 = vpop.f32.mrb[0].mxu0
    %1000 = vdwg.mxu0
    %1002 = vrot.lane.b32.xlu0 %v998, 32
    %v1003 = vpop.permute.xlu0 %1002
    %v1005 = vadd.f32 %v845, %v1003
    %v1006 = vtanh.pop %v1005
    %1007 = vrot.lane.b32.xlu0 %v846, 16
    %v1008 = vpop.permute.xlu0 %1007
    %v1010 = vmul.f32 %v926, %v1008
    %v1011 = vsub.f32 1.0, %v926
    %1013 = vrot.lane.b32.xlu0 %v1006, 112
    %v1014 = vpop.permute.xlu0 %1013
    %v1016 = vmul.f32 %v1011, %v1014
    %v1017 = vadd.f32 %v1010, %v1016
    %1019 = vrot.lane.b32.xlu0 %v1017, 112
    %v1020 = vpop.permute.xlu0 %1019
    %1022 = vst.msk [vmem:[#allocation2] sm:$0x3] %vm290, %v1020
    %s1023 = scalar_lea.vmem [#allocation12], 4
    %1024 = vst.msk [vmem:[%s1023] sm:$0x3] %vm290, %v1020
    %s1025 = scalar_lea.vmem [#allocation7], 10
    %v1026 = vld [vmem:[%s1025] sm:$0x3]
    %v1027 = vld [vmem:[#allocation3] sm:$0x3]
    %v1029 = vsel %vm106, %v1027, 0
    %1031 = vmatprep.subr.mxu0 0.0
    %1032 = vmatpush1.msra.mxu0 %v102
    %1033 = vmatprep.subr.mxu0 0.0
    %1034 = vmatpush1.msra.mxu0 %v103
    %1035 = vmatprep.subr.mxu0 0.0
    %1036 = vmatpush1.msra.mxu0 0.0
    %1037 = vmatprep.subr.mxu0 0.0
    %1038 = vmatpush1.msra.mxu0 0.0
    %1039 = vmatprep.subr.mxu0 0.0
    %1040 = vmatpush1.msra.mxu0 0.0
    %1041 = vmatprep.subr.mxu0 0.0
    %1042 = vmatpush1.msra.mxu0 0.0
    %1043 = vmatprep.subr.mxu0 0.0
    %1044 = vmatpush1.msra.mxu0 0.0
    %1045 = vmatprep.subr.mxu0 0.0
    %1046 = vmatpush1.msra.mxu0 0.0
    %1047 = vmatprep.subr.mxu0 0.0
    %1048 = vmatpush1.msra.mxu0 0.0
    %1049 = vmatprep.subr.mxu0 0.0
    %1050 = vmatpush1.msra.mxu0 0.0
    %1051 = vmatprep.subr.mxu0 0.0
    %1052 = vmatpush1.msra.mxu0 0.0
    %1053 = vmatprep.subr.mxu0 0.0
    %1054 = vmatpush1.msra.mxu0 0.0
    %1055 = vmatprep.subr.mxu0 0.0
    %1056 = vmatpush1.msra.mxu0 0.0
    %1057 = vmatprep.subr.mxu0 0.0
    %1058 = vmatpush1.msra.mxu0 0.0
    %1059 = vmatprep.subr.mxu0 0.0
    %1060 = vmatpush1.msra.mxu0 0.0
    %1061 = vmatprep.subr.mxu0 0.0
    %1062 = vmatpush1.msra.mxu0 0.0
    %1063 = vmatprep.subr.mxu0 0.0
    %1064 = vmatpush1.msra.mxu0 0.0
    %1065 = vmatprep.subr.mxu0 0.0
    %1066 = vmatpush1.msra.mxu0 0.0
    %1067 = vmatprep.subr.mxu0 0.0
    %1068 = vmatpush1.msra.mxu0 0.0
    %1069 = vmatprep.subr.mxu0 0.0
    %1070 = vmatpush1.msra.mxu0 0.0
    %1071 = vmatprep.subr.mxu0 0.0
    %1072 = vmatpush1.msra.mxu0 0.0
    %1073 = vmatprep.subr.mxu0 0.0
    %1074 = vmatpush1.msra.mxu0 0.0
    %1075 = vmatprep.subr.mxu0 0.0
    %1076 = vmatpush1.msra.mxu0 0.0
    %1077 = vmatprep.subr.mxu0 0.0
    %1078 = vmatpush1.msra.mxu0 0.0
    %1079 = vmatprep.subr.mxu0 0.0
    %1080 = vmatpush1.msra.mxu0 0.0
    %1081 = vmatprep.subr.mxu0 0.0
    %1082 = vmatpush1.msra.mxu0 0.0
    %1083 = vmatprep.subr.mxu0 0.0
    %1084 = vmatpush1.msra.mxu0 0.0
    %1085 = vmatprep.subr.mxu0 0.0
    %1086 = vmatpush1.msra.mxu0 0.0
    %1087 = vmatprep.subr.mxu0 0.0
    %1088 = vmatpush1.msra.mxu0 0.0
    %1089 = vmatprep.subr.mxu0 0.0
    %1090 = vmatpush1.msra.mxu0 0.0
    %1091 = vmatprep.subr.mxu0 0.0
    %1092 = vmatpush1.msra.mxu0 0.0
    %1093 = vmatprep.subr.mxu0 0.0
    %1094 = vmatpush1.msra.mxu0 0.0
    %1095 = vmatprep.mubr.f32.mxu0 0.0
    %1096 = vmatmul.mubr.f32.gmra.mrb[0].mxu0 %v1029
    %v1097 = vpop.f32.mrb[0].mxu0
    %v1098 = vadd.f32 0.0, %v1097
    %v1099 = vpop.f32.mrb[0].mxu0
    %1100 = vdwg.mxu0
    %v1101 = vadd.f32 %v1026, %v1098
    %v1102 = vxor.u32 %v1101, 2147483648
    %v1103 = vmul.f32 %v1102, 1.442695
    %v1104 = vpow.pop %v1103
    %v1105 = vadd.f32 %v1104, 1.0
    %v1106 = vrcp.pop %v1105
    %v1107 = vmul.f32 1.0, %v1106
    %v1108 = vmul.f32 %v1107, %v1027
    %v1110 = vsel %vm106, %v1108, 0
    %1112 = vmatprep.subr.mxu0 0.0
    %1113 = vmatpush1.msra.mxu0 %v380
    %1114 = vmatprep.subr.mxu0 0.0
    %1115 = vmatpush1.msra.mxu0 %v382
    %1116 = vmatprep.subr.mxu0 0.0
    %1117 = vmatpush1.msra.mxu0 0.0
    %1118 = vmatprep.subr.mxu0 0.0
    %1119 = vmatpush1.msra.mxu0 0.0
    %1120 = vmatprep.subr.mxu0 0.0
    %1121 = vmatpush1.msra.mxu0 0.0
    %1122 = vmatprep.subr.mxu0 0.0
    %1123 = vmatpush1.msra.mxu0 0.0
    %1124 = vmatprep.subr.mxu0 0.0
    %1125 = vmatpush1.msra.mxu0 0.0
    %1126 = vmatprep.subr.mxu0 0.0
    %1127 = vmatpush1.msra.mxu0 0.0
    %1128 = vmatprep.subr.mxu0 0.0
    %1129 = vmatpush1.msra.mxu0 0.0
    %1130 = vmatprep.subr.mxu0 0.0
    %1131 = vmatpush1.msra.mxu0 0.0
    %1132 = vmatprep.subr.mxu0 0.0
    %1133 = vmatpush1.msra.mxu0 0.0
    %1134 = vmatprep.subr.mxu0 0.0
    %1135 = vmatpush1.msra.mxu0 0.0
    %1136 = vmatprep.subr.mxu0 0.0
    %1137 = vmatpush1.msra.mxu0 0.0
    %1138 = vmatprep.subr.mxu0 0.0
    %1139 = vmatpush1.msra.mxu0 0.0
    %1140 = vmatprep.subr.mxu0 0.0
    %1141 = vmatpush1.msra.mxu0 0.0
    %1142 = vmatprep.subr.mxu0 0.0
    %1143 = vmatpush1.msra.mxu0 0.0
    %1144 = vmatprep.subr.mxu0 0.0
    %1145 = vmatpush1.msra.mxu0 0.0
    %1146 = vmatprep.subr.mxu0 0.0
    %1147 = vmatpush1.msra.mxu0 0.0
    %1148 = vmatprep.subr.mxu0 0.0
    %1149 = vmatpush1.msra.mxu0 0.0
    %1150 = vmatprep.subr.mxu0 0.0
    %1151 = vmatpush1.msra.mxu0 0.0
    %1152 = vmatprep.subr.mxu0 0.0
    %1153 = vmatpush1.msra.mxu0 0.0
    %1154 = vmatprep.subr.mxu0 0.0
    %1155 = vmatpush1.msra.mxu0 0.0
    %1156 = vmatprep.subr.mxu0 0.0
    %1157 = vmatpush1.msra.mxu0 0.0
    %1158 = vmatprep.subr.mxu0 0.0
    %1159 = vmatpush1.msra.mxu0 0.0
    %1160 = vmatprep.subr.mxu0 0.0
    %1161 = vmatpush1.msra.mxu0 0.0
    %1162 = vmatprep.subr.mxu0 0.0
    %1163 = vmatpush1.msra.mxu0 0.0
    %1164 = vmatprep.subr.mxu0 0.0
    %1165 = vmatpush1.msra.mxu0 0.0
    %1166 = vmatprep.subr.mxu0 0.0
    %1167 = vmatpush1.msra.mxu0 0.0
    %1168 = vmatprep.subr.mxu0 0.0
    %1169 = vmatpush1.msra.mxu0 0.0
    %1170 = vmatprep.subr.mxu0 0.0
    %1171 = vmatpush1.msra.mxu0 0.0
    %1172 = vmatprep.subr.mxu0 0.0
    %1173 = vmatpush1.msra.mxu0 0.0
    %1174 = vmatprep.subr.mxu0 0.0
    %1175 = vmatpush1.msra.mxu0 0.0
    %1176 = vmatprep.mubr.f32.mxu0 0.0
    %1177 = vmatmul.mubr.f32.gmra.mrb[0].mxu0 %v1110
    %v1178 = vpop.f32.mrb[0].mxu0
    %v1179 = vadd.f32 0.0, %v1178
    %v1180 = vpop.f32.mrb[0].mxu0
    %1181 = vdwg.mxu0
    %1183 = vrot.lane.b32.xlu0 %v1179, 32
    %v1184 = vpop.permute.xlu0 %1183
    %v1186 = vadd.f32 %v1026, %v1184
    %v1187 = vtanh.pop %v1186
    %1188 = vrot.lane.b32.xlu0 %v1027, 16
    %v1189 = vpop.permute.xlu0 %1188
    %v1191 = vmul.f32 %v1107, %v1189
    %v1192 = vsub.f32 1.0, %v1107
    %1194 = vrot.lane.b32.xlu0 %v1187, 112
    %v1195 = vpop.permute.xlu0 %1194
    %v1197 = vmul.f32 %v1192, %v1195
    %v1198 = vadd.f32 %v1191, %v1197
    %1200 = vrot.lane.b32.xlu0 %v1198, 112
    %v1201 = vpop.permute.xlu0 %1200
    %1203 = vst.msk [vmem:[#allocation3] sm:$0x3] %vm290, %v1201
    %s1204 = scalar_lea.vmem [#allocation13], 10
    %1205 = vst.msk [vmem:[%s1204] sm:$0x3] %vm290, %v1201
    %s1206 = scalar_lea.vmem [#allocation4], 6
    %v1207 = vld [vmem:[%s1206] sm:$0x3]
    %v1208 = vld [vmem:[#allocation2] sm:$0x3]
    %v1210 = vsel %vm106, %v1208, 0
    %1212 = vmatprep.subr.mxu0 0.0
    %1213 = vmatpush1.msra.mxu0 %v100
    %1214 = vmatprep.subr.mxu0 0.0
    %1215 = vmatpush1.msra.mxu0 %v101
    %1216 = vmatprep.subr.mxu0 0.0
    %1217 = vmatpush1.msra.mxu0 0.0
    %1218 = vmatprep.subr.mxu0 0.0
    %1219 = vmatpush1.msra.mxu0 0.0
    %1220 = vmatprep.subr.mxu0 0.0
    %1221 = vmatpush1.msra.mxu0 0.0
    %1222 = vmatprep.subr.mxu0 0.0
    %1223 = vmatpush1.msra.mxu0 0.0
    %1224 = vmatprep.subr.mxu0 0.0
    %1225 = vmatpush1.msra.mxu0 0.0
    %1226 = vmatprep.subr.mxu0 0.0
    %1227 = vmatpush1.msra.mxu0 0.0
    %1228 = vmatprep.subr.mxu0 0.0
    %1229 = vmatpush1.msra.mxu0 0.0
    %1230 = vmatprep.subr.mxu0 0.0
    %1231 = vmatpush1.msra.mxu0 0.0
    %1232 = vmatprep.subr.mxu0 0.0
    %1233 = vmatpush1.msra.mxu0 0.0
    %1234 = vmatprep.subr.mxu0 0.0
    %1235 = vmatpush1.msra.mxu0 0.0
    %1236 = vmatprep.subr.mxu0 0.0
    %1237 = vmatpush1.msra.mxu0 0.0
    %1238 = vmatprep.subr.mxu0 0.0
    %1239 = vmatpush1.msra.mxu0 0.0
    %1240 = vmatprep.subr.mxu0 0.0
    %1241 = vmatpush1.msra.mxu0 0.0
    %1242 = vmatprep.subr.mxu0 0.0
    %1243 = vmatpush1.msra.mxu0 0.0
    %1244 = vmatprep.subr.mxu0 0.0
    %1245 = vmatpush1.msra.mxu0 0.0
    %1246 = vmatprep.subr.mxu0 0.0
    %1247 = vmatpush1.msra.mxu0 0.0
    %1248 = vmatprep.subr.mxu0 0.0
    %1249 = vmatpush1.msra.mxu0 0.0
    %1250 = vmatprep.subr.mxu0 0.0
    %1251 = vmatpush1.msra.mxu0 0.0
    %1252 = vmatprep.subr.mxu0 0.0
    %1253 = vmatpush1.msra.mxu0 0.0
    %1254 = vmatprep.subr.mxu0 0.0
    %1255 = vmatpush1.msra.mxu0 0.0
    %1256 = vmatprep.subr.mxu0 0.0
    %1257 = vmatpush1.msra.mxu0 0.0
    %1258 = vmatprep.subr.mxu0 0.0
    %1259 = vmatpush1.msra.mxu0 0.0
    %1260 = vmatprep.subr.mxu0 0.0
    %1261 = vmatpush1.msra.mxu0 0.0
    %1262 = vmatprep.subr.mxu0 0.0
    %1263 = vmatpush1.msra.mxu0 0.0
    %1264 = vmatprep.subr.mxu0 0.0
    %1265 = vmatpush1.msra.mxu0 0.0
    %1266 = vmatprep.subr.mxu0 0.0
    %1267 = vmatpush1.msra.mxu0 0.0
    %1268 = vmatprep.subr.mxu0 0.0
    %1269 = vmatpush1.msra.mxu0 0.0
    %1270 = vmatprep.subr.mxu0 0.0
    %1271 = vmatpush1.msra.mxu0 0.0
    %1272 = vmatprep.subr.mxu0 0.0
    %1273 = vmatpush1.msra.mxu0 0.0
    %1274 = vmatprep.subr.mxu0 0.0
    %1275 = vmatpush1.msra.mxu0 0.0
    %1276 = vmatprep.mubr.f32.mxu0 0.0
    %1277 = vmatmul.mubr.f32.gmra.mrb[0].mxu0 %v1210
    %v1278 = vpop.f32.mrb[0].mxu0
    %v1279 = vadd.f32 0.0, %v1278
    %v1280 = vpop.f32.mrb[0].mxu0
    %1281 = vdwg.mxu0
    %v1282 = vadd.f32 %v1207, %v1279
    %v1283 = vxor.u32 %v1282, 2147483648
    %v1284 = vmul.f32 %v1283, 1.442695
    %v1285 = vpow.pop %v1284
    %v1286 = vadd.f32 %v1285, 1.0
    %v1287 = vrcp.pop %v1286
    %v1288 = vmul.f32 1.0, %v1287
    %v1289 = vmul.f32 %v1288, %v1208
    %v1291 = vsel %vm106, %v1289, 0
    %1293 = vmatprep.subr.mxu0 0.0
    %1294 = vmatpush1.msra.mxu0 %v191
    %1295 = vmatprep.subr.mxu0 0.0
    %1296 = vmatpush1.msra.mxu0 %v193
    %1297 = vmatprep.subr.mxu0 0.0
    %1298 = vmatpush1.msra.mxu0 0.0
    %1299 = vmatprep.subr.mxu0 0.0
    %1300 = vmatpush1.msra.mxu0 0.0
    %1301 = vmatprep.subr.mxu0 0.0
    %1302 = vmatpush1.msra.mxu0 0.0
    %1303 = vmatprep.subr.mxu0 0.0
    %1304 = vmatpush1.msra.mxu0 0.0
    %1305 = vmatprep.subr.mxu0 0.0
    %1306 = vmatpush1.msra.mxu0 0.0
    %1307 = vmatprep.subr.mxu0 0.0
    %1308 = vmatpush1.msra.mxu0 0.0
    %1309 = vmatprep.subr.mxu0 0.0
    %1310 = vmatpush1.msra.mxu0 0.0
    %1311 = vmatprep.subr.mxu0 0.0
    %1312 = vmatpush1.msra.mxu0 0.0
    %1313 = vmatprep.subr.mxu0 0.0
    %1314 = vmatpush1.msra.mxu0 0.0
    %1315 = vmatprep.subr.mxu0 0.0
    %1316 = vmatpush1.msra.mxu0 0.0
    %1317 = vmatprep.subr.mxu0 0.0
    %1318 = vmatpush1.msra.mxu0 0.0
    %1319 = vmatprep.subr.mxu0 0.0
    %1320 = vmatpush1.msra.mxu0 0.0
    %1321 = vmatprep.subr.mxu0 0.0
    %1322 = vmatpush1.msra.mxu0 0.0
    %1323 = vmatprep.subr.mxu0 0.0
    %1324 = vmatpush1.msra.mxu0 0.0
    %1325 = vmatprep.subr.mxu0 0.0
    %1326 = vmatpush1.msra.mxu0 0.0
    %1327 = vmatprep.subr.mxu0 0.0
    %1328 = vmatpush1.msra.mxu0 0.0
    %1329 = vmatprep.subr.mxu0 0.0
    %1330 = vmatpush1.msra.mxu0 0.0
    %1331 = vmatprep.subr.mxu0 0.0
    %1332 = vmatpush1.msra.mxu0 0.0
    %1333 = vmatprep.subr.mxu0 0.0
    %1334 = vmatpush1.msra.mxu0 0.0
    %1335 = vmatprep.subr.mxu0 0.0
    %1336 = vmatpush1.msra.mxu0 0.0
    %1337 = vmatprep.subr.mxu0 0.0
    %1338 = vmatpush1.msra.mxu0 0.0
    %1339 = vmatprep.subr.mxu0 0.0
    %1340 = vmatpush1.msra.mxu0 0.0
    %1341 = vmatprep.subr.mxu0 0.0
    %1342 = vmatpush1.msra.mxu0 0.0
    %1343 = vmatprep.subr.mxu0 0.0
    %1344 = vmatpush1.msra.mxu0 0.0
    %1345 = vmatprep.subr.mxu0 0.0
    %1346 = vmatpush1.msra.mxu0 0.0
    %1347 = vmatprep.subr.mxu0 0.0
    %1348 = vmatpush1.msra.mxu0 0.0
    %1349 = vmatprep.subr.mxu0 0.0
    %1350 = vmatpush1.msra.mxu0 0.0
    %1351 = vmatprep.subr.mxu0 0.0
    %1352 = vmatpush1.msra.mxu0 0.0
    %1353 = vmatprep.subr.mxu0 0.0
    %1354 = vmatpush1.msra.mxu0 0.0
    %1355 = vmatprep.subr.mxu0 0.0
    %1356 = vmatpush1.msra.mxu0 0.0
    %1357 = vmatprep.mubr.f32.mxu0 0.0
    %1358 = vmatmul.mubr.f32.gmra.mrb[0].mxu0 %v1291
    %v1359 = vpop.f32.mrb[0].mxu0
    %v1360 = vadd.f32 0.0, %v1359
    %v1361 = vpop.f32.mrb[0].mxu0
    %1362 = vdwg.mxu0
    %1364 = vrot.lane.b32.xlu0 %v1360, 32
    %v1365 = vpop.permute.xlu0 %1364
    %v1367 = vadd.f32 %v1207, %v1365
    %v1368 = vtanh.pop %v1367
    %1369 = vrot.lane.b32.xlu0 %v1208, 16
    %v1370 = vpop.permute.xlu0 %1369
    %v1372 = vmul.f32 %v1288, %v1370
    %v1373 = vsub.f32 1.0, %v1288
    %1375 = vrot.lane.b32.xlu0 %v1368, 112
    %v1376 = vpop.permute.xlu0 %1375
    %v1378 = vmul.f32 %v1373, %v1376
    %v1379 = vadd.f32 %v1372, %v1378
    %1381 = vrot.lane.b32.xlu0 %v1379, 112
    %v1382 = vpop.permute.xlu0 %1381
    %1384 = vst.msk [vmem:[#allocation2] sm:$0x3] %vm290, %v1382
    %s1385 = scalar_lea.vmem [#allocation12], 6
    %1386 = vst.msk [vmem:[%s1385] sm:$0x3] %vm290, %v1382
    %s1387 = scalar_lea.vmem [#allocation7], 8
    %v1388 = vld [vmem:[%s1387] sm:$0x3]
    %v1389 = vld [vmem:[#allocation3] sm:$0x3]
    %v1391 = vsel %vm106, %v1389, 0
    %1393 = vmatprep.subr.mxu0 0.0
    %1394 = vmatpush1.msra.mxu0 %v102
    %1395 = vmatprep.subr.mxu0 0.0
    %1396 = vmatpush1.msra.mxu0 %v103
    %1397 = vmatprep.subr.mxu0 0.0
    %1398 = vmatpush1.msra.mxu0 0.0
    %1399 = vmatprep.subr.mxu0 0.0
    %1400 = vmatpush1.msra.mxu0 0.0
    %1401 = vmatprep.subr.mxu0 0.0
    %1402 = vmatpush1.msra.mxu0 0.0
    %1403 = vmatprep.subr.mxu0 0.0
    %1404 = vmatpush1.msra.mxu0 0.0
    %1405 = vmatprep.subr.mxu0 0.0
    %1406 = vmatpush1.msra.mxu0 0.0
    %1407 = vmatprep.subr.mxu0 0.0
    %1408 = vmatpush1.msra.mxu0 0.0
    %1409 = vmatprep.subr.mxu0 0.0
    %1410 = vmatpush1.msra.mxu0 0.0
    %1411 = vmatprep.subr.mxu0 0.0
    %1412 = vmatpush1.msra.mxu0 0.0
    %1413 = vmatprep.subr.mxu0 0.0
    %1414 = vmatpush1.msra.mxu0 0.0
    %1415 = vmatprep.subr.mxu0 0.0
    %1416 = vmatpush1.msra.mxu0 0.0
    %1417 = vmatprep.subr.mxu0 0.0
    %1418 = vmatpush1.msra.mxu0 0.0
    %1419 = vmatprep.subr.mxu0 0.0
    %1420 = vmatpush1.msra.mxu0 0.0
    %1421 = vmatprep.subr.mxu0 0.0
    %1422 = vmatpush1.msra.mxu0 0.0
    %1423 = vmatprep.subr.mxu0 0.0
    %1424 = vmatpush1.msra.mxu0 0.0
    %1425 = vmatprep.subr.mxu0 0.0
    %1426 = vmatpush1.msra.mxu0 0.0
    %1427 = vmatprep.subr.mxu0 0.0
    %1428 = vmatpush1.msra.mxu0 0.0
    %1429 = vmatprep.subr.mxu0 0.0
    %1430 = vmatpush1.msra.mxu0 0.0
    %1431 = vmatprep.subr.mxu0 0.0
    %1432 = vmatpush1.msra.mxu0 0.0
    %1433 = vmatprep.subr.mxu0 0.0
    %1434 = vmatpush1.msra.mxu0 0.0
    %1435 = vmatprep.subr.mxu0 0.0
    %1436 = vmatpush1.msra.mxu0 0.0
    %1437 = vmatprep.subr.mxu0 0.0
    %1438 = vmatpush1.msra.mxu0 0.0
    %1439 = vmatprep.subr.mxu0 0.0
    %1440 = vmatpush1.msra.mxu0 0.0
    %1441 = vmatprep.subr.mxu0 0.0
    %1442 = vmatpush1.msra.mxu0 0.0
    %1443 = vmatprep.subr.mxu0 0.0
    %1444 = vmatpush1.msra.mxu0 0.0
    %1445 = vmatprep.subr.mxu0 0.0
    %1446 = vmatpush1.msra.mxu0 0.0
    %1447 = vmatprep.subr.mxu0 0.0
    %1448 = vmatpush1.msra.mxu0 0.0
    %1449 = vmatprep.subr.mxu0 0.0
    %1450 = vmatpush1.msra.mxu0 0.0
    %1451 = vmatprep.subr.mxu0 0.0
    %1452 = vmatpush1.msra.mxu0 0.0
    %1453 = vmatprep.subr.mxu0 0.0
    %1454 = vmatpush1.msra.mxu0 0.0
    %1455 = vmatprep.subr.mxu0 0.0
    %1456 = vmatpush1.msra.mxu0 0.0
    %1457 = vmatprep.mubr.f32.mxu0 0.0
    %1458 = vmatmul.mubr.f32.gmra.mrb[0].mxu0 %v1391
    %v1459 = vpop.f32.mrb[0].mxu0
    %v1460 = vadd.f32 0.0, %v1459
    %v1461 = vpop.f32.mrb[0].mxu0
    %1462 = vdwg.mxu0
    %v1463 = vadd.f32 %v1388, %v1460
    %v1464 = vxor.u32 %v1463, 2147483648
    %v1465 = vmul.f32 %v1464, 1.442695
    %v1466 = vpow.pop %v1465
    %v1467 = vadd.f32 %v1466, 1.0
    %v1468 = vrcp.pop %v1467
    %v1469 = vmul.f32 1.0, %v1468
    %v1470 = vmul.f32 %v1469, %v1389
    %v1472 = vsel %vm106, %v1470, 0
    %1474 = vmatprep.subr.mxu0 0.0
    %1475 = vmatpush1.msra.mxu0 %v380
    %1476 = vmatprep.subr.mxu0 0.0
    %1477 = vmatpush1.msra.mxu0 %v382
    %1478 = vmatprep.subr.mxu0 0.0
    %1479 = vmatpush1.msra.mxu0 0.0
    %1480 = vmatprep.subr.mxu0 0.0
    %1481 = vmatpush1.msra.mxu0 0.0
    %1482 = vmatprep.subr.mxu0 0.0
    %1483 = vmatpush1.msra.mxu0 0.0
    %1484 = vmatprep.subr.mxu0 0.0
    %1485 = vmatpush1.msra.mxu0 0.0
    %1486 = vmatprep.subr.mxu0 0.0
    %1487 = vmatpush1.msra.mxu0 0.0
    %1488 = vmatprep.subr.mxu0 0.0
    %1489 = vmatpush1.msra.mxu0 0.0
    %1490 = vmatprep.subr.mxu0 0.0
    %1491 = vmatpush1.msra.mxu0 0.0
    %1492 = vmatprep.subr.mxu0 0.0
    %1493 = vmatpush1.msra.mxu0 0.0
    %1494 = vmatprep.subr.mxu0 0.0
    %1495 = vmatpush1.msra.mxu0 0.0
    %1496 = vmatprep.subr.mxu0 0.0
    %1497 = vmatpush1.msra.mxu0 0.0
    %1498 = vmatprep.subr.mxu0 0.0
    %1499 = vmatpush1.msra.mxu0 0.0
    %1500 = vmatprep.subr.mxu0 0.0
    %1501 = vmatpush1.msra.mxu0 0.0
    %1502 = vmatprep.subr.mxu0 0.0
    %1503 = vmatpush1.msra.mxu0 0.0
    %1504 = vmatprep.subr.mxu0 0.0
    %1505 = vmatpush1.msra.mxu0 0.0
    %1506 = vmatprep.subr.mxu0 0.0
    %1507 = vmatpush1.msra.mxu0 0.0
    %1508 = vmatprep.subr.mxu0 0.0
    %1509 = vmatpush1.msra.mxu0 0.0
    %1510 = vmatprep.subr.mxu0 0.0
    %1511 = vmatpush1.msra.mxu0 0.0
    %1512 = vmatprep.subr.mxu0 0.0
    %1513 = vmatpush1.msra.mxu0 0.0
    %1514 = vmatprep.subr.mxu0 0.0
    %1515 = vmatpush1.msra.mxu0 0.0
    %1516 = vmatprep.subr.mxu0 0.0
    %1517 = vmatpush1.msra.mxu0 0.0
    %1518 = vmatprep.subr.mxu0 0.0
    %1519 = vmatpush1.msra.mxu0 0.0
    %1520 = vmatprep.subr.mxu0 0.0
    %1521 = vmatpush1.msra.mxu0 0.0
    %1522 = vmatprep.subr.mxu0 0.0
    %1523 = vmatpush1.msra.mxu0 0.0
    %1524 = vmatprep.subr.mxu0 0.0
    %1525 = vmatpush1.msra.mxu0 0.0
    %1526 = vmatprep.subr.mxu0 0.0
    %1527 = vmatpush1.msra.mxu0 0.0
    %1528 = vmatprep.subr.mxu0 0.0
    %1529 = vmatpush1.msra.mxu0 0.0
    %1530 = vmatprep.subr.mxu0 0.0
    %1531 = vmatpush1.msra.mxu0 0.0
    %1532 = vmatprep.subr.mxu0 0.0
    %1533 = vmatpush1.msra.mxu0 0.0
    %1534 = vmatprep.subr.mxu0 0.0
    %1535 = vmatpush1.msra.mxu0 0.0
    %1536 = vmatprep.subr.mxu0 0.0
    %1537 = vmatpush1.msra.mxu0 0.0
    %1538 = vmatprep.mubr.f32.mxu0 0.0
    %1539 = vmatmul.mubr.f32.gmra.mrb[0].mxu0 %v1472
    %v1540 = vpop.f32.mrb[0].mxu0
    %v1541 = vadd.f32 0.0, %v1540
    %v1542 = vpop.f32.mrb[0].mxu0
    %1543 = vdwg.mxu0
    %1545 = vrot.lane.b32.xlu0 %v1541, 32
    %v1546 = vpop.permute.xlu0 %1545
    %v1548 = vadd.f32 %v1388, %v1546
    %v1549 = vtanh.pop %v1548
    %1550 = vrot.lane.b32.xlu0 %v1389, 16
    %v1551 = vpop.permute.xlu0 %1550
    %v1553 = vmul.f32 %v1469, %v1551
    %v1554 = vsub.f32 1.0, %v1469
    %1556 = vrot.lane.b32.xlu0 %v1549, 112
    %v1557 = vpop.permute.xlu0 %1556
    %v1559 = vmul.f32 %v1554, %v1557
    %v1560 = vadd.f32 %v1553, %v1559
    %1562 = vrot.lane.b32.xlu0 %v1560, 112
    %v1563 = vpop.permute.xlu0 %1562
    %1565 = vst.msk [vmem:[#allocation3] sm:$0x3] %vm290, %v1563
    %s1566 = scalar_lea.vmem [#allocation13], 8
    %1567 = vst.msk [vmem:[%s1566] sm:$0x3] %vm290, %v1563
    %s1568 = scalar_lea.vmem [#allocation4], 8
    %v1569 = vld [vmem:[%s1568] sm:$0x3]
    %v1570 = vld [vmem:[#allocation2] sm:$0x3]
    %v1572 = vsel %vm106, %v1570, 0
    %1574 = vmatprep.subr.mxu0 0.0
    %1575 = vmatpush1.msra.mxu0 %v100
    %1576 = vmatprep.subr.mxu0 0.0
    %1577 = vmatpush1.msra.mxu0 %v101
    %1578 = vmatprep.subr.mxu0 0.0
    %1579 = vmatpush1.msra.mxu0 0.0
    %1580 = vmatprep.subr.mxu0 0.0
    %1581 = vmatpush1.msra.mxu0 0.0
    %1582 = vmatprep.subr.mxu0 0.0
    %1583 = vmatpush1.msra.mxu0 0.0
    %1584 = vmatprep.subr.mxu0 0.0
    %1585 = vmatpush1.msra.mxu0 0.0
    %1586 = vmatprep.subr.mxu0 0.0
    %1587 = vmatpush1.msra.mxu0 0.0
    %1588 = vmatprep.subr.mxu0 0.0
    %1589 = vmatpush1.msra.mxu0 0.0
    %1590 = vmatprep.subr.mxu0 0.0
    %1591 = vmatpush1.msra.mxu0 0.0
    %1592 = vmatprep.subr.mxu0 0.0
    %1593 = vmatpush1.msra.mxu0 0.0
    %1594 = vmatprep.subr.mxu0 0.0
    %1595 = vmatpush1.msra.mxu0 0.0
    %1596 = vmatprep.subr.mxu0 0.0
    %1597 = vmatpush1.msra.mxu0 0.0
    %1598 = vmatprep.subr.mxu0 0.0
    %1599 = vmatpush1.msra.mxu0 0.0
    %1600 = vmatprep.subr.mxu0 0.0
    %1601 = vmatpush1.msra.mxu0 0.0
    %1602 = vmatprep.subr.mxu0 0.0
    %1603 = vmatpush1.msra.mxu0 0.0
    %1604 = vmatprep.subr.mxu0 0.0
    %1605 = vmatpush1.msra.mxu0 0.0
    %1606 = vmatprep.subr.mxu0 0.0
    %1607 = vmatpush1.msra.mxu0 0.0
    %1608 = vmatprep.subr.mxu0 0.0
    %1609 = vmatpush1.msra.mxu0 0.0
    %1610 = vmatprep.subr.mxu0 0.0
    %1611 = vmatpush1.msra.mxu0 0.0
    %1612 = vmatprep.subr.mxu0 0.0
    %1613 = vmatpush1.msra.mxu0 0.0
    %1614 = vmatprep.subr.mxu0 0.0
    %1615 = vmatpush1.msra.mxu0 0.0
    %1616 = vmatprep.subr.mxu0 0.0
    %1617 = vmatpush1.msra.mxu0 0.0
    %1618 = vmatprep.subr.mxu0 0.0
    %1619 = vmatpush1.msra.mxu0 0.0
    %1620 = vmatprep.subr.mxu0 0.0
    %1621 = vmatpush1.msra.mxu0 0.0
    %1622 = vmatprep.subr.mxu0 0.0
    %1623 = vmatpush1.msra.mxu0 0.0
    %1624 = vmatprep.subr.mxu0 0.0
    %1625 = vmatpush1.msra.mxu0 0.0
    %1626 = vmatprep.subr.mxu0 0.0
    %1627 = vmatpush1.msra.mxu0 0.0
    %1628 = vmatprep.subr.mxu0 0.0
    %1629 = vmatpush1.msra.mxu0 0.0
    %1630 = vmatprep.subr.mxu0 0.0
    %1631 = vmatpush1.msra.mxu0 0.0
    %1632 = vmatprep.subr.mxu0 0.0
    %1633 = vmatpush1.msra.mxu0 0.0
    %1634 = vmatprep.subr.mxu0 0.0
    %1635 = vmatpush1.msra.mxu0 0.0
    %1636 = vmatprep.subr.mxu0 0.0
    %1637 = vmatpush1.msra.mxu0 0.0
    %1638 = vmatprep.mubr.f32.mxu0 0.0
    %1639 = vmatmul.mubr.f32.gmra.mrb[0].mxu0 %v1572
    %v1640 = vpop.f32.mrb[0].mxu0
    %v1641 = vadd.f32 0.0, %v1640
    %v1642 = vpop.f32.mrb[0].mxu0
    %1643 = vdwg.mxu0
    %v1644 = vadd.f32 %v1569, %v1641
    %v1645 = vxor.u32 %v1644, 2147483648
    %v1646 = vmul.f32 %v1645, 1.442695
    %v1647 = vpow.pop %v1646
    %v1648 = vadd.f32 %v1647, 1.0
    %v1649 = vrcp.pop %v1648
    %v1650 = vmul.f32 1.0, %v1649
    %v1651 = vmul.f32 %v1650, %v1570
    %v1653 = vsel %vm106, %v1651, 0
    %1655 = vmatprep.subr.mxu0 0.0
    %1656 = vmatpush1.msra.mxu0 %v191
    %1657 = vmatprep.subr.mxu0 0.0
    %1658 = vmatpush1.msra.mxu0 %v193
    %1659 = vmatprep.subr.mxu0 0.0
    %1660 = vmatpush1.msra.mxu0 0.0
    %1661 = vmatprep.subr.mxu0 0.0
    %1662 = vmatpush1.msra.mxu0 0.0
    %1663 = vmatprep.subr.mxu0 0.0
    %1664 = vmatpush1.msra.mxu0 0.0
    %1665 = vmatprep.subr.mxu0 0.0
    %1666 = vmatpush1.msra.mxu0 0.0
    %1667 = vmatprep.subr.mxu0 0.0
    %1668 = vmatpush1.msra.mxu0 0.0
    %1669 = vmatprep.subr.mxu0 0.0
    %1670 = vmatpush1.msra.mxu0 0.0
    %1671 = vmatprep.subr.mxu0 0.0
    %1672 = vmatpush1.msra.mxu0 0.0
    %1673 = vmatprep.subr.mxu0 0.0
    %1674 = vmatpush1.msra.mxu0 0.0
    %1675 = vmatprep.subr.mxu0 0.0
    %1676 = vmatpush1.msra.mxu0 0.0
    %1677 = vmatprep.subr.mxu0 0.0
    %1678 = vmatpush1.msra.mxu0 0.0
    %1679 = vmatprep.subr.mxu0 0.0
    %1680 = vmatpush1.msra.mxu0 0.0
    %1681 = vmatprep.subr.mxu0 0.0
    %1682 = vmatpush1.msra.mxu0 0.0
    %1683 = vmatprep.subr.mxu0 0.0
    %1684 = vmatpush1.msra.mxu0 0.0
    %1685 = vmatprep.subr.mxu0 0.0
    %1686 = vmatpush1.msra.mxu0 0.0
    %1687 = vmatprep.subr.mxu0 0.0
    %1688 = vmatpush1.msra.mxu0 0.0
    %1689 = vmatprep.subr.mxu0 0.0
    %1690 = vmatpush1.msra.mxu0 0.0
    %1691 = vmatprep.subr.mxu0 0.0
    %1692 = vmatpush1.msra.mxu0 0.0
    %1693 = vmatprep.subr.mxu0 0.0
    %1694 = vmatpush1.msra.mxu0 0.0
    %1695 = vmatprep.subr.mxu0 0.0
    %1696 = vmatpush1.msra.mxu0 0.0
    %1697 = vmatprep.subr.mxu0 0.0
    %1698 = vmatpush1.msra.mxu0 0.0
    %1699 = vmatprep.subr.mxu0 0.0
    %1700 = vmatpush1.msra.mxu0 0.0
    %1701 = vmatprep.subr.mxu0 0.0
    %1702 = vmatpush1.msra.mxu0 0.0
    %1703 = vmatprep.subr.mxu0 0.0
    %1704 = vmatpush1.msra.mxu0 0.0
    %1705 = vmatprep.subr.mxu0 0.0
    %1706 = vmatpush1.msra.mxu0 0.0
    %1707 = vmatprep.subr.mxu0 0.0
    %1708 = vmatpush1.msra.mxu0 0.0
    %1709 = vmatprep.subr.mxu0 0.0
    %1710 = vmatpush1.msra.mxu0 0.0
    %1711 = vmatprep.subr.mxu0 0.0
    %1712 = vmatpush1.msra.mxu0 0.0
    %1713 = vmatprep.subr.mxu0 0.0
    %1714 = vmatpush1.msra.mxu0 0.0
    %1715 = vmatprep.subr.mxu0 0.0
    %1716 = vmatpush1.msra.mxu0 0.0
    %1717 = vmatprep.subr.mxu0 0.0
    %1718 = vmatpush1.msra.mxu0 0.0
    %1719 = vmatprep.mubr.f32.mxu0 0.0
    %1720 = vmatmul.mubr.f32.gmra.mrb[0].mxu0 %v1653
    %v1721 = vpop.f32.mrb[0].mxu0
    %v1722 = vadd.f32 0.0, %v1721
    %v1723 = vpop.f32.mrb[0].mxu0
    %1724 = vdwg.mxu0
    %1726 = vrot.lane.b32.xlu0 %v1722, 32
    %v1727 = vpop.permute.xlu0 %1726
    %v1729 = vadd.f32 %v1569, %v1727
    %v1730 = vtanh.pop %v1729
    %1731 = vrot.lane.b32.xlu0 %v1570, 16
    %v1732 = vpop.permute.xlu0 %1731
    %v1734 = vmul.f32 %v1650, %v1732
    %v1735 = vsub.f32 1.0, %v1650
    %1737 = vrot.lane.b32.xlu0 %v1730, 112
    %v1738 = vpop.permute.xlu0 %1737
    %v1740 = vmul.f32 %v1735, %v1738
    %v1741 = vadd.f32 %v1734, %v1740
    %1743 = vrot.lane.b32.xlu0 %v1741, 112
    %v1744 = vpop.permute.xlu0 %1743
    %1746 = vst.msk [vmem:[#allocation2] sm:$0x3] %vm290, %v1744
    %s1747 = scalar_lea.vmem [#allocation12], 8
    %1748 = vst.msk [vmem:[%s1747] sm:$0x3] %vm290, %v1744
    %s1749 = scalar_lea.vmem [#allocation7], 6
    %v1750 = vld [vmem:[%s1749] sm:$0x3]
    %v1751 = vld [vmem:[#allocation3] sm:$0x3]
    %v1753 = vsel %vm106, %v1751, 0
    %1755 = vmatprep.subr.mxu0 0.0
    %1756 = vmatpush1.msra.mxu0 %v102
    %1757 = vmatprep.subr.mxu0 0.0
    %1758 = vmatpush1.msra.mxu0 %v103
    %1759 = vmatprep.subr.mxu0 0.0
    %1760 = vmatpush1.msra.mxu0 0.0
    %1761 = vmatprep.subr.mxu0 0.0
    %1762 = vmatpush1.msra.mxu0 0.0
    %1763 = vmatprep.subr.mxu0 0.0
    %1764 = vmatpush1.msra.mxu0 0.0
    %1765 = vmatprep.subr.mxu0 0.0
    %1766 = vmatpush1.msra.mxu0 0.0
    %1767 = vmatprep.subr.mxu0 0.0
    %1768 = vmatpush1.msra.mxu0 0.0
    %1769 = vmatprep.subr.mxu0 0.0
    %1770 = vmatpush1.msra.mxu0 0.0
    %1771 = vmatprep.subr.mxu0 0.0
    %1772 = vmatpush1.msra.mxu0 0.0
    %1773 = vmatprep.subr.mxu0 0.0
    %1774 = vmatpush1.msra.mxu0 0.0
    %1775 = vmatprep.subr.mxu0 0.0
    %1776 = vmatpush1.msra.mxu0 0.0
    %1777 = vmatprep.subr.mxu0 0.0
    %1778 = vmatpush1.msra.mxu0 0.0
    %1779 = vmatprep.subr.mxu0 0.0
    %1780 = vmatpush1.msra.mxu0 0.0
    %1781 = vmatprep.subr.mxu0 0.0
    %1782 = vmatpush1.msra.mxu0 0.0
    %1783 = vmatprep.subr.mxu0 0.0
    %1784 = vmatpush1.msra.mxu0 0.0
    %1785 = vmatprep.subr.mxu0 0.0
    %1786 = vmatpush1.msra.mxu0 0.0
    %1787 = vmatprep.subr.mxu0 0.0
    %1788 = vmatpush1.msra.mxu0 0.0
    %1789 = vmatprep.subr.mxu0 0.0
    %1790 = vmatpush1.msra.mxu0 0.0
    %1791 = vmatprep.subr.mxu0 0.0
    %1792 = vmatpush1.msra.mxu0 0.0
    %1793 = vmatprep.subr.mxu0 0.0
    %1794 = vmatpush1.msra.mxu0 0.0
    %1795 = vmatprep.subr.mxu0 0.0
    %1796 = vmatpush1.msra.mxu0 0.0
    %1797 = vmatprep.subr.mxu0 0.0
    %1798 = vmatpush1.msra.mxu0 0.0
    %1799 = vmatprep.subr.mxu0 0.0
    %1800 = vmatpush1.msra.mxu0 0.0
    %1801 = vmatprep.subr.mxu0 0.0
    %1802 = vmatpush1.msra.mxu0 0.0
    %1803 = vmatprep.subr.mxu0 0.0
    %1804 = vmatpush1.msra.mxu0 0.0
    %1805 = vmatprep.subr.mxu0 0.0
    %1806 = vmatpush1.msra.mxu0 0.0
    %1807 = vmatprep.subr.mxu0 0.0
    %1808 = vmatpush1.msra.mxu0 0.0
    %1809 = vmatprep.subr.mxu0 0.0
    %1810 = vmatpush1.msra.mxu0 0.0
    %1811 = vmatprep.subr.mxu0 0.0
    %1812 = vmatpush1.msra.mxu0 0.0
    %1813 = vmatprep.subr.mxu0 0.0
    %1814 = vmatpush1.msra.mxu0 0.0
    %1815 = vmatprep.subr.mxu0 0.0
    %1816 = vmatpush1.msra.mxu0 0.0
    %1817 = vmatprep.subr.mxu0 0.0
    %1818 = vmatpush1.msra.mxu0 0.0
    %1819 = vmatprep.mubr.f32.mxu0 0.0
    %1820 = vmatmul.mubr.f32.gmra.mrb[0].mxu0 %v1753
    %v1821 = vpop.f32.mrb[0].mxu0
    %v1822 = vadd.f32 0.0, %v1821
    %v1823 = vpop.f32.mrb[0].mxu0
    %1824 = vdwg.mxu0
    %v1825 = vadd.f32 %v1750, %v1822
    %v1826 = vxor.u32 %v1825, 2147483648
    %v1827 = vmul.f32 %v1826, 1.442695
    %v1828 = vpow.pop %v1827
    %v1829 = vadd.f32 %v1828, 1.0
    %v1830 = vrcp.pop %v1829
    %v1831 = vmul.f32 1.0, %v1830
    %v1832 = vmul.f32 %v1831, %v1751
    %v1834 = vsel %vm106, %v1832, 0
    %1836 = vmatprep.subr.mxu0 0.0
    %1837 = vmatpush1.msra.mxu0 %v380
    %1838 = vmatprep.subr.mxu0 0.0
    %1839 = vmatpush1.msra.mxu0 %v382
    %1840 = vmatprep.subr.mxu0 0.0
    %1841 = vmatpush1.msra.mxu0 0.0
    %1842 = vmatprep.subr.mxu0 0.0
    %1843 = vmatpush1.msra.mxu0 0.0
    %1844 = vmatprep.subr.mxu0 0.0
    %1845 = vmatpush1.msra.mxu0 0.0
    %1846 = vmatprep.subr.mxu0 0.0
    %1847 = vmatpush1.msra.mxu0 0.0
    %1848 = vmatprep.subr.mxu0 0.0
    %1849 = vmatpush1.msra.mxu0 0.0
    %1850 = vmatprep.subr.mxu0 0.0
    %1851 = vmatpush1.msra.mxu0 0.0
    %1852 = vmatprep.subr.mxu0 0.0
    %1853 = vmatpush1.msra.mxu0 0.0
    %1854 = vmatprep.subr.mxu0 0.0
    %1855 = vmatpush1.msra.mxu0 0.0
    %1856 = vmatprep.subr.mxu0 0.0
    %1857 = vmatpush1.msra.mxu0 0.0
    %1858 = vmatprep.subr.mxu0 0.0
    %1859 = vmatpush1.msra.mxu0 0.0
    %1860 = vmatprep.subr.mxu0 0.0
    %1861 = vmatpush1.msra.mxu0 0.0
    %1862 = vmatprep.subr.mxu0 0.0
    %1863 = vmatpush1.msra.mxu0 0.0
    %1864 = vmatprep.subr.mxu0 0.0
    %1865 = vmatpush1.msra.mxu0 0.0
    %1866 = vmatprep.subr.mxu0 0.0
    %1867 = vmatpush1.msra.mxu0 0.0
    %1868 = vmatprep.subr.mxu0 0.0
    %1869 = vmatpush1.msra.mxu0 0.0
    %1870 = vmatprep.subr.mxu0 0.0
    %1871 = vmatpush1.msra.mxu0 0.0
    %1872 = vmatprep.subr.mxu0 0.0
    %1873 = vmatpush1.msra.mxu0 0.0
    %1874 = vmatprep.subr.mxu0 0.0
    %1875 = vmatpush1.msra.mxu0 0.0
    %1876 = vmatprep.subr.mxu0 0.0
    %1877 = vmatpush1.msra.mxu0 0.0
    %1878 = vmatprep.subr.mxu0 0.0
    %1879 = vmatpush1.msra.mxu0 0.0
    %1880 = vmatprep.subr.mxu0 0.0
    %1881 = vmatpush1.msra.mxu0 0.0
    %1882 = vmatprep.subr.mxu0 0.0
    %1883 = vmatpush1.msra.mxu0 0.0
    %1884 = vmatprep.subr.mxu0 0.0
    %1885 = vmatpush1.msra.mxu0 0.0
    %1886 = vmatprep.subr.mxu0 0.0
    %1887 = vmatpush1.msra.mxu0 0.0
    %1888 = vmatprep.subr.mxu0 0.0
    %1889 = vmatpush1.msra.mxu0 0.0
    %1890 = vmatprep.subr.mxu0 0.0
    %1891 = vmatpush1.msra.mxu0 0.0
    %1892 = vmatprep.subr.mxu0 0.0
    %1893 = vmatpush1.msra.mxu0 0.0
    %1894 = vmatprep.subr.mxu0 0.0
    %1895 = vmatpush1.msra.mxu0 0.0
    %1896 = vmatprep.subr.mxu0 0.0
    %1897 = vmatpush1.msra.mxu0 0.0
    %1898 = vmatprep.subr.mxu0 0.0
    %1899 = vmatpush1.msra.mxu0 0.0
    %1900 = vmatprep.mubr.f32.mxu0 0.0
    %1901 = vmatmul.mubr.f32.gmra.mrb[0].mxu0 %v1834
    %v1902 = vpop.f32.mrb[0].mxu0
    %v1903 = vadd.f32 0.0, %v1902
    %v1904 = vpop.f32.mrb[0].mxu0
    %1905 = vdwg.mxu0
    %1907 = vrot.lane.b32.xlu0 %v1903, 32
    %v1908 = vpop.permute.xlu0 %1907
    %v1910 = vadd.f32 %v1750, %v1908
    %v1911 = vtanh.pop %v1910
    %1912 = vrot.lane.b32.xlu0 %v1751, 16
    %v1913 = vpop.permute.xlu0 %1912
    %v1915 = vmul.f32 %v1831, %v1913
    %v1916 = vsub.f32 1.0, %v1831
    %1918 = vrot.lane.b32.xlu0 %v1911, 112
    %v1919 = vpop.permute.xlu0 %1918
    %v1921 = vmul.f32 %v1916, %v1919
    %v1922 = vadd.f32 %v1915, %v1921
    %1924 = vrot.lane.b32.xlu0 %v1922, 112
    %v1925 = vpop.permute.xlu0 %1924
    %1927 = vst.msk [vmem:[#allocation3] sm:$0x3] %vm290, %v1925
    %s1928 = scalar_lea.vmem [#allocation13], 6
    %1929 = vst.msk [vmem:[%s1928] sm:$0x3] %vm290, %v1925
    %s1930 = scalar_lea.vmem [#allocation4], 10
    %v1931 = vld [vmem:[%s1930] sm:$0x3]
    %v1932 = vld [vmem:[#allocation2] sm:$0x3]
    %v1934 = vsel %vm106, %v1932, 0
    %1936 = vmatprep.subr.mxu0 0.0
    %1937 = vmatpush1.msra.mxu0 %v100
    %1938 = vmatprep.subr.mxu0 0.0
    %1939 = vmatpush1.msra.mxu0 %v101
    %1940 = vmatprep.subr.mxu0 0.0
    %1941 = vmatpush1.msra.mxu0 0.0
    %1942 = vmatprep.subr.mxu0 0.0
    %1943 = vmatpush1.msra.mxu0 0.0
    %1944 = vmatprep.subr.mxu0 0.0
    %1945 = vmatpush1.msra.mxu0 0.0
    %1946 = vmatprep.subr.mxu0 0.0
    %1947 = vmatpush1.msra.mxu0 0.0
    %1948 = vmatprep.subr.mxu0 0.0
    %1949 = vmatpush1.msra.mxu0 0.0
    %1950 = vmatprep.subr.mxu0 0.0
    %1951 = vmatpush1.msra.mxu0 0.0
    %1952 = vmatprep.subr.mxu0 0.0
    %1953 = vmatpush1.msra.mxu0 0.0
    %1954 = vmatprep.subr.mxu0 0.0
    %1955 = vmatpush1.msra.mxu0 0.0
    %1956 = vmatprep.subr.mxu0 0.0
    %1957 = vmatpush1.msra.mxu0 0.0
    %1958 = vmatprep.subr.mxu0 0.0
    %1959 = vmatpush1.msra.mxu0 0.0
    %1960 = vmatprep.subr.mxu0 0.0
    %1961 = vmatpush1.msra.mxu0 0.0
    %1962 = vmatprep.subr.mxu0 0.0
    %1963 = vmatpush1.msra.mxu0 0.0
    %1964 = vmatprep.subr.mxu0 0.0
    %1965 = vmatpush1.msra.mxu0 0.0
    %1966 = vmatprep.subr.mxu0 0.0
    %1967 = vmatpush1.msra.mxu0 0.0
    %1968 = vmatprep.subr.mxu0 0.0
    %1969 = vmatpush1.msra.mxu0 0.0
    %1970 = vmatprep.subr.mxu0 0.0
    %1971 = vmatpush1.msra.mxu0 0.0
    %1972 = vmatprep.subr.mxu0 0.0
    %1973 = vmatpush1.msra.mxu0 0.0
    %1974 = vmatprep.subr.mxu0 0.0
    %1975 = vmatpush1.msra.mxu0 0.0
    %1976 = vmatprep.subr.mxu0 0.0
    %1977 = vmatpush1.msra.mxu0 0.0
    %1978 = vmatprep.subr.mxu0 0.0
    %1979 = vmatpush1.msra.mxu0 0.0
    %1980 = vmatprep.subr.mxu0 0.0
    %1981 = vmatpush1.msra.mxu0 0.0
    %1982 = vmatprep.subr.mxu0 0.0
    %1983 = vmatpush1.msra.mxu0 0.0
    %1984 = vmatprep.subr.mxu0 0.0
    %1985 = vmatpush1.msra.mxu0 0.0
    %1986 = vmatprep.subr.mxu0 0.0
    %1987 = vmatpush1.msra.mxu0 0.0
    %1988 = vmatprep.subr.mxu0 0.0
    %1989 = vmatpush1.msra.mxu0 0.0
    %1990 = vmatprep.subr.mxu0 0.0
    %1991 = vmatpush1.msra.mxu0 0.0
    %1992 = vmatprep.subr.mxu0 0.0
    %1993 = vmatpush1.msra.mxu0 0.0
    %1994 = vmatprep.subr.mxu0 0.0
    %1995 = vmatpush1.msra.mxu0 0.0
    %1996 = vmatprep.subr.mxu0 0.0
    %1997 = vmatpush1.msra.mxu0 0.0
    %1998 = vmatprep.subr.mxu0 0.0
    %1999 = vmatpush1.msra.mxu0 0.0
    %2000 = vmatprep.mubr.f32.mxu0 0.0
    %2001 = vmatmul.mubr.f32.gmra.mrb[0].mxu0 %v1934
    %v2002 = vpop.f32.mrb[0].mxu0
    %v2003 = vadd.f32 0.0, %v2002
    %v2004 = vpop.f32.mrb[0].mxu0
    %2005 = vdwg.mxu0
    %v2006 = vadd.f32 %v1931, %v2003
    %v2007 = vxor.u32 %v2006, 2147483648
    %v2008 = vmul.f32 %v2007, 1.442695
    %v2009 = vpow.pop %v2008
    %v2010 = vadd.f32 %v2009, 1.0
    %v2011 = vrcp.pop %v2010
    %v2012 = vmul.f32 1.0, %v2011
    %v2013 = vmul.f32 %v2012, %v1932
    %v2015 = vsel %vm106, %v2013, 0
    %2017 = vmatprep.subr.mxu0 0.0
    %2018 = vmatpush1.msra.mxu0 %v191
    %2019 = vmatprep.subr.mxu0 0.0
    %2020 = vmatpush1.msra.mxu0 %v193
    %2021 = vmatprep.subr.mxu0 0.0
    %2022 = vmatpush1.msra.mxu0 0.0
    %2023 = vmatprep.subr.mxu0 0.0
    %2024 = vmatpush1.msra.mxu0 0.0
    %2025 = vmatprep.subr.mxu0 0.0
    %2026 = vmatpush1.msra.mxu0 0.0
    %2027 = vmatprep.subr.mxu0 0.0
    %2028 = vmatpush1.msra.mxu0 0.0
    %2029 = vmatprep.subr.mxu0 0.0
    %2030 = vmatpush1.msra.mxu0 0.0
    %2031 = vmatprep.subr.mxu0 0.0
    %2032 = vmatpush1.msra.mxu0 0.0
    %2033 = vmatprep.subr.mxu0 0.0
    %2034 = vmatpush1.msra.mxu0 0.0
    %2035 = vmatprep.subr.mxu0 0.0
    %2036 = vmatpush1.msra.mxu0 0.0
    %2037 = vmatprep.subr.mxu0 0.0
    %2038 = vmatpush1.msra.mxu0 0.0
    %2039 = vmatprep.subr.mxu0 0.0
    %2040 = vmatpush1.msra.mxu0 0.0
    %2041 = vmatprep.subr.mxu0 0.0
    %2042 = vmatpush1.msra.mxu0 0.0
    %2043 = vmatprep.subr.mxu0 0.0
    %2044 = vmatpush1.msra.mxu0 0.0
    %2045 = vmatprep.subr.mxu0 0.0
    %2046 = vmatpush1.msra.mxu0 0.0
    %2047 = vmatprep.subr.mxu0 0.0
    %2048 = vmatpush1.msra.mxu0 0.0
    %2049 = vmatprep.subr.mxu0 0.0
    %2050 = vmatpush1.msra.mxu0 0.0
    %2051 = vmatprep.subr.mxu0 0.0
    %2052 = vmatpush1.msra.mxu0 0.0
    %2053 = vmatprep.subr.mxu0 0.0
    %2054 = vmatpush1.msra.mxu0 0.0
    %2055 = vmatprep.subr.mxu0 0.0
    %2056 = vmatpush1.msra.mxu0 0.0
    %2057 = vmatprep.subr.mxu0 0.0
    %2058 = vmatpush1.msra.mxu0 0.0
    %2059 = vmatprep.subr.mxu0 0.0
    %2060 = vmatpush1.msra.mxu0 0.0
    %2061 = vmatprep.subr.mxu0 0.0
    %2062 = vmatpush1.msra.mxu0 0.0
    %2063 = vmatprep.subr.mxu0 0.0
    %2064 = vmatpush1.msra.mxu0 0.0
    %2065 = vmatprep.subr.mxu0 0.0
    %2066 = vmatpush1.msra.mxu0 0.0
    %2067 = vmatprep.subr.mxu0 0.0
    %2068 = vmatpush1.msra.mxu0 0.0
    %2069 = vmatprep.subr.mxu0 0.0
    %2070 = vmatpush1.msra.mxu0 0.0
    %2071 = vmatprep.subr.mxu0 0.0
    %2072 = vmatpush1.msra.mxu0 0.0
    %2073 = vmatprep.subr.mxu0 0.0
    %2074 = vmatpush1.msra.mxu0 0.0
    %2075 = vmatprep.subr.mxu0 0.0
    %2076 = vmatpush1.msra.mxu0 0.0
    %2077 = vmatprep.subr.mxu0 0.0
    %2078 = vmatpush1.msra.mxu0 0.0
    %2079 = vmatprep.subr.mxu0 0.0
    %2080 = vmatpush1.msra.mxu0 0.0
    %2081 = vmatprep.mubr.f32.mxu0 0.0
    %2082 = vmatmul.mubr.f32.gmra.mrb[0].mxu0 %v2015
    %v2083 = vpop.f32.mrb[0].mxu0
    %v2084 = vadd.f32 0.0, %v2083
    %v2085 = vpop.f32.mrb[0].mxu0
    %2086 = vdwg.mxu0
    %2088 = vrot.lane.b32.xlu0 %v2084, 32
    %v2089 = vpop.permute.xlu0 %2088
    %v2091 = vadd.f32 %v1931, %v2089
    %v2092 = vtanh.pop %v2091
    %2093 = vrot.lane.b32.xlu0 %v1932, 16
    %v2094 = vpop.permute.xlu0 %2093
    %v2096 = vmul.f32 %v2012, %v2094
    %v2097 = vsub.f32 1.0, %v2012
    %2099 = vrot.lane.b32.xlu0 %v2092, 112
    %v2100 = vpop.permute.xlu0 %2099
    %v2102 = vmul.f32 %v2097, %v2100
    %v2103 = vadd.f32 %v2096, %v2102
    %2105 = vrot.lane.b32.xlu0 %v2103, 112
    %v2106 = vpop.permute.xlu0 %2105
    %2108 = vst.msk [vmem:[#allocation2] sm:$0x3] %vm290, %v2106
    %s2109 = scalar_lea.vmem [#allocation12], 10
    %2110 = vst.msk [vmem:[%s2109] sm:$0x3] %vm290, %v2106
    %s2111 = scalar_lea.vmem [#allocation7], 4
    %v2112 = vld [vmem:[%s2111] sm:$0x3]
    %v2113 = vld [vmem:[#allocation3] sm:$0x3]
    %v2115 = vsel %vm106, %v2113, 0
    %2117 = vmatprep.subr.mxu0 0.0
    %2118 = vmatpush1.msra.mxu0 %v102
    %2119 = vmatprep.subr.mxu0 0.0
    %2120 = vmatpush1.msra.mxu0 %v103
    %2121 = vmatprep.subr.mxu0 0.0
    %2122 = vmatpush1.msra.mxu0 0.0
    %2123 = vmatprep.subr.mxu0 0.0
    %2124 = vmatpush1.msra.mxu0 0.0
    %2125 = vmatprep.subr.mxu0 0.0
    %2126 = vmatpush1.msra.mxu0 0.0
    %2127 = vmatprep.subr.mxu0 0.0
    %2128 = vmatpush1.msra.mxu0 0.0
    %2129 = vmatprep.subr.mxu0 0.0
    %2130 = vmatpush1.msra.mxu0 0.0
    %2131 = vmatprep.subr.mxu0 0.0
    %2132 = vmatpush1.msra.mxu0 0.0
    %2133 = vmatprep.subr.mxu0 0.0
    %2134 = vmatpush1.msra.mxu0 0.0
    %2135 = vmatprep.subr.mxu0 0.0
    %2136 = vmatpush1.msra.mxu0 0.0
    %2137 = vmatprep.subr.mxu0 0.0
    %2138 = vmatpush1.msra.mxu0 0.0
    %2139 = vmatprep.subr.mxu0 0.0
    %2140 = vmatpush1.msra.mxu0 0.0
    %2141 = vmatprep.subr.mxu0 0.0
    %2142 = vmatpush1.msra.mxu0 0.0
    %2143 = vmatprep.subr.mxu0 0.0
    %2144 = vmatpush1.msra.mxu0 0.0
    %2145 = vmatprep.subr.mxu0 0.0
    %2146 = vmatpush1.msra.mxu0 0.0
    %2147 = vmatprep.subr.mxu0 0.0
    %2148 = vmatpush1.msra.mxu0 0.0
    %2149 = vmatprep.subr.mxu0 0.0
    %2150 = vmatpush1.msra.mxu0 0.0
    %2151 = vmatprep.subr.mxu0 0.0
    %2152 = vmatpush1.msra.mxu0 0.0
    %2153 = vmatprep.subr.mxu0 0.0
    %2154 = vmatpush1.msra.mxu0 0.0
    %2155 = vmatprep.subr.mxu0 0.0
    %2156 = vmatpush1.msra.mxu0 0.0
    %2157 = vmatprep.subr.mxu0 0.0
    %2158 = vmatpush1.msra.mxu0 0.0
    %2159 = vmatprep.subr.mxu0 0.0
    %2160 = vmatpush1.msra.mxu0 0.0
    %2161 = vmatprep.subr.mxu0 0.0
    %2162 = vmatpush1.msra.mxu0 0.0
    %2163 = vmatprep.subr.mxu0 0.0
    %2164 = vmatpush1.msra.mxu0 0.0
    %2165 = vmatprep.subr.mxu0 0.0
    %2166 = vmatpush1.msra.mxu0 0.0
    %2167 = vmatprep.subr.mxu0 0.0
    %2168 = vmatpush1.msra.mxu0 0.0
    %2169 = vmatprep.subr.mxu0 0.0
    %2170 = vmatpush1.msra.mxu0 0.0
    %2171 = vmatprep.subr.mxu0 0.0
    %2172 = vmatpush1.msra.mxu0 0.0
    %2173 = vmatprep.subr.mxu0 0.0
    %2174 = vmatpush1.msra.mxu0 0.0
    %2175 = vmatprep.subr.mxu0 0.0
    %2176 = vmatpush1.msra.mxu0 0.0
    %2177 = vmatprep.subr.mxu0 0.0
    %2178 = vmatpush1.msra.mxu0 0.0
    %2179 = vmatprep.subr.mxu0 0.0
    %2180 = vmatpush1.msra.mxu0 0.0
    %2181 = vmatprep.mubr.f32.mxu0 0.0
    %2182 = vmatmul.mubr.f32.gmra.mrb[0].mxu0 %v2115
    %v2183 = vpop.f32.mrb[0].mxu0
    %v2184 = vadd.f32 0.0, %v2183
    %v2185 = vpop.f32.mrb[0].mxu0
    %2186 = vdwg.mxu0
    %v2187 = vadd.f32 %v2112, %v2184
    %v2188 = vxor.u32 %v2187, 2147483648
    %v2189 = vmul.f32 %v2188, 1.442695
    %v2190 = vpow.pop %v2189
    %v2191 = vadd.f32 %v2190, 1.0
    %v2192 = vrcp.pop %v2191
    %v2193 = vmul.f32 1.0, %v2192
    %v2194 = vmul.f32 %v2193, %v2113
    %v2196 = vsel %vm106, %v2194, 0
    %2198 = vmatprep.subr.mxu0 0.0
    %2199 = vmatpush1.msra.mxu0 %v380
    %2200 = vmatprep.subr.mxu0 0.0
    %2201 = vmatpush1.msra.mxu0 %v382
    %2202 = vmatprep.subr.mxu0 0.0
    %2203 = vmatpush1.msra.mxu0 0.0
    %2204 = vmatprep.subr.mxu0 0.0
    %2205 = vmatpush1.msra.mxu0 0.0
    %2206 = vmatprep.subr.mxu0 0.0
    %2207 = vmatpush1.msra.mxu0 0.0
    %2208 = vmatprep.subr.mxu0 0.0
    %2209 = vmatpush1.msra.mxu0 0.0
    %2210 = vmatprep.subr.mxu0 0.0
    %2211 = vmatpush1.msra.mxu0 0.0
    %2212 = vmatprep.subr.mxu0 0.0
    %2213 = vmatpush1.msra.mxu0 0.0
    %2214 = vmatprep.subr.mxu0 0.0
    %2215 = vmatpush1.msra.mxu0 0.0
    %2216 = vmatprep.subr.mxu0 0.0
    %2217 = vmatpush1.msra.mxu0 0.0
    %2218 = vmatprep.subr.mxu0 0.0
    %2219 = vmatpush1.msra.mxu0 0.0
    %2220 = vmatprep.subr.mxu0 0.0
    %2221 = vmatpush1.msra.mxu0 0.0
    %2222 = vmatprep.subr.mxu0 0.0
    %2223 = vmatpush1.msra.mxu0 0.0
    %2224 = vmatprep.subr.mxu0 0.0
    %2225 = vmatpush1.msra.mxu0 0.0
    %2226 = vmatprep.subr.mxu0 0.0
    %2227 = vmatpush1.msra.mxu0 0.0
    %2228 = vmatprep.subr.mxu0 0.0
    %2229 = vmatpush1.msra.mxu0 0.0
    %2230 = vmatprep.subr.mxu0 0.0
    %2231 = vmatpush1.msra.mxu0 0.0
    %2232 = vmatprep.subr.mxu0 0.0
    %2233 = vmatpush1.msra.mxu0 0.0
    %2234 = vmatprep.subr.mxu0 0.0
    %2235 = vmatpush1.msra.mxu0 0.0
    %2236 = vmatprep.subr.mxu0 0.0
    %2237 = vmatpush1.msra.mxu0 0.0
    %2238 = vmatprep.subr.mxu0 0.0
    %2239 = vmatpush1.msra.mxu0 0.0
    %2240 = vmatprep.subr.mxu0 0.0
    %2241 = vmatpush1.msra.mxu0 0.0
    %2242 = vmatprep.subr.mxu0 0.0
    %2243 = vmatpush1.msra.mxu0 0.0
    %2244 = vmatprep.subr.mxu0 0.0
    %2245 = vmatpush1.msra.mxu0 0.0
    %2246 = vmatprep.subr.mxu0 0.0
    %2247 = vmatpush1.msra.mxu0 0.0
    %2248 = vmatprep.subr.mxu0 0.0
    %2249 = vmatpush1.msra.mxu0 0.0
    %2250 = vmatprep.subr.mxu0 0.0
    %2251 = vmatpush1.msra.mxu0 0.0
    %2252 = vmatprep.subr.mxu0 0.0
    %2253 = vmatpush1.msra.mxu0 0.0
    %2254 = vmatprep.subr.mxu0 0.0
    %2255 = vmatpush1.msra.mxu0 0.0
    %2256 = vmatprep.subr.mxu0 0.0
    %2257 = vmatpush1.msra.mxu0 0.0
    %2258 = vmatprep.subr.mxu0 0.0
    %2259 = vmatpush1.msra.mxu0 0.0
    %2260 = vmatprep.subr.mxu0 0.0
    %2261 = vmatpush1.msra.mxu0 0.0
    %2262 = vmatprep.mubr.f32.mxu0 0.0
    %2263 = vmatmul.mubr.f32.gmra.mrb[0].mxu0 %v2196
    %v2264 = vpop.f32.mrb[0].mxu0
    %v2265 = vadd.f32 0.0, %v2264
    %v2266 = vpop.f32.mrb[0].mxu0
    %2267 = vdwg.mxu0
    %2269 = vrot.lane.b32.xlu0 %v2265, 32
    %v2270 = vpop.permute.xlu0 %2269
    %v2272 = vadd.f32 %v2112, %v2270
    %v2273 = vtanh.pop %v2272
    %2274 = vrot.lane.b32.xlu0 %v2113, 16
    %v2275 = vpop.permute.xlu0 %2274
    %v2277 = vmul.f32 %v2193, %v2275
    %v2278 = vsub.f32 1.0, %v2193
    %2280 = vrot.lane.b32.xlu0 %v2273, 112
    %v2281 = vpop.permute.xlu0 %2280
    %v2283 = vmul.f32 %v2278, %v2281
    %v2284 = vadd.f32 %v2277, %v2283
    %2286 = vrot.lane.b32.xlu0 %v2284, 112
    %v2287 = vpop.permute.xlu0 %2286
    %2289 = vst.msk [vmem:[#allocation3] sm:$0x3] %vm290, %v2287
    %s2290 = scalar_lea.vmem [#allocation13], 4
    %2291 = vst.msk [vmem:[%s2290] sm:$0x3] %vm290, %v2287
    %s2292 = scalar_lea.vmem [#allocation4], 12
    %v2293 = vld [vmem:[%s2292] sm:$0x3]
    %v2294 = vld [vmem:[#allocation2] sm:$0x3]
    %v2296 = vsel %vm106, %v2294, 0
    %2298 = vmatprep.subr.mxu0 0.0
    %2299 = vmatpush1.msra.mxu0 %v100
    %2300 = vmatprep.subr.mxu0 0.0
    %2301 = vmatpush1.msra.mxu0 %v101
    %2302 = vmatprep.subr.mxu0 0.0
    %2303 = vmatpush1.msra.mxu0 0.0
    %2304 = vmatprep.subr.mxu0 0.0
    %2305 = vmatpush1.msra.mxu0 0.0
    %2306 = vmatprep.subr.mxu0 0.0
    %2307 = vmatpush1.msra.mxu0 0.0
    %2308 = vmatprep.subr.mxu0 0.0
    %2309 = vmatpush1.msra.mxu0 0.0
    %2310 = vmatprep.subr.mxu0 0.0
    %2311 = vmatpush1.msra.mxu0 0.0
    %2312 = vmatprep.subr.mxu0 0.0
    %2313 = vmatpush1.msra.mxu0 0.0
    %2314 = vmatprep.subr.mxu0 0.0
    %2315 = vmatpush1.msra.mxu0 0.0
    %2316 = vmatprep.subr.mxu0 0.0
    %2317 = vmatpush1.msra.mxu0 0.0
    %2318 = vmatprep.subr.mxu0 0.0
    %2319 = vmatpush1.msra.mxu0 0.0
    %2320 = vmatprep.subr.mxu0 0.0
    %2321 = vmatpush1.msra.mxu0 0.0
    %2322 = vmatprep.subr.mxu0 0.0
    %2323 = vmatpush1.msra.mxu0 0.0
    %2324 = vmatprep.subr.mxu0 0.0
    %2325 = vmatpush1.msra.mxu0 0.0
    %2326 = vmatprep.subr.mxu0 0.0
    %2327 = vmatpush1.msra.mxu0 0.0
    %2328 = vmatprep.subr.mxu0 0.0
    %2329 = vmatpush1.msra.mxu0 0.0
    %2330 = vmatprep.subr.mxu0 0.0
    %2331 = vmatpush1.msra.mxu0 0.0
    %2332 = vmatprep.subr.mxu0 0.0
    %2333 = vmatpush1.msra.mxu0 0.0
    %2334 = vmatprep.subr.mxu0 0.0
    %2335 = vmatpush1.msra.mxu0 0.0
    %2336 = vmatprep.subr.mxu0 0.0
    %2337 = vmatpush1.msra.mxu0 0.0
    %2338 = vmatprep.subr.mxu0 0.0
    %2339 = vmatpush1.msra.mxu0 0.0
    %2340 = vmatprep.subr.mxu0 0.0
    %2341 = vmatpush1.msra.mxu0 0.0
    %2342 = vmatprep.subr.mxu0 0.0
    %2343 = vmatpush1.msra.mxu0 0.0
    %2344 = vmatprep.subr.mxu0 0.0
    %2345 = vmatpush1.msra.mxu0 0.0
    %2346 = vmatprep.subr.mxu0 0.0
    %2347 = vmatpush1.msra.mxu0 0.0
    %2348 = vmatprep.subr.mxu0 0.0
    %2349 = vmatpush1.msra.mxu0 0.0
    %2350 = vmatprep.subr.mxu0 0.0
    %2351 = vmatpush1.msra.mxu0 0.0
    %2352 = vmatprep.subr.mxu0 0.0
    %2353 = vmatpush1.msra.mxu0 0.0
    %2354 = vmatprep.subr.mxu0 0.0
    %2355 = vmatpush1.msra.mxu0 0.0
    %2356 = vmatprep.subr.mxu0 0.0
    %2357 = vmatpush1.msra.mxu0 0.0
    %2358 = vmatprep.subr.mxu0 0.0
    %2359 = vmatpush1.msra.mxu0 0.0
    %2360 = vmatprep.subr.mxu0 0.0
    %2361 = vmatpush1.msra.mxu0 0.0
    %2362 = vmatprep.mubr.f32.mxu0 0.0
    %2363 = vmatmul.mubr.f32.gmra.mrb[0].mxu0 %v2296
    %v2364 = vpop.f32.mrb[0].mxu0
    %v2365 = vadd.f32 0.0, %v2364
    %v2366 = vpop.f32.mrb[0].mxu0
    %2367 = vdwg.mxu0
    %v2368 = vadd.f32 %v2293, %v2365
    %v2369 = vxor.u32 %v2368, 2147483648
    %v2370 = vmul.f32 %v2369, 1.442695
    %v2371 = vpow.pop %v2370
    %v2372 = vadd.f32 %v2371, 1.0
    %v2373 = vrcp.pop %v2372
    %v2374 = vmul.f32 1.0, %v2373
    %v2375 = vmul.f32 %v2374, %v2294
    %v2377 = vsel %vm106, %v2375, 0
    %2379 = vmatprep.subr.mxu0 0.0
    %2380 = vmatpush1.msra.mxu0 %v191
    %2381 = vmatprep.subr.mxu0 0.0
    %2382 = vmatpush1.msra.mxu0 %v193
    %2383 = vmatprep.subr.mxu0 0.0
    %2384 = vmatpush1.msra.mxu0 0.0
    %2385 = vmatprep.subr.mxu0 0.0
    %2386 = vmatpush1.msra.mxu0 0.0
    %2387 = vmatprep.subr.mxu0 0.0
    %2388 = vmatpush1.msra.mxu0 0.0
    %2389 = vmatprep.subr.mxu0 0.0
    %2390 = vmatpush1.msra.mxu0 0.0
    %2391 = vmatprep.subr.mxu0 0.0
    %2392 = vmatpush1.msra.mxu0 0.0
    %2393 = vmatprep.subr.mxu0 0.0
    %2394 = vmatpush1.msra.mxu0 0.0
    %2395 = vmatprep.subr.mxu0 0.0
    %2396 = vmatpush1.msra.mxu0 0.0
    %2397 = vmatprep.subr.mxu0 0.0
    %2398 = vmatpush1.msra.mxu0 0.0
    %2399 = vmatprep.subr.mxu0 0.0
    %2400 = vmatpush1.msra.mxu0 0.0
    %2401 = vmatprep.subr.mxu0 0.0
    %2402 = vmatpush1.msra.mxu0 0.0
    %2403 = vmatprep.subr.mxu0 0.0
    %2404 = vmatpush1.msra.mxu0 0.0
    %2405 = vmatprep.subr.mxu0 0.0
    %2406 = vmatpush1.msra.mxu0 0.0
    %2407 = vmatprep.subr.mxu0 0.0
    %2408 = vmatpush1.msra.mxu0 0.0
    %2409 = vmatprep.subr.mxu0 0.0
    %2410 = vmatpush1.msra.mxu0 0.0
    %2411 = vmatprep.subr.mxu0 0.0
    %2412 = vmatpush1.msra.mxu0 0.0
    %2413 = vmatprep.subr.mxu0 0.0
    %2414 = vmatpush1.msra.mxu0 0.0
    %2415 = vmatprep.subr.mxu0 0.0
    %2416 = vmatpush1.msra.mxu0 0.0
    %2417 = vmatprep.subr.mxu0 0.0
    %2418 = vmatpush1.msra.mxu0 0.0
    %2419 = vmatprep.subr.mxu0 0.0
    %2420 = vmatpush1.msra.mxu0 0.0
    %2421 = vmatprep.subr.mxu0 0.0
    %2422 = vmatpush1.msra.mxu0 0.0
    %2423 = vmatprep.subr.mxu0 0.0
    %2424 = vmatpush1.msra.mxu0 0.0
    %2425 = vmatprep.subr.mxu0 0.0
    %2426 = vmatpush1.msra.mxu0 0.0
    %2427 = vmatprep.subr.mxu0 0.0
    %2428 = vmatpush1.msra.mxu0 0.0
    %2429 = vmatprep.subr.mxu0 0.0
    %2430 = vmatpush1.msra.mxu0 0.0
    %2431 = vmatprep.subr.mxu0 0.0
    %2432 = vmatpush1.msra.mxu0 0.0
    %2433 = vmatprep.subr.mxu0 0.0
    %2434 = vmatpush1.msra.mxu0 0.0
    %2435 = vmatprep.subr.mxu0 0.0
    %2436 = vmatpush1.msra.mxu0 0.0
    %2437 = vmatprep.subr.mxu0 0.0
    %2438 = vmatpush1.msra.mxu0 0.0
    %2439 = vmatprep.subr.mxu0 0.0
    %2440 = vmatpush1.msra.mxu0 0.0
    %2441 = vmatprep.subr.mxu0 0.0
    %2442 = vmatpush1.msra.mxu0 0.0
    %2443 = vmatprep.mubr.f32.mxu0 0.0
    %2444 = vmatmul.mubr.f32.gmra.mrb[0].mxu0 %v2377
    %v2445 = vpop.f32.mrb[0].mxu0
    %v2446 = vadd.f32 0.0, %v2445
    %v2447 = vpop.f32.mrb[0].mxu0
    %2448 = vdwg.mxu0
    %2450 = vrot.lane.b32.xlu0 %v2446, 32
    %v2451 = vpop.permute.xlu0 %2450
    %v2453 = vadd.f32 %v2293, %v2451
    %v2454 = vtanh.pop %v2453
    %2455 = vrot.lane.b32.xlu0 %v2294, 16
    %v2456 = vpop.permute.xlu0 %2455
    %v2458 = vmul.f32 %v2374, %v2456
    %v2459 = vsub.f32 1.0, %v2374
    %2461 = vrot.lane.b32.xlu0 %v2454, 112
    %v2462 = vpop.permute.xlu0 %2461
    %v2464 = vmul.f32 %v2459, %v2462
    %v2465 = vadd.f32 %v2458, %v2464
    %2467 = vrot.lane.b32.xlu0 %v2465, 112
    %v2468 = vpop.permute.xlu0 %2467
    %2470 = vst.msk [vmem:[#allocation2] sm:$0x3] %vm290, %v2468
    %s2471 = scalar_lea.vmem [#allocation12], 12
    %2472 = vst.msk [vmem:[%s2471] sm:$0x3] %vm290, %v2468
    %s2473 = scalar_lea.vmem [#allocation7], 2
    %v2474 = vld [vmem:[%s2473] sm:$0x3]
    %v2475 = vld [vmem:[#allocation3] sm:$0x3]
    %v2477 = vsel %vm106, %v2475, 0
    %2479 = vmatprep.subr.mxu0 0.0
    %2480 = vmatpush1.msra.mxu0 %v102
    %2481 = vmatprep.subr.mxu0 0.0
    %2482 = vmatpush1.msra.mxu0 %v103
    %2483 = vmatprep.subr.mxu0 0.0
    %2484 = vmatpush1.msra.mxu0 0.0
    %2485 = vmatprep.subr.mxu0 0.0
    %2486 = vmatpush1.msra.mxu0 0.0
    %2487 = vmatprep.subr.mxu0 0.0
    %2488 = vmatpush1.msra.mxu0 0.0
    %2489 = vmatprep.subr.mxu0 0.0
    %2490 = vmatpush1.msra.mxu0 0.0
    %2491 = vmatprep.subr.mxu0 0.0
    %2492 = vmatpush1.msra.mxu0 0.0
    %2493 = vmatprep.subr.mxu0 0.0
    %2494 = vmatpush1.msra.mxu0 0.0
    %2495 = vmatprep.subr.mxu0 0.0
    %2496 = vmatpush1.msra.mxu0 0.0
    %2497 = vmatprep.subr.mxu0 0.0
    %2498 = vmatpush1.msra.mxu0 0.0
    %2499 = vmatprep.subr.mxu0 0.0
    %2500 = vmatpush1.msra.mxu0 0.0
    %2501 = vmatprep.subr.mxu0 0.0
    %2502 = vmatpush1.msra.mxu0 0.0
    %2503 = vmatprep.subr.mxu0 0.0
    %2504 = vmatpush1.msra.mxu0 0.0
    %2505 = vmatprep.subr.mxu0 0.0
    %2506 = vmatpush1.msra.mxu0 0.0
    %2507 = vmatprep.subr.mxu0 0.0
    %2508 = vmatpush1.msra.mxu0 0.0
    %2509 = vmatprep.subr.mxu0 0.0
    %2510 = vmatpush1.msra.mxu0 0.0
    %2511 = vmatprep.subr.mxu0 0.0
    %2512 = vmatpush1.msra.mxu0 0.0
    %2513 = vmatprep.subr.mxu0 0.0
    %2514 = vmatpush1.msra.mxu0 0.0
    %2515 = vmatprep.subr.mxu0 0.0
    %2516 = vmatpush1.msra.mxu0 0.0
    %2517 = vmatprep.subr.mxu0 0.0
    %2518 = vmatpush1.msra.mxu0 0.0
    %2519 = vmatprep.subr.mxu0 0.0
    %2520 = vmatpush1.msra.mxu0 0.0
    %2521 = vmatprep.subr.mxu0 0.0
    %2522 = vmatpush1.msra.mxu0 0.0
    %2523 = vmatprep.subr.mxu0 0.0
    %2524 = vmatpush1.msra.mxu0 0.0
    %2525 = vmatprep.subr.mxu0 0.0
    %2526 = vmatpush1.msra.mxu0 0.0
    %2527 = vmatprep.subr.mxu0 0.0
    %2528 = vmatpush1.msra.mxu0 0.0
    %2529 = vmatprep.subr.mxu0 0.0
    %2530 = vmatpush1.msra.mxu0 0.0
    %2531 = vmatprep.subr.mxu0 0.0
    %2532 = vmatpush1.msra.mxu0 0.0
    %2533 = vmatprep.subr.mxu0 0.0
    %2534 = vmatpush1.msra.mxu0 0.0
    %2535 = vmatprep.subr.mxu0 0.0
    %2536 = vmatpush1.msra.mxu0 0.0
    %2537 = vmatprep.subr.mxu0 0.0
    %2538 = vmatpush1.msra.mxu0 0.0
    %2539 = vmatprep.subr.mxu0 0.0
    %2540 = vmatpush1.msra.mxu0 0.0
    %2541 = vmatprep.subr.mxu0 0.0
    %2542 = vmatpush1.msra.mxu0 0.0
    %2543 = vmatprep.mubr.f32.mxu0 0.0
    %2544 = vmatmul.mubr.f32.gmra.mrb[0].mxu0 %v2477
    %v2545 = vpop.f32.mrb[0].mxu0
    %v2546 = vadd.f32 0.0, %v2545
    %v2547 = vpop.f32.mrb[0].mxu0
    %2548 = vdwg.mxu0
    %v2549 = vadd.f32 %v2474, %v2546
    %v2550 = vxor.u32 %v2549, 2147483648
    %v2551 = vmul.f32 %v2550, 1.442695
    %v2552 = vpow.pop %v2551
    %v2553 = vadd.f32 %v2552, 1.0
    %v2554 = vrcp.pop %v2553
    %v2555 = vmul.f32 1.0, %v2554
    %v2556 = vmul.f32 %v2555, %v2475
    %v2558 = vsel %vm106, %v2556, 0
    %2560 = vmatprep.subr.mxu0 0.0
    %2561 = vmatpush1.msra.mxu0 %v380
    %2562 = vmatprep.subr.mxu0 0.0
    %2563 = vmatpush1.msra.mxu0 %v382
    %2564 = vmatprep.subr.mxu0 0.0
    %2565 = vmatpush1.msra.mxu0 0.0
    %2566 = vmatprep.subr.mxu0 0.0
    %2567 = vmatpush1.msra.mxu0 0.0
    %2568 = vmatprep.subr.mxu0 0.0
    %2569 = vmatpush1.msra.mxu0 0.0
    %2570 = vmatprep.subr.mxu0 0.0
    %2571 = vmatpush1.msra.mxu0 0.0
    %2572 = vmatprep.subr.mxu0 0.0
    %2573 = vmatpush1.msra.mxu0 0.0
    %2574 = vmatprep.subr.mxu0 0.0
    %2575 = vmatpush1.msra.mxu0 0.0
    %2576 = vmatprep.subr.mxu0 0.0
    %2577 = vmatpush1.msra.mxu0 0.0
    %2578 = vmatprep.subr.mxu0 0.0
    %2579 = vmatpush1.msra.mxu0 0.0
    %2580 = vmatprep.subr.mxu0 0.0
    %2581 = vmatpush1.msra.mxu0 0.0
    %2582 = vmatprep.subr.mxu0 0.0
    %2583 = vmatpush1.msra.mxu0 0.0
    %2584 = vmatprep.subr.mxu0 0.0
    %2585 = vmatpush1.msra.mxu0 0.0
    %2586 = vmatprep.subr.mxu0 0.0
    %2587 = vmatpush1.msra.mxu0 0.0
    %2588 = vmatprep.subr.mxu0 0.0
    %2589 = vmatpush1.msra.mxu0 0.0
    %2590 = vmatprep.subr.mxu0 0.0
    %2591 = vmatpush1.msra.mxu0 0.0
    %2592 = vmatprep.subr.mxu0 0.0
    %2593 = vmatpush1.msra.mxu0 0.0
    %2594 = vmatprep.subr.mxu0 0.0
    %2595 = vmatpush1.msra.mxu0 0.0
    %2596 = vmatprep.subr.mxu0 0.0
    %2597 = vmatpush1.msra.mxu0 0.0
    %2598 = vmatprep.subr.mxu0 0.0
    %2599 = vmatpush1.msra.mxu0 0.0
    %2600 = vmatprep.subr.mxu0 0.0
    %2601 = vmatpush1.msra.mxu0 0.0
    %2602 = vmatprep.subr.mxu0 0.0
    %2603 = vmatpush1.msra.mxu0 0.0
    %2604 = vmatprep.subr.mxu0 0.0
    %2605 = vmatpush1.msra.mxu0 0.0
    %2606 = vmatprep.subr.mxu0 0.0
    %2607 = vmatpush1.msra.mxu0 0.0
    %2608 = vmatprep.subr.mxu0 0.0
    %2609 = vmatpush1.msra.mxu0 0.0
    %2610 = vmatprep.subr.mxu0 0.0
    %2611 = vmatpush1.msra.mxu0 0.0
    %2612 = vmatprep.subr.mxu0 0.0
    %2613 = vmatpush1.msra.mxu0 0.0
    %2614 = vmatprep.subr.mxu0 0.0
    %2615 = vmatpush1.msra.mxu0 0.0
    %2616 = vmatprep.subr.mxu0 0.0
    %2617 = vmatpush1.msra.mxu0 0.0
    %2618 = vmatprep.subr.mxu0 0.0
    %2619 = vmatpush1.msra.mxu0 0.0
    %2620 = vmatprep.subr.mxu0 0.0
    %2621 = vmatpush1.msra.mxu0 0.0
    %2622 = vmatprep.subr.mxu0 0.0
    %2623 = vmatpush1.msra.mxu0 0.0
    %2624 = vmatprep.mubr.f32.mxu0 0.0
    %2625 = vmatmul.mubr.f32.gmra.mrb[0].mxu0 %v2558
    %v2626 = vpop.f32.mrb[0].mxu0
    %v2627 = vadd.f32 0.0, %v2626
    %v2628 = vpop.f32.mrb[0].mxu0
    %2629 = vdwg.mxu0
    %2631 = vrot.lane.b32.xlu0 %v2627, 32
    %v2632 = vpop.permute.xlu0 %2631
    %v2634 = vadd.f32 %v2474, %v2632
    %v2635 = vtanh.pop %v2634
    %2636 = vrot.lane.b32.xlu0 %v2475, 16
    %v2637 = vpop.permute.xlu0 %2636
    %v2639 = vmul.f32 %v2555, %v2637
    %v2640 = vsub.f32 1.0, %v2555
    %2642 = vrot.lane.b32.xlu0 %v2635, 112
    %v2643 = vpop.permute.xlu0 %2642
    %v2645 = vmul.f32 %v2640, %v2643
    %v2646 = vadd.f32 %v2639, %v2645
    %2648 = vrot.lane.b32.xlu0 %v2646, 112
    %v2649 = vpop.permute.xlu0 %2648
    %2651 = vst.msk [vmem:[#allocation3] sm:$0x3] %vm290, %v2649
    %s2652 = scalar_lea.vmem [#allocation13], 2
    %2653 = vst.msk [vmem:[%s2652] sm:$0x3] %vm290, %v2649
    %s2654 = scalar_lea.vmem [#allocation4], 14
    %v2655 = vld [vmem:[%s2654] sm:$0x3]
    %v2656 = vld [vmem:[#allocation2] sm:$0x3]
    %v2658 = vsel %vm106, %v2656, 0
    %2660 = vmatprep.subr.mxu0 0.0
    %2661 = vmatpush1.msra.mxu0 %v100
    %2662 = vmatprep.subr.mxu0 0.0
    %2663 = vmatpush1.msra.mxu0 %v101
    %2664 = vmatprep.subr.mxu0 0.0
    %2665 = vmatpush1.msra.mxu0 0.0
    %2666 = vmatprep.subr.mxu0 0.0
    %2667 = vmatpush1.msra.mxu0 0.0
    %2668 = vmatprep.subr.mxu0 0.0
    %2669 = vmatpush1.msra.mxu0 0.0
    %2670 = vmatprep.subr.mxu0 0.0
    %2671 = vmatpush1.msra.mxu0 0.0
    %2672 = vmatprep.subr.mxu0 0.0
    %2673 = vmatpush1.msra.mxu0 0.0
    %2674 = vmatprep.subr.mxu0 0.0
    %2675 = vmatpush1.msra.mxu0 0.0
    %2676 = vmatprep.subr.mxu0 0.0
    %2677 = vmatpush1.msra.mxu0 0.0
    %2678 = vmatprep.subr.mxu0 0.0
    %2679 = vmatpush1.msra.mxu0 0.0
    %2680 = vmatprep.subr.mxu0 0.0
    %2681 = vmatpush1.msra.mxu0 0.0
    %2682 = vmatprep.subr.mxu0 0.0
    %2683 = vmatpush1.msra.mxu0 0.0
    %2684 = vmatprep.subr.mxu0 0.0
    %2685 = vmatpush1.msra.mxu0 0.0
    %2686 = vmatprep.subr.mxu0 0.0
    %2687 = vmatpush1.msra.mxu0 0.0
    %2688 = vmatprep.subr.mxu0 0.0
    %2689 = vmatpush1.msra.mxu0 0.0
    %2690 = vmatprep.subr.mxu0 0.0
    %2691 = vmatpush1.msra.mxu0 0.0
    %2692 = vmatprep.subr.mxu0 0.0
    %2693 = vmatpush1.msra.mxu0 0.0
    %2694 = vmatprep.subr.mxu0 0.0
    %2695 = vmatpush1.msra.mxu0 0.0
    %2696 = vmatprep.subr.mxu0 0.0
    %2697 = vmatpush1.msra.mxu0 0.0
    %2698 = vmatprep.subr.mxu0 0.0
    %2699 = vmatpush1.msra.mxu0 0.0
    %2700 = vmatprep.subr.mxu0 0.0
    %2701 = vmatpush1.msra.mxu0 0.0
    %2702 = vmatprep.subr.mxu0 0.0
    %2703 = vmatpush1.msra.mxu0 0.0
    %2704 = vmatprep.subr.mxu0 0.0
    %2705 = vmatpush1.msra.mxu0 0.0
    %2706 = vmatprep.subr.mxu0 0.0
    %2707 = vmatpush1.msra.mxu0 0.0
    %2708 = vmatprep.subr.mxu0 0.0
    %2709 = vmatpush1.msra.mxu0 0.0
    %2710 = vmatprep.subr.mxu0 0.0
    %2711 = vmatpush1.msra.mxu0 0.0
    %2712 = vmatprep.subr.mxu0 0.0
    %2713 = vmatpush1.msra.mxu0 0.0
    %2714 = vmatprep.subr.mxu0 0.0
    %2715 = vmatpush1.msra.mxu0 0.0
    %2716 = vmatprep.subr.mxu0 0.0
    %2717 = vmatpush1.msra.mxu0 0.0
    %2718 = vmatprep.subr.mxu0 0.0
    %2719 = vmatpush1.msra.mxu0 0.0
    %2720 = vmatprep.subr.mxu0 0.0
    %2721 = vmatpush1.msra.mxu0 0.0
    %2722 = vmatprep.subr.mxu0 0.0
    %2723 = vmatpush1.msra.mxu0 0.0
    %2724 = vmatprep.mubr.f32.mxu0 0.0
    %2725 = vmatmul.mubr.f32.gmra.mrb[0].mxu0 %v2658
    %v2726 = vpop.f32.mrb[0].mxu0
    %v2727 = vadd.f32 0.0, %v2726
    %v2728 = vpop.f32.mrb[0].mxu0
    %2729 = vdwg.mxu0
    %v2730 = vadd.f32 %v2655, %v2727
    %v2731 = vxor.u32 %v2730, 2147483648
    %v2732 = vmul.f32 %v2731, 1.442695
    %v2733 = vpow.pop %v2732
    %v2734 = vadd.f32 %v2733, 1.0
    %v2735 = vrcp.pop %v2734
    %v2736 = vmul.f32 1.0, %v2735
    %v2737 = vmul.f32 %v2736, %v2656
    %v2739 = vsel %vm106, %v2737, 0
    %2741 = vmatprep.subr.mxu0 0.0
    %2742 = vmatpush1.msra.mxu0 %v191
    %2743 = vmatprep.subr.mxu0 0.0
    %2744 = vmatpush1.msra.mxu0 %v193
    %2745 = vmatprep.subr.mxu0 0.0
    %2746 = vmatpush1.msra.mxu0 0.0
    %2747 = vmatprep.subr.mxu0 0.0
    %2748 = vmatpush1.msra.mxu0 0.0
    %2749 = vmatprep.subr.mxu0 0.0
    %2750 = vmatpush1.msra.mxu0 0.0
    %2751 = vmatprep.subr.mxu0 0.0
    %2752 = vmatpush1.msra.mxu0 0.0
    %2753 = vmatprep.subr.mxu0 0.0
    %2754 = vmatpush1.msra.mxu0 0.0
    %2755 = vmatprep.subr.mxu0 0.0
    %2756 = vmatpush1.msra.mxu0 0.0
    %2757 = vmatprep.subr.mxu0 0.0
    %2758 = vmatpush1.msra.mxu0 0.0
    %2759 = vmatprep.subr.mxu0 0.0
    %2760 = vmatpush1.msra.mxu0 0.0
    %2761 = vmatprep.subr.mxu0 0.0
    %2762 = vmatpush1.msra.mxu0 0.0
    %2763 = vmatprep.subr.mxu0 0.0
    %2764 = vmatpush1.msra.mxu0 0.0
    %2765 = vmatprep.subr.mxu0 0.0
    %2766 = vmatpush1.msra.mxu0 0.0
    %2767 = vmatprep.subr.mxu0 0.0
    %2768 = vmatpush1.msra.mxu0 0.0
    %2769 = vmatprep.subr.mxu0 0.0
    %2770 = vmatpush1.msra.mxu0 0.0
    %2771 = vmatprep.subr.mxu0 0.0
    %2772 = vmatpush1.msra.mxu0 0.0
    %2773 = vmatprep.subr.mxu0 0.0
    %2774 = vmatpush1.msra.mxu0 0.0
    %2775 = vmatprep.subr.mxu0 0.0
    %2776 = vmatpush1.msra.mxu0 0.0
    %2777 = vmatprep.subr.mxu0 0.0
    %2778 = vmatpush1.msra.mxu0 0.0
    %2779 = vmatprep.subr.mxu0 0.0
    %2780 = vmatpush1.msra.mxu0 0.0
    %2781 = vmatprep.subr.mxu0 0.0
    %2782 = vmatpush1.msra.mxu0 0.0
    %2783 = vmatprep.subr.mxu0 0.0
    %2784 = vmatpush1.msra.mxu0 0.0
    %2785 = vmatprep.subr.mxu0 0.0
    %2786 = vmatpush1.msra.mxu0 0.0
    %2787 = vmatprep.subr.mxu0 0.0
    %2788 = vmatpush1.msra.mxu0 0.0
    %2789 = vmatprep.subr.mxu0 0.0
    %2790 = vmatpush1.msra.mxu0 0.0
    %2791 = vmatprep.subr.mxu0 0.0
    %2792 = vmatpush1.msra.mxu0 0.0
    %2793 = vmatprep.subr.mxu0 0.0
    %2794 = vmatpush1.msra.mxu0 0.0
    %2795 = vmatprep.subr.mxu0 0.0
    %2796 = vmatpush1.msra.mxu0 0.0
    %2797 = vmatprep.subr.mxu0 0.0
    %2798 = vmatpush1.msra.mxu0 0.0
    %2799 = vmatprep.subr.mxu0 0.0
    %2800 = vmatpush1.msra.mxu0 0.0
    %2801 = vmatprep.subr.mxu0 0.0
    %2802 = vmatpush1.msra.mxu0 0.0
    %2803 = vmatprep.subr.mxu0 0.0
    %2804 = vmatpush1.msra.mxu0 0.0
    %2805 = vmatprep.mubr.f32.mxu0 0.0
    %2806 = vmatmul.mubr.f32.gmra.mrb[0].mxu0 %v2739
    %v2807 = vpop.f32.mrb[0].mxu0
    %v2808 = vadd.f32 0.0, %v2807
    %v2809 = vpop.f32.mrb[0].mxu0
    %2810 = vdwg.mxu0
    %2812 = vrot.lane.b32.xlu0 %v2808, 32
    %v2813 = vpop.permute.xlu0 %2812
    %v2815 = vadd.f32 %v2655, %v2813
    %v2816 = vtanh.pop %v2815
    %2817 = vrot.lane.b32.xlu0 %v2656, 16
    %v2818 = vpop.permute.xlu0 %2817
    %v2820 = vmul.f32 %v2736, %v2818
    %v2821 = vsub.f32 1.0, %v2736
    %2823 = vrot.lane.b32.xlu0 %v2816, 112
    %v2824 = vpop.permute.xlu0 %2823
    %v2826 = vmul.f32 %v2821, %v2824
    %v2827 = vadd.f32 %v2820, %v2826
    %2829 = vrot.lane.b32.xlu0 %v2827, 112
    %v2830 = vpop.permute.xlu0 %2829
    %2832 = vst.msk [vmem:[#allocation2] sm:$0x3] %vm290, %v2830
    %s2833 = scalar_lea.vmem [#allocation12], 14
    %2834 = vst.msk [vmem:[%s2833] sm:$0x3] %vm290, %v2830
    %v2835 = vld [vmem:[#allocation7] sm:$0x3]
    %v2836 = vld [vmem:[#allocation3] sm:$0x3]
    %v2838 = vsel %vm106, %v2836, 0
    %2840 = vmatprep.subr.mxu0 0.0
    %2841 = vmatpush1.msra.mxu0 %v102
    %2842 = vmatprep.subr.mxu0 0.0
    %2843 = vmatpush1.msra.mxu0 %v103
    %2844 = vmatprep.subr.mxu0 0.0
    %2845 = vmatpush1.msra.mxu0 0.0
    %2846 = vmatprep.subr.mxu0 0.0
    %2847 = vmatpush1.msra.mxu0 0.0
    %2848 = vmatprep.subr.mxu0 0.0
    %2849 = vmatpush1.msra.mxu0 0.0
    %2850 = vmatprep.subr.mxu0 0.0
    %2851 = vmatpush1.msra.mxu0 0.0
    %2852 = vmatprep.subr.mxu0 0.0
    %2853 = vmatpush1.msra.mxu0 0.0
    %2854 = vmatprep.subr.mxu0 0.0
    %2855 = vmatpush1.msra.mxu0 0.0
    %2856 = vmatprep.subr.mxu0 0.0
    %2857 = vmatpush1.msra.mxu0 0.0
    %2858 = vmatprep.subr.mxu0 0.0
    %2859 = vmatpush1.msra.mxu0 0.0
    %2860 = vmatprep.subr.mxu0 0.0
    %2861 = vmatpush1.msra.mxu0 0.0
    %2862 = vmatprep.subr.mxu0 0.0
    %2863 = vmatpush1.msra.mxu0 0.0
    %2864 = vmatprep.subr.mxu0 0.0
    %2865 = vmatpush1.msra.mxu0 0.0
    %2866 = vmatprep.subr.mxu0 0.0
    %2867 = vmatpush1.msra.mxu0 0.0
    %2868 = vmatprep.subr.mxu0 0.0
    %2869 = vmatpush1.msra.mxu0 0.0
    %2870 = vmatprep.subr.mxu0 0.0
    %2871 = vmatpush1.msra.mxu0 0.0
    %2872 = vmatprep.subr.mxu0 0.0
    %2873 = vmatpush1.msra.mxu0 0.0
    %2874 = vmatprep.subr.mxu0 0.0
    %2875 = vmatpush1.msra.mxu0 0.0
    %2876 = vmatprep.subr.mxu0 0.0
    %2877 = vmatpush1.msra.mxu0 0.0
    %2878 = vmatprep.subr.mxu0 0.0
    %2879 = vmatpush1.msra.mxu0 0.0
    %2880 = vmatprep.subr.mxu0 0.0
    %2881 = vmatpush1.msra.mxu0 0.0
    %2882 = vmatprep.subr.mxu0 0.0
    %2883 = vmatpush1.msra.mxu0 0.0
    %2884 = vmatprep.subr.mxu0 0.0
    %2885 = vmatpush1.msra.mxu0 0.0
    %2886 = vmatprep.subr.mxu0 0.0
    %2887 = vmatpush1.msra.mxu0 0.0
    %2888 = vmatprep.subr.mxu0 0.0
    %2889 = vmatpush1.msra.mxu0 0.0
    %2890 = vmatprep.subr.mxu0 0.0
    %2891 = vmatpush1.msra.mxu0 0.0
    %2892 = vmatprep.subr.mxu0 0.0
    %2893 = vmatpush1.msra.mxu0 0.0
    %2894 = vmatprep.subr.mxu0 0.0
    %2895 = vmatpush1.msra.mxu0 0.0
    %2896 = vmatprep.subr.mxu0 0.0
    %2897 = vmatpush1.msra.mxu0 0.0
    %2898 = vmatprep.subr.mxu0 0.0
    %2899 = vmatpush1.msra.mxu0 0.0
    %2900 = vmatprep.subr.mxu0 0.0
    %2901 = vmatpush1.msra.mxu0 0.0
    %2902 = vmatprep.subr.mxu0 0.0
    %2903 = vmatpush1.msra.mxu0 0.0
    %2904 = vmatprep.mubr.f32.mxu0 0.0
    %2905 = vmatmul.mubr.f32.gmra.mrb[0].mxu0 %v2838
    %v2906 = vpop.f32.mrb[0].mxu0
    %v2907 = vadd.f32 0.0, %v2906
    %v2908 = vpop.f32.mrb[0].mxu0
    %2909 = vdwg.mxu0
    %v2910 = vadd.f32 %v2835, %v2907
    %v2911 = vxor.u32 %v2910, 2147483648
    %v2912 = vmul.f32 %v2911, 1.442695
    %v2913 = vpow.pop %v2912
    %v2914 = vadd.f32 %v2913, 1.0
    %v2915 = vrcp.pop %v2914
    %v2916 = vmul.f32 1.0, %v2915
    %v2917 = vmul.f32 %v2916, %v2836
    %v2919 = vsel %vm106, %v2917, 0
    %2921 = vmatprep.subr.mxu0 0.0
    %2922 = vmatpush1.msra.mxu0 %v380
    %2923 = vmatprep.subr.mxu0 0.0
    %2924 = vmatpush1.msra.mxu0 %v382
    %2925 = vmatprep.subr.mxu0 0.0
    %2926 = vmatpush1.msra.mxu0 0.0
    %2927 = vmatprep.subr.mxu0 0.0
    %2928 = vmatpush1.msra.mxu0 0.0
    %2929 = vmatprep.subr.mxu0 0.0
    %2930 = vmatpush1.msra.mxu0 0.0
    %2931 = vmatprep.subr.mxu0 0.0
    %2932 = vmatpush1.msra.mxu0 0.0
    %2933 = vmatprep.subr.mxu0 0.0
    %2934 = vmatpush1.msra.mxu0 0.0
    %2935 = vmatprep.subr.mxu0 0.0
    %2936 = vmatpush1.msra.mxu0 0.0
    %2937 = vmatprep.subr.mxu0 0.0
    %2938 = vmatpush1.msra.mxu0 0.0
    %2939 = vmatprep.subr.mxu0 0.0
    %2940 = vmatpush1.msra.mxu0 0.0
    %2941 = vmatprep.subr.mxu0 0.0
    %2942 = vmatpush1.msra.mxu0 0.0
    %2943 = vmatprep.subr.mxu0 0.0
    %2944 = vmatpush1.msra.mxu0 0.0
    %2945 = vmatprep.subr.mxu0 0.0
    %2946 = vmatpush1.msra.mxu0 0.0
    %2947 = vmatprep.subr.mxu0 0.0
    %2948 = vmatpush1.msra.mxu0 0.0
    %2949 = vmatprep.subr.mxu0 0.0
    %2950 = vmatpush1.msra.mxu0 0.0
    %2951 = vmatprep.subr.mxu0 0.0
    %2952 = vmatpush1.msra.mxu0 0.0
    %2953 = vmatprep.subr.mxu0 0.0
    %2954 = vmatpush1.msra.mxu0 0.0
    %2955 = vmatprep.subr.mxu0 0.0
    %2956 = vmatpush1.msra.mxu0 0.0
    %2957 = vmatprep.subr.mxu0 0.0
    %2958 = vmatpush1.msra.mxu0 0.0
    %2959 = vmatprep.subr.mxu0 0.0
    %2960 = vmatpush1.msra.mxu0 0.0
    %2961 = vmatprep.subr.mxu0 0.0
    %2962 = vmatpush1.msra.mxu0 0.0
    %2963 = vmatprep.subr.mxu0 0.0
    %2964 = vmatpush1.msra.mxu0 0.0
    %2965 = vmatprep.subr.mxu0 0.0
    %2966 = vmatpush1.msra.mxu0 0.0
    %2967 = vmatprep.subr.mxu0 0.0
    %2968 = vmatpush1.msra.mxu0 0.0
    %2969 = vmatprep.subr.mxu0 0.0
    %2970 = vmatpush1.msra.mxu0 0.0
    %2971 = vmatprep.subr.mxu0 0.0
    %2972 = vmatpush1.msra.mxu0 0.0
    %2973 = vmatprep.subr.mxu0 0.0
    %2974 = vmatpush1.msra.mxu0 0.0
    %2975 = vmatprep.subr.mxu0 0.0
    %2976 = vmatpush1.msra.mxu0 0.0
    %2977 = vmatprep.subr.mxu0 0.0
    %2978 = vmatpush1.msra.mxu0 0.0
    %2979 = vmatprep.subr.mxu0 0.0
    %2980 = vmatpush1.msra.mxu0 0.0
    %2981 = vmatprep.subr.mxu0 0.0
    %2982 = vmatpush1.msra.mxu0 0.0
    %2983 = vmatprep.subr.mxu0 0.0
    %2984 = vmatpush1.msra.mxu0 0.0
    %2985 = vmatprep.mubr.f32.mxu0 0.0
    %2986 = vmatmul.mubr.f32.gmra.mrb[0].mxu0 %v2919
    %v2987 = vpop.f32.mrb[0].mxu0
    %v2988 = vadd.f32 0.0, %v2987
    %v2989 = vpop.f32.mrb[0].mxu0
    %2990 = vdwg.mxu0
    %2992 = vrot.lane.b32.xlu0 %v2988, 32
    %v2993 = vpop.permute.xlu0 %2992
    %v2995 = vadd.f32 %v2835, %v2993
    %v2996 = vtanh.pop %v2995
    %2997 = vrot.lane.b32.xlu0 %v2836, 16
    %v2998 = vpop.permute.xlu0 %2997
    %v3000 = vmul.f32 %v2916, %v2998
    %v3001 = vsub.f32 1.0, %v2916
    %3003 = vrot.lane.b32.xlu0 %v2996, 112
    %v3004 = vpop.permute.xlu0 %3003
    %v3006 = vmul.f32 %v3001, %v3004
    %v3007 = vadd.f32 %v3000, %v3006
    %3009 = vrot.lane.b32.xlu0 %v3007, 112
    %v3010 = vpop.permute.xlu0 %3009
    %3012 = vst.msk [vmem:[#allocation3] sm:$0x3] %vm290, %v3010
    %3013 = vst.msk [vmem:[#allocation13] sm:$0x3] %vm290, %v3010
    // Predicated region
    $region42: #{tpu_custom_call.1} parent=1 // pred_check
      %p3014 = pneg %p88
    $region43: #{tpu_custom_call.1} parent=1 // pred_check_branch
      %3016 = sbr.rel (%p3014) target = $region45
    $region44: #{tpu_custom_call.1} parent=1 // pred_region
      %v3017 = vld [vmem:[#allocation2] sm:$0x3]
      %v3018 = vld [vmem:[#allocation3] sm:$0x3]
      %3020 = vrot.lane.b32.xlu0 %v3018, 16
      %v3021 = vpop.permute.xlu0 %3020
      %v3023 = vsel %vm106, %v3017, %v3021
      %vm3024 = vcmask 254976
      %3025 = vst.msk [vmem:[#allocation15] sm:$0x3] %vm3024, %v3023
    $region45: #{tpu_custom_call.1} parent=1 // pred_fallthru
      _
    // Predicated region
    $region46: #{tpu_custom_call.1} parent=1 // pred_check
      _
    $region47: #{tpu_custom_call.1} parent=1 // pred_check_branch
      %3027 = sbr.rel (0) target = $region49
    $region48: #{tpu_custom_call.1} parent=1 // pred_region
      %s3029 = ssub.s32 256, 256
      %3030 = vsyncadd [#allocation6], %s3029
      %s3031 = sshll.u32 [#allocation12], 4
      %s3032 = int_to_ptr.vmem [resolvable:$true] %s3031
      %3037 = dma.vmem_to_hbm [thread:$0]  %s3032, 256, %s5, [#allocation6], 32, 32, 2
    $region49: #{tpu_custom_call.1} parent=1 // pred_fallthru
      _
    // Predicated region
    $region50: #{tpu_custom_call.1} parent=1 // pred_check
      _
    $region51: #{tpu_custom_call.1} parent=1 // pred_check_branch
      %3039 = sbr.rel (0) target = $region53
    $region52: #{tpu_custom_call.1} parent=1 // pred_region
      %s3040 = ssub.s32 0, 0
      %s3041 = smul.u32 8, %s3040
      %s3043 = ssub.s32 256, 256
      %3044 = vsyncadd [#allocation14], %s3043
      %s3045 = smul.addr %s3041, 32
      %s3046 = scalar_lea.hbm %s6, %s3045
      %s3047 = sshll.u32 [#allocation13], 4
      %s3048 = int_to_ptr.vmem [resolvable:$true] %s3047
      %3053 = dma.vmem_to_hbm [thread:$0]  %s3048, 256, %s3046, [#allocation14], 32, 32, 2
    $region53: #{tpu_custom_call.1} parent=1 // pred_fallthru
      _
    // Predicated region
    $region54: #{tpu_custom_call.1} parent=1 // pred_check
      _
    $region55: #{tpu_custom_call.1} parent=1 // pred_check_branch
      %3055 = sbr.rel (0) target = $region57
    $region56: #{tpu_custom_call.1} parent=1 // pred_region
      %s3057 = ssub.s32 32, 32
      %3058 = vsyncadd [#allocation14], %s3057
      %s3060 = sshll.u32 [#allocation15], 4
      %s3061 = int_to_ptr.vmem [resolvable:$true] %s3060
      %3063 = dma.vmem_to_hbm [thread:$0]  %s3061, 32, %s7, [#allocation14]
    $region57: #{tpu_custom_call.1} parent=1 // pred_fallthru
      _
    // Predicated region
    $region58: #{tpu_custom_call.1} parent=1 // pred_check
      _
    $region59: #{tpu_custom_call.1} parent=1 // pred_check_branch
      %3065 = sbr.rel (0) target = $region61
    $region60: #{tpu_custom_call.1} parent=1 // pred_region
      %3066 = dma.done [#allocation6], 256
    $region61: #{tpu_custom_call.1} parent=1 // pred_fallthru
      _
    // Predicated region
    $region62: #{tpu_custom_call.1} parent=1 // pred_check
      _
    $region63: #{tpu_custom_call.1} parent=1 // pred_check_branch
      %3068 = sbr.rel (0) target = $region65
    $region64: #{tpu_custom_call.1} parent=1 // pred_region
      %3069 = dma.done [#allocation14], 256
    $region65: #{tpu_custom_call.1} parent=1 // pred_fallthru
      _
    // Predicated region
    $region66: #{tpu_custom_call.1} parent=1 // pred_check
      _
    $region67: #{tpu_custom_call.1} parent=1 // pred_check_branch
      %3071 = sbr.rel (0) target = $region69
    $region68: #{tpu_custom_call.1} parent=1 // pred_region
      %3072 = dma.done [#allocation14], 32
    $region69: #{tpu_custom_call.1} parent=1 // pred_fallthru
      _
    %3073 = vsyncpa [#allocation5], 1
    %3074 = vsyncpa [#allocation8], 1
    %3075 = vsyncpa [#allocation11], 1
    %3076 = vsyncpa [#allocation6], 1
    %3077 = vsyncpa [#allocation14], 1

</llo_original>
